<compile_context>
chip_gen: v5e
topology: v5e:2x2
jax: 0.10.0
libtpu: 0.0.40
codegen_flags: <defaults>
</compile_context>

<pallas_src>
import functools

import jax
import jax.numpy as jnp
from jax import lax
from jax.experimental import pallas as pl
from jax.experimental.pallas import tpu as pltpu


# ----------------------------------------------------------------------------
# Fused kernel: whole BasicBlock_C for one image per grid step.
# ----------------------------------------------------------------------------
def _fused_block_kernel(x_ref, wf_ref, wg_ref, w3_ref, wfc1_ref, wfc2_ref,
                        b1_ref, b2_ref, b3_ref, s0_ref, b0_ref,
                        o_ref, buf_ref, patches_ref,
                        *, H, W, inner, cout, margin):
    f32 = jnp.float32
    hw = H * W
    cdt = buf_ref.dtype                      # MXU operand dtype (f32 or bf16)

    # ---- conv1_0 + shortcut: one matmul against [w1*s1 | ws], split columns --
    x = x_ref[0]                                                   # (HW, Cin)
    yr = jnp.dot(x, wf_ref[...], preferred_element_type=f32)       # (HW, inner+cout)
    y1 = jnp.maximum(yr[:, :inner] + b1_ref[...], 0.0)             # bn1 scale folded in
    resid = yr[:, inner:]                                          # shortcut conv (no BN)

    # ---- grouped 3x3 conv as a single K-packed im2col matmul ----------------
    # Zero only the two margin bands (middle hw rows are fully overwritten).
    buf_ref[pl.ds(0, margin), :] = jnp.zeros((margin, inner), cdt)
    buf_ref[pl.ds(margin + hw, margin), :] = jnp.zeros((margin, inner), cdt)
    buf_ref[pl.ds(margin, hw), :] = y1.astype(cdt)

    # left / right column-validity masks, built in-kernel (no HBM inputs)
    col = lax.broadcasted_iota(jnp.int32, (hw, inner), 0) % W
    mask_l = col >= 1                        # tap needs (w-1) >= 0
    mask_r = col <= W - 2                    # tap needs (w+1) <  W
    zero = jnp.zeros((hw, inner), cdt)

    # Stage each masked tap straight into its column slot of the patches
    # scratch (no jnp.concatenate materialization).
    for dy in range(3):
        for dx in range(3):
            t = dy * 3 + dx
            off = (dy - 1) * W + (dx - 1)
            tap = buf_ref[pl.ds(margin + off, hw), :]              # (HW, inner)
            if dx == 0:
                tap = jnp.where(mask_l, tap, zero)
            elif dx == 2:
                tap = jnp.where(mask_r, tap, zero)
            patches_ref[:, t * inner:(t + 1) * inner] = tap

    y2 = jnp.dot(patches_ref[...], wg_ref[...], preferred_element_type=f32)
    y2 = jnp.maximum(y2 + b2_ref[...], 0.0)                        # bn2 scale folded in

    # ---- conv1_1 + bn3 bias + residual add ----------------------------------
    y3 = jnp.dot(y2.astype(cdt), w3_ref[...], preferred_element_type=f32)
    y3 = y3 + b3_ref[...] + resid                                  # bn3 scale folded in

    # ---- SE: global avg pool -> fc1-relu -> fc2-sigmoid ---------------------
    pooled = jnp.mean(y3, axis=0, keepdims=True).astype(cdt)       # (1, cout)
    hid = jnp.maximum(
        jnp.dot(pooled, wfc1_ref[...], preferred_element_type=f32), 0.0)
    gate = jax.nn.sigmoid(
        jnp.dot(hid.astype(cdt), wfc2_ref[...], preferred_element_type=f32))

    # ---- bn0 + relu (gate combined with bn0 scale: one (1,cout) multiply) ---
    out = jnp.maximum(y3 * (gate * s0_ref[...]) + b0_ref[...], 0.0)
    o_ref[0] = out.astype(o_ref.dtype)                             # lane-dense (hw, cout)


# ----------------------------------------------------------------------------
# Public forward (NCHW in / NCHW out): single pallas_call over images.
# ----------------------------------------------------------------------------
def basic_block_c_forward(x_nchw, p, *, compute_dtype=jnp.float32):
    n, cin, h, w = x_nchw.shape
    inner = p['b1'].shape[-1]
    cout = p['b0'].shape[-1]
    cr = p['wfc1'].shape[-1]
    hw = h * w
    margin = ((w + 1 + 7) // 8) * 8          # >= W+1, sublane aligned

    # TODO(synk): keep the surrounding network NHWC end-to-end to drop these
    # two layout transposes (kept to match the NCHW torch interface).
    x = jnp.transpose(x_nchw, (0, 2, 3, 1)).reshape(n, hw, cin).astype(compute_dtype)

    # MXU operands in compute_dtype (set bf16 on v6e/v7x to halve HBM/VMEM
    # traffic); accumulation and epilogues stay f32.
    wf = p['w_first'].astype(compute_dtype)
    wg = p['wg_packed'].astype(compute_dtype)
    w3 = p['w3_fused'].astype(compute_dtype)
    wfc1 = p['wfc1'].astype(compute_dtype)
    wfc2 = p['wfc2'].astype(compute_dtype)

    kern = functools.partial(_fused_block_kernel, H=h, W=w, inner=inner,
                             cout=cout, margin=margin)
    out_flat = pl.pallas_call(
        kern,
        out_shape=jax.ShapeDtypeStruct((n, hw, cout), jnp.float32),
        grid_spec=pltpu.PrefetchScalarGridSpec(
            num_scalar_prefetch=0,
            grid=(n,),
            in_specs=[
                pl.BlockSpec((1, hw, cin), lambda i: (i, 0, 0)),          # x
                pl.BlockSpec((cin, inner + cout), lambda i: (0, 0)),      # [w1*s1|ws]
                pl.BlockSpec((9 * inner, inner), lambda i: (0, 0)),       # gconv*s2
                pl.BlockSpec((inner, cout), lambda i: (0, 0)),            # w3*s3
                pl.BlockSpec((cout, cr), lambda i: (0, 0)),               # fc1
                pl.BlockSpec((cr, cout), lambda i: (0, 0)),               # fc2
                pl.BlockSpec((1, inner), lambda i: (0, 0)),               # b1
                pl.BlockSpec((1, inner), lambda i: (0, 0)),               # b2
                pl.BlockSpec((1, cout), lambda i: (0, 0)),                # b3
                pl.BlockSpec((1, cout), lambda i: (0, 0)),                # s0
                pl.BlockSpec((1, cout), lambda i: (0, 0)),                # b0
            ],
            out_specs=pl.BlockSpec((1, hw, cout), lambda i: (i, 0, 0)),
            scratch_shapes=[
                pltpu.VMEM((hw + 2 * margin, inner), compute_dtype),      # halo buf
                pltpu.VMEM((hw, 9 * inner), compute_dtype),               # im2col patches
            ]),
        compiler_params=pltpu.CompilerParams(
            dimension_semantics=("parallel",)),
    )(x, wf, wg, w3, wfc1, wfc2,
      p['b1'], p['b2'], p['b3'], p['s0'], p['b0'])

    out_nhwc = out_flat.reshape(n, h, w, cout)
    return jnp.transpose(out_nhwc, (0, 3, 1, 2))                  # back to NCHW


# ----------------------------------------------------------------------------
# Parameter initialization (deterministic, shapes from BasicBlock_C.__init__)
# ----------------------------------------------------------------------------
def init_params(key, in_planes, cardinality=32, bottleneck_width=4,
                expansion=2, reduction=16):
    inner = cardinality * bottleneck_width
    cout = inner * expansion
    gsz = bottleneck_width
    keys = jax.random.split(key, 10)

    w1 = 0.1 * jax.random.normal(keys[0], (in_planes, inner), jnp.float32)
    wg = 0.1 * jax.random.normal(keys[1], (3, 3, cardinality, gsz, gsz),
                                 jnp.float32)
    w3 = 0.1 * jax.random.normal(keys[2], (inner, cout), jnp.float32)
    ws = 0.1 * jax.random.normal(keys[3], (in_planes, cout), jnp.float32)
    wfc1 = 0.1 * jax.random.normal(keys[4], (cout, cout // reduction),
                                   jnp.float32)
    wfc2 = 0.1 * jax.random.normal(keys[5], (cout // reduction, cout),
                                   jnp.float32)

    def bn_params(k, c):
        k1, k2 = jax.random.split(k)
        gamma = 1.0 + 0.1 * jax.random.normal(k1, (c,), jnp.float32)
        beta = 0.1 * jax.random.normal(k2, (c,), jnp.float32)
        eps = 1e-5
        scale = gamma / jnp.sqrt(1.0 + eps)   # running_var = 1
        bias = beta                           # running_mean = 0
        return scale.reshape(1, c), bias.reshape(1, c)

    s1, b1 = bn_params(keys[6], inner)
    s2, b2 = bn_params(keys[7], inner)
    s3, b3 = bn_params(keys[8], cout)
    s0, b0 = bn_params(keys[9], cout)

    # fused first-layer weight: [conv1_0 * bn1_scale | shortcut]
    w_first = jnp.concatenate([w1 * s1, ws], axis=1)              # (cin, inner+cout)

    # dense block-diagonal, K-packed (im2col) grouped-conv weight, bn2 scale
    # folded into the output columns: (9*inner, inner)
    w_bd = jnp.zeros((9, inner, inner), jnp.float32)
    wg9 = wg.reshape(9, cardinality, gsz, gsz)
    for g in range(cardinality):
        w_bd = w_bd.at[:, g * gsz:(g + 1) * gsz,
                       g * gsz:(g + 1) * gsz].set(wg9[:, g])
    wg_packed = w_bd.reshape(9 * inner, inner) * s2

    # bn3 scale folded into conv1_1
    w3_fused = w3 * s3

    # HWIO grouped weight for the pure-JAX reference
    wg_hwio = wg.transpose(0, 1, 3, 2, 4).reshape(3, 3, gsz, inner)

    return dict(w1=w1, ws=ws, w3=w3, wfc1=wfc1, wfc2=wfc2,
                w_first=w_first, wg_packed=wg_packed, w3_fused=w3_fused,
                wg_hwio=wg_hwio,
                s1=s1, b1=b1, s2=s2, b2=b2, s3=s3, b3=b3, s0=s0, b0=b0,
                cardinality=cardinality)


# ----------------------------------------------------------------------------
# Pure-JAX reference (unfolded weights, same inference-mode BN semantics)
# ----------------------------------------------------------------------------
def reference_forward(x_nchw, p):
    x = jnp.transpose(x_nchw, (0, 2, 3, 1)).astype(jnp.float32)
    bn = lambda v, s, b: v * s + b
    y = jnp.einsum('nhwc,cd->nhwd', x, p['w1'])
    y = jnp.maximum(bn(y, p['s1'], p['b1']), 0.0)
    y = lax.conv_general_dilated(
        y, p['wg_hwio'], (1, 1), 'SAME',
        dimension_numbers=('NHWC', 'HWIO', 'NHWC'),
        feature_group_count=p['cardinality'])
    y = jnp.maximum(bn(y, p['s2'], p['b2']), 0.0)
    y = jnp.einsum('nhwc,cd->nhwd', y, p['w3'])
    y = bn(y, p['s3'], p['b3'])
    r = jnp.einsum('nhwc,cd->nhwd', x, p['ws'])   # shortcut: conv only, no BN
    y = y + r
    pooled = jnp.mean(y, axis=(1, 2))
    hid = jnp.maximum(pooled @ p['wfc1'], 0.0)
    gate = jax.nn.sigmoid(hid @ p['wfc2'])
    y = y * gate[:, None, None, :]
    y = jnp.maximum(bn(y, p['s0'], p['b0']), 0.0)
    return jnp.transpose(y, (0, 3, 1, 2))


if __name__ == "__main__":
    key = jax.random.PRNGKey(0)
    k_x, k_p = jax.random.split(key)

    # module defaults: in_planes=4, cardinality=32, bottleneck_width=4
    # -> inner=128, out channels=256
    N, C_IN, H, W = 2, 4, 16, 16
    x = jax.random.normal(k_x, (N, C_IN, H, W), jnp.float32)   # NCHW like torch
    params = init_params(k_p, C_IN)

    out = jax.block_until_ready(basic_block_c_forward(x, params))
    ref = jax.block_until_ready(reference_forward(x, params))

    assert out.shape == (N, 256, H, W), out.shape
    max_err = float(jnp.max(jnp.abs(out - ref)))
    assert max_err < 1e-3, f"mismatch vs reference, max abs err = {max_err}"

    print("KERNEL_OK")
</pallas_src>

<mosaic_0001>
module attributes {stable_mosaic.version = 11 : i64} {
  func.func @_fused_block_kernel(%arg0: i32, %arg1: memref<1x256x4xf32, #tpu.memory_space<vmem>>, %arg2: memref<4x384xf32, #tpu.memory_space<vmem>>, %arg3: memref<1152x128xf32, #tpu.memory_space<vmem>>, %arg4: memref<128x256xf32, #tpu.memory_space<vmem>>, %arg5: memref<256x16xf32, #tpu.memory_space<vmem>>, %arg6: memref<16x256xf32, #tpu.memory_space<vmem>>, %arg7: memref<1x128xf32, #tpu.memory_space<vmem>>, %arg8: memref<1x128xf32, #tpu.memory_space<vmem>>, %arg9: memref<1x256xf32, #tpu.memory_space<vmem>>, %arg10: memref<1x256xf32, #tpu.memory_space<vmem>>, %arg11: memref<1x256xf32, #tpu.memory_space<vmem>>, %arg12: memref<1x256x256xf32, #tpu.memory_space<vmem>>, %arg13: memref<304x128xf32, #tpu.memory_space<vmem>>, %arg14: memref<256x1152xf32, #tpu.memory_space<vmem>>) attributes {dimension_semantics = [#tpu.dimension_semantics<parallel>], iteration_bounds = array<i64: 2>, scalar_prefetch = 0 : i64, scratch_operands = 2 : i64, tpu.core_type = #tpu.core_type<tc>, window_params = [{transform_indices = @transform_0, window_bounds = array<i64: 1, 256, 4>}, {pipeline_mode = #tpu.pipeline_mode<synchronous>, transform_indices = @transform_1, window_bounds = array<i64: 4, 384>}, {pipeline_mode = #tpu.pipeline_mode<synchronous>, transform_indices = @transform_2, window_bounds = array<i64: 1152, 128>}, {pipeline_mode = #tpu.pipeline_mode<synchronous>, transform_indices = @transform_3, window_bounds = array<i64: 128, 256>}, {pipeline_mode = #tpu.pipeline_mode<synchronous>, transform_indices = @transform_4, window_bounds = array<i64: 256, 16>}, {pipeline_mode = #tpu.pipeline_mode<synchronous>, transform_indices = @transform_5, window_bounds = array<i64: 16, 256>}, {pipeline_mode = #tpu.pipeline_mode<synchronous>, transform_indices = @transform_6, window_bounds = array<i64: 1, 128>}, {pipeline_mode = #tpu.pipeline_mode<synchronous>, transform_indices = @transform_7, window_bounds = array<i64: 1, 128>}, {pipeline_mode = #tpu.pipeline_mode<synchronous>, transform_indices = @transform_8, window_bounds = array<i64: 1, 256>}, {pipeline_mode = #tpu.pipeline_mode<synchronous>, transform_indices = @transform_9, window_bounds = array<i64: 1, 256>}, {pipeline_mode = #tpu.pipeline_mode<synchronous>, transform_indices = @transform_10, window_bounds = array<i64: 1, 256>}, {transform_indices = @transform_11, window_bounds = array<i64: 1, 256, 256>}]} {
    %c0 = arith.constant 0 : index
    %c0_0 = arith.constant 0 : index
    %c0_1 = arith.constant 0 : index
    %0 = vector.load %arg1[%c0, %c0_0, %c0_1] : memref<1x256x4xf32, #tpu.memory_space<vmem>>, vector<1x256x4xf32>
    %1 = vector.shape_cast %0 : vector<1x256x4xf32> to vector<256x4xf32>
    %c0_2 = arith.constant 0 : index
    %c0_3 = arith.constant 0 : index
    %2 = vector.load %arg2[%c0_2, %c0_3] : memref<4x384xf32, #tpu.memory_space<vmem>>, vector<4x384xf32>
    %cst = arith.constant dense<0.000000e+00> : vector<256x384xf32>
    %3 = tpu.matmul %1, %2, %cst {dimension_numbers = #tpu.dot_dimension_numbers<[1], [0], [0], [1], [0, 0, 1, 1], [], []>} : vector<256x4xf32>, vector<4x384xf32>, vector<256x384xf32> -> vector<256x384xf32>
    %4 = vector.extract_strided_slice %3 {offsets = [0, 0], sizes = [256, 128], strides = [1, 1]} : vector<256x384xf32> to vector<256x128xf32>
    %c0_4 = arith.constant 0 : index
    %c0_5 = arith.constant 0 : index
    %5 = vector.load %arg7[%c0_4, %c0_5] : memref<1x128xf32, #tpu.memory_space<vmem>>, vector<1x128xf32>
    %6 = vector.broadcast %5 : vector<1x128xf32> to vector<256x128xf32>
    %7 = arith.addf %4, %6 : vector<256x128xf32>
    %cst_6 = arith.constant 0.000000e+00 : f32
    %8 = vector.broadcast %cst_6 : f32 to vector<256x128xf32>
    %9 = arith.maximumf %7, %8 : vector<256x128xf32>
    %10 = vector.extract_strided_slice %3 {offsets = [0, 128], sizes = [256, 256], strides = [1, 1]} : vector<256x384xf32> to vector<256x256xf32>
    %cst_7 = arith.constant 0.000000e+00 : f32
    %11 = vector.broadcast %cst_7 : f32 to vector<24x128xf32>
    %c0_8 = arith.constant 0 : index
    %c0_9 = arith.constant 0 : index
    %12 = vector.load %arg13[%c0_8, %c0_9] : memref<304x128xf32, #tpu.memory_space<vmem>>, vector<24x128xf32>
    tpu.vector_store %arg13[%c0_8, %c0_9], %11 {strides = array<i32>} : memref<304x128xf32, #tpu.memory_space<vmem>>, vector<24x128xf32>,
    %cst_10 = arith.constant 0.000000e+00 : f32
    %13 = vector.broadcast %cst_10 : f32 to vector<24x128xf32>
    %c280 = arith.constant 280 : index
    %c0_11 = arith.constant 0 : index
    %14 = vector.load %arg13[%c280, %c0_11] : memref<304x128xf32, #tpu.memory_space<vmem>>, vector<24x128xf32>
    tpu.vector_store %arg13[%c280, %c0_11], %13 {strides = array<i32>} : memref<304x128xf32, #tpu.memory_space<vmem>>, vector<24x128xf32>,
    %c24 = arith.constant 24 : index
    %c0_12 = arith.constant 0 : index
    %15 = vector.load %arg13[%c24, %c0_12] : memref<304x128xf32, #tpu.memory_space<vmem>>, vector<256x128xf32>
    tpu.vector_store %arg13[%c24, %c0_12], %9 {strides = array<i32>} : memref<304x128xf32, #tpu.memory_space<vmem>>, vector<256x128xf32>,
    %16 = tpu.iota {dimensions = array<i32: 0>} : vector<256x128xi32>
    %c16_i32 = arith.constant 16 : i32
    %c0_i32 = arith.constant 0 : i32
    %17 = arith.cmpi eq, %c16_i32, %c0_i32 : i32
    %c1_i32 = arith.constant 1 : i32
    %18 = arith.select %17, %c1_i32, %c16_i32 : i32
    %19 = vector.broadcast %18 : i32 to vector<256x128xi32>
    %20 = arith.remsi %16, %19 : vector<256x128xi32>
    %c0_i32_13 = arith.constant 0 : i32
    %21 = vector.broadcast %c0_i32_13 : i32 to vector<256x128xi32>
    %22 = arith.cmpi ne, %20, %21 : vector<256x128xi32>
    %c0_i32_14 = arith.constant 0 : i32
    %23 = vector.broadcast %c0_i32_14 : i32 to vector<256x128xi32>
    %24 = arith.cmpi slt, %20, %23 : vector<256x128xi32>
    %c0_i32_15 = arith.constant 0 : i32
    %25 = arith.cmpi slt, %18, %c0_i32_15 : i32
    %26 = vector.broadcast %25 : i1 to vector<256x128xi1>
    %27 = vector.broadcast %26 : vector<256x128xi1> to vector<256x128xi1>
    %28 = arith.xori %24, %27 : vector<256x128xi1>
    %29 = arith.andi %28, %22 : vector<256x128xi1>
    %30 = vector.broadcast %18 : i32 to vector<256x128xi32>
    %31 = arith.addi %20, %30 : vector<256x128xi32>
    %32 = arith.select %29, %31, %20 : vector<256x128xi1>, vector<256x128xi32>
    %c1_i32_16 = arith.constant 1 : i32
    %33 = vector.broadcast %c1_i32_16 : i32 to vector<256x128xi32>
    %34 = arith.cmpi sge, %32, %33 : vector<256x128xi32>
    %c14_i32 = arith.constant 14 : i32
    %35 = vector.broadcast %c14_i32 : i32 to vector<256x128xi32>
    %36 = arith.cmpi sle, %32, %35 : vector<256x128xi32>
    %cst_17 = arith.constant 0.000000e+00 : f32
    %37 = vector.broadcast %cst_17 : f32 to vector<256x128xf32>
    %c7 = arith.constant 7 : index
    %c0_18 = arith.constant 0 : index
    %38 = vector.load %arg13[%c7, %c0_18] : memref<304x128xf32, #tpu.memory_space<vmem>>, vector<256x128xf32>
    %39 = arith.select %34, %38, %37 : vector<256x128xi1>, vector<256x128xf32>
    %c0_19 = arith.constant 0 : index
    %c0_20 = arith.constant 0 : index
    %40 = vector.load %arg14[%c0_19, %c0_20] : memref<256x1152xf32, #tpu.memory_space<vmem>>, vector<256x128xf32>
    tpu.vector_store %arg14[%c0_19, %c0_20], %39 {strides = array<i32>} : memref<256x1152xf32, #tpu.memory_space<vmem>>, vector<256x128xf32>,
    %c8 = arith.constant 8 : index
    %c0_21 = arith.constant 0 : index
    %41 = vector.load %arg13[%c8, %c0_21] : memref<304x128xf32, #tpu.memory_space<vmem>>, vector<256x128xf32>
    %c0_22 = arith.constant 0 : index
    %c128 = arith.constant 128 : index
    %42 = vector.load %arg14[%c0_22, %c128] : memref<256x1152xf32, #tpu.memory_space<vmem>>, vector<256x128xf32>
    tpu.vector_store %arg14[%c0_22, %c128], %41 {strides = array<i32>} : memref<256x1152xf32, #tpu.memory_space<vmem>>, vector<256x128xf32>,
    %c9 = arith.constant 9 : index
    %c0_23 = arith.constant 0 : index
    %43 = vector.load %arg13[%c9, %c0_23] : memref<304x128xf32, #tpu.memory_space<vmem>>, vector<256x128xf32>
    %44 = arith.select %36, %43, %37 : vector<256x128xi1>, vector<256x128xf32>
    %c0_24 = arith.constant 0 : index
    %c256 = arith.constant 256 : index
    %45 = vector.load %arg14[%c0_24, %c256] : memref<256x1152xf32, #tpu.memory_space<vmem>>, vector<256x128xf32>
    tpu.vector_store %arg14[%c0_24, %c256], %44 {strides = array<i32>} : memref<256x1152xf32, #tpu.memory_space<vmem>>, vector<256x128xf32>,
    %c23 = arith.constant 23 : index
    %c0_25 = arith.constant 0 : index
    %46 = vector.load %arg13[%c23, %c0_25] : memref<304x128xf32, #tpu.memory_space<vmem>>, vector<256x128xf32>
    %47 = arith.select %34, %46, %37 : vector<256x128xi1>, vector<256x128xf32>
    %c0_26 = arith.constant 0 : index
    %c384 = arith.constant 384 : index
    %48 = vector.load %arg14[%c0_26, %c384] : memref<256x1152xf32, #tpu.memory_space<vmem>>, vector<256x128xf32>
    tpu.vector_store %arg14[%c0_26, %c384], %47 {strides = array<i32>} : memref<256x1152xf32, #tpu.memory_space<vmem>>, vector<256x128xf32>,
    %c24_27 = arith.constant 24 : index
    %c0_28 = arith.constant 0 : index
    %49 = vector.load %arg13[%c24_27, %c0_28] : memref<304x128xf32, #tpu.memory_space<vmem>>, vector<256x128xf32>
    %c0_29 = arith.constant 0 : index
    %c512 = arith.constant 512 : index
    %50 = vector.load %arg14[%c0_29, %c512] : memref<256x1152xf32, #tpu.memory_space<vmem>>, vector<256x128xf32>
    tpu.vector_store %arg14[%c0_29, %c512], %49 {strides = array<i32>} : memref<256x1152xf32, #tpu.memory_space<vmem>>, vector<256x128xf32>,
    %c25 = arith.constant 25 : index
    %c0_30 = arith.constant 0 : index
    %51 = vector.load %arg13[%c25, %c0_30] : memref<304x128xf32, #tpu.memory_space<vmem>>, vector<256x128xf32>
    %52 = arith.select %36, %51, %37 : vector<256x128xi1>, vector<256x128xf32>
    %c0_31 = arith.constant 0 : index
    %c640 = arith.constant 640 : index
    %53 = vector.load %arg14[%c0_31, %c640] : memref<256x1152xf32, #tpu.memory_space<vmem>>, vector<256x128xf32>
    tpu.vector_store %arg14[%c0_31, %c640], %52 {strides = array<i32>} : memref<256x1152xf32, #tpu.memory_space<vmem>>, vector<256x128xf32>,
    %c39 = arith.constant 39 : index
    %c0_32 = arith.constant 0 : index
    %54 = vector.load %arg13[%c39, %c0_32] : memref<304x128xf32, #tpu.memory_space<vmem>>, vector<256x128xf32>
    %55 = arith.select %34, %54, %37 : vector<256x128xi1>, vector<256x128xf32>
    %c0_33 = arith.constant 0 : index
    %c768 = arith.constant 768 : index
    %56 = vector.load %arg14[%c0_33, %c768] : memref<256x1152xf32, #tpu.memory_space<vmem>>, vector<256x128xf32>
    tpu.vector_store %arg14[%c0_33, %c768], %55 {strides = array<i32>} : memref<256x1152xf32, #tpu.memory_space<vmem>>, vector<256x128xf32>,
    %c40 = arith.constant 40 : index
    %c0_34 = arith.constant 0 : index
    %57 = vector.load %arg13[%c40, %c0_34] : memref<304x128xf32, #tpu.memory_space<vmem>>, vector<256x128xf32>
    %c0_35 = arith.constant 0 : index
    %c896 = arith.constant 896 : index
    %58 = vector.load %arg14[%c0_35, %c896] : memref<256x1152xf32, #tpu.memory_space<vmem>>, vector<256x128xf32>
    tpu.vector_store %arg14[%c0_35, %c896], %57 {strides = array<i32>} : memref<256x1152xf32, #tpu.memory_space<vmem>>, vector<256x128xf32>,
    %c41 = arith.constant 41 : index
    %c0_36 = arith.constant 0 : index
    %59 = vector.load %arg13[%c41, %c0_36] : memref<304x128xf32, #tpu.memory_space<vmem>>, vector<256x128xf32>
    %60 = arith.select %36, %59, %37 : vector<256x128xi1>, vector<256x128xf32>
    %c0_37 = arith.constant 0 : index
    %c1024 = arith.constant 1024 : index
    %61 = vector.load %arg14[%c0_37, %c1024] : memref<256x1152xf32, #tpu.memory_space<vmem>>, vector<256x128xf32>
    tpu.vector_store %arg14[%c0_37, %c1024], %60 {strides = array<i32>} : memref<256x1152xf32, #tpu.memory_space<vmem>>, vector<256x128xf32>,
    %c0_38 = arith.constant 0 : index
    %c0_39 = arith.constant 0 : index
    %62 = vector.load %arg14[%c0_38, %c0_39] : memref<256x1152xf32, #tpu.memory_space<vmem>>, vector<256x1152xf32>
    %c0_40 = arith.constant 0 : index
    %c0_41 = arith.constant 0 : index
    %63 = vector.load %arg3[%c0_40, %c0_41] : memref<1152x128xf32, #tpu.memory_space<vmem>>, vector<1152x128xf32>
    %cst_42 = arith.constant dense<0.000000e+00> : vector<256x128xf32>
    %64 = tpu.matmul %62, %63, %cst_42 {dimension_numbers = #tpu.dot_dimension_numbers<[1], [0], [0], [1], [0, 0, 1, 1], [], []>} : vector<256x1152xf32>, vector<1152x128xf32>, vector<256x128xf32> -> vector<256x128xf32>
    %c0_43 = arith.constant 0 : index
    %c0_44 = arith.constant 0 : index
    %65 = vector.load %arg8[%c0_43, %c0_44] : memref<1x128xf32, #tpu.memory_space<vmem>>, vector<1x128xf32>
    %66 = vector.broadcast %65 : vector<1x128xf32> to vector<256x128xf32>
    %67 = arith.addf %64, %66 : vector<256x128xf32>
    %cst_45 = arith.constant 0.000000e+00 : f32
    %68 = vector.broadcast %cst_45 : f32 to vector<256x128xf32>
    %69 = arith.maximumf %67, %68 : vector<256x128xf32>
    %c0_46 = arith.constant 0 : index
    %c0_47 = arith.constant 0 : index
    %70 = vector.load %arg4[%c0_46, %c0_47] : memref<128x256xf32, #tpu.memory_space<vmem>>, vector<128x256xf32>
    %cst_48 = arith.constant dense<0.000000e+00> : vector<256x256xf32>
    %71 = tpu.matmul %69, %70, %cst_48 {dimension_numbers = #tpu.dot_dimension_numbers<[1], [0], [0], [1], [0, 0, 1, 1], [], []>} : vector<256x128xf32>, vector<128x256xf32>, vector<256x256xf32> -> vector<256x256xf32>
    %c0_49 = arith.constant 0 : index
    %c0_50 = arith.constant 0 : index
    %72 = vector.load %arg9[%c0_49, %c0_50] : memref<1x256xf32, #tpu.memory_space<vmem>>, vector<1x256xf32>
    %73 = vector.broadcast %72 : vector<1x256xf32> to vector<256x256xf32>
    %74 = arith.addf %71, %73 : vector<256x256xf32>
    %75 = arith.addf %74, %10 : vector<256x256xf32>
    %cst_51 = arith.constant dense<0.000000e+00> : vector<256xf32>
    %76 = vector.multi_reduction <add>, %75, %cst_51 [0] : vector<256x256xf32> to vector<256xf32>
    %77 = vector.shape_cast %76 : vector<256xf32> to vector<1x256xf32>
    %cst_52 = arith.constant 2.560000e+02 : f32
    %78 = vector.broadcast %cst_52 : f32 to vector<1x256xf32>
    %79 = arith.divf %77, %78 : vector<1x256xf32>
    %c0_53 = arith.constant 0 : index
    %c0_54 = arith.constant 0 : index
    %80 = vector.load %arg5[%c0_53, %c0_54] : memref<256x16xf32, #tpu.memory_space<vmem>>, vector<256x16xf32>
    %cst_55 = arith.constant dense<0.000000e+00> : vector<1x16xf32>
    %81 = tpu.matmul %79, %80, %cst_55 {dimension_numbers = #tpu.dot_dimension_numbers<[1], [0], [0], [1], [0, 0, 1, 1], [], []>} : vector<1x256xf32>, vector<256x16xf32>, vector<1x16xf32> -> vector<1x16xf32>
    %cst_56 = arith.constant 0.000000e+00 : f32
    %82 = vector.broadcast %cst_56 : f32 to vector<1x16xf32>
    %83 = arith.maximumf %81, %82 : vector<1x16xf32>
    %c0_57 = arith.constant 0 : index
    %c0_58 = arith.constant 0 : index
    %84 = vector.load %arg6[%c0_57, %c0_58] : memref<16x256xf32, #tpu.memory_space<vmem>>, vector<16x256xf32>
    %cst_59 = arith.constant dense<0.000000e+00> : vector<1x256xf32>
    %85 = tpu.matmul %83, %84, %cst_59 {dimension_numbers = #tpu.dot_dimension_numbers<[1], [0], [0], [1], [0, 0, 1, 1], [], []>} : vector<1x16xf32>, vector<16x256xf32>, vector<1x256xf32> -> vector<1x256xf32>
    %86 = arith.negf %85 : vector<1x256xf32>
    %87 = math.exp %86 : vector<1x256xf32>
    %cst_60 = arith.constant 1.000000e+00 : f32
    %88 = vector.broadcast %cst_60 : f32 to vector<1x256xf32>
    %89 = arith.addf %88, %87 : vector<1x256xf32>
    %90 = arith.divf %88, %89 : vector<1x256xf32>
    %c0_61 = arith.constant 0 : index
    %c0_62 = arith.constant 0 : index
    %91 = vector.load %arg10[%c0_61, %c0_62] : memref<1x256xf32, #tpu.memory_space<vmem>>, vector<1x256xf32>
    %92 = arith.mulf %90, %91 : vector<1x256xf32>
    %93 = vector.broadcast %92 : vector<1x256xf32> to vector<256x256xf32>
    %94 = arith.mulf %75, %93 : vector<256x256xf32>
    %c0_63 = arith.constant 0 : index
    %c0_64 = arith.constant 0 : index
    %95 = vector.load %arg11[%c0_63, %c0_64] : memref<1x256xf32, #tpu.memory_space<vmem>>, vector<1x256xf32>
    %96 = vector.broadcast %95 : vector<1x256xf32> to vector<256x256xf32>
    %97 = arith.addf %94, %96 : vector<256x256xf32>
    %cst_65 = arith.constant 0.000000e+00 : f32
    %98 = vector.broadcast %cst_65 : f32 to vector<256x256xf32>
    %99 = arith.maximumf %97, %98 : vector<256x256xf32>
    %c0_66 = arith.constant 0 : index
    %c0_67 = arith.constant 0 : index
    %c0_68 = arith.constant 0 : index
    %100 = vector.load %arg12[%c0_66, %c0_67, %c0_68] : memref<1x256x256xf32, #tpu.memory_space<vmem>>, vector<1x256x256xf32>
    %101 = vector.shape_cast %100 : vector<1x256x256xf32> to vector<256x256xf32>
    %102 = vector.shape_cast %99 : vector<256x256xf32> to vector<1x256x256xf32>
    tpu.vector_store %arg12[%c0_66, %c0_67, %c0_68], %102 {strides = array<i32>} : memref<1x256x256xf32, #tpu.memory_space<vmem>>, vector<1x256x256xf32>,
    return
  }
  func.func @transform_0(%arg0: i32) -> (i32, i32, i32) {
    %c0_i32 = arith.constant 0 : i32
    %c0_i32_0 = arith.constant 0 : i32
    %c0_i32_1 = arith.constant 0 : i32
    return %arg0, %c0_i32, %c0_i32_0 : i32, i32, i32
  }
  func.func @transform_1(%arg0: i32) -> (i32, i32) {
    %c0_i32 = arith.constant 0 : i32
    %c0_i32_0 = arith.constant 0 : i32
    %c0_i32_1 = arith.constant 0 : i32
    return %c0_i32, %c0_i32_0 : i32, i32
  }
  func.func @transform_2(%arg0: i32) -> (i32, i32) {
    %c0_i32 = arith.constant 0 : i32
    %c0_i32_0 = arith.constant 0 : i32
    %c0_i32_1 = arith.constant 0 : i32
    return %c0_i32, %c0_i32_0 : i32, i32
  }
  func.func @transform_3(%arg0: i32) -> (i32, i32) {
    %c0_i32 = arith.constant 0 : i32
    %c0_i32_0 = arith.constant 0 : i32
    %c0_i32_1 = arith.constant 0 : i32
    return %c0_i32, %c0_i32_0 : i32, i32
  }
  func.func @transform_4(%arg0: i32) -> (i32, i32) {
    %c0_i32 = arith.constant 0 : i32
    %c0_i32_0 = arith.constant 0 : i32
    %c0_i32_1 = arith.constant 0 : i32
    return %c0_i32, %c0_i32_0 : i32, i32
  }
  func.func @transform_5(%arg0: i32) -> (i32, i32) {
    %c0_i32 = arith.constant 0 : i32
    %c0_i32_0 = arith.constant 0 : i32
    %c0_i32_1 = arith.constant 0 : i32
    return %c0_i32, %c0_i32_0 : i32, i32
  }
  func.func @transform_6(%arg0: i32) -> (i32, i32) {
    %c0_i32 = arith.constant 0 : i32
    %c0_i32_0 = arith.constant 0 : i32
    %c0_i32_1 = arith.constant 0 : i32
    return %c0_i32, %c0_i32_0 : i32, i32
  }
  func.func @transform_7(%arg0: i32) -> (i32, i32) {
    %c0_i32 = arith.constant 0 : i32
    %c0_i32_0 = arith.constant 0 : i32
    %c0_i32_1 = arith.constant 0 : i32
    return %c0_i32, %c0_i32_0 : i32, i32
  }
  func.func @transform_8(%arg0: i32) -> (i32, i32) {
    %c0_i32 = arith.constant 0 : i32
    %c0_i32_0 = arith.constant 0 : i32
    %c0_i32_1 = arith.constant 0 : i32
    return %c0_i32, %c0_i32_0 : i32, i32
  }
  func.func @transform_9(%arg0: i32) -> (i32, i32) {
    %c0_i32 = arith.constant 0 : i32
    %c0_i32_0 = arith.constant 0 : i32
    %c0_i32_1 = arith.constant 0 : i32
    return %c0_i32, %c0_i32_0 : i32, i32
  }
  func.func @transform_10(%arg0: i32) -> (i32, i32) {
    %c0_i32 = arith.constant 0 : i32
    %c0_i32_0 = arith.constant 0 : i32
    %c0_i32_1 = arith.constant 0 : i32
    return %c0_i32, %c0_i32_0 : i32, i32
  }
  func.func @transform_11(%arg0: i32) -> (i32, i32, i32) {
    %c0_i32 = arith.constant 0 : i32
    %c0_i32_0 = arith.constant 0 : i32
    %c0_i32_1 = arith.constant 0 : i32
    return %arg0, %c0_i32, %c0_i32_0 : i32, i32, i32
  }
}

</mosaic_0001>

<llo_original>
// kernel: tpu_custom_call.1
$region0: #{tpu_custom_call.1}
  #allocation0 [shape = 'u32[]', space=smem, size = 0x4, offset = 0x4, fixed_abs, tag = 'smem constant byte address 0x4 - core index']
  #allocation1 [shape = 'u32[72,128]{1,0:T(1,128)}', space=vmem, size = 0x9000, scoped, tag = 'internal scratch']
  #allocation2 [shape = 'f32[304,128]{1,0:T(8,128)}', space=vmem, size = 0x26000, scoped, tag = 'scratch operand']
  #allocation3 [shape = 'f32[256,1152]{1,0:T(8,128)}', space=vmem, size = 0x120000, scoped, tag = 'scratch operand']
  %s0 = inlined_call_operand.vmem [shape: f32[2,256,4], index: 0, kind: input, shape index: {}]
  %s1 = inlined_call_operand.vmem [shape: f32[4,384], index: 1, kind: input, shape index: {}]
  %s2 = inlined_call_operand.hbm [shape: f32[1152,128], index: 2, kind: input, shape index: {}]
  %s3 = inlined_call_operand.vmem [shape: f32[128,256], index: 3, kind: input, shape index: {}]
  %s4 = inlined_call_operand.vmem [shape: f32[256,16], index: 4, kind: input, shape index: {}]
  %s5 = inlined_call_operand.vmem [shape: f32[16,256], index: 5, kind: input, shape index: {}]
  %s6 = inlined_call_operand.vmem [shape: f32[1,128], index: 6, kind: input, shape index: {}]
  %s7 = inlined_call_operand.vmem [shape: f32[1,128], index: 7, kind: input, shape index: {}]
  %s8 = inlined_call_operand.vmem [shape: f32[1,256], index: 8, kind: input, shape index: {}]
  %s9 = inlined_call_operand.vmem [shape: f32[1,256], index: 9, kind: input, shape index: {}]
  %s10 = inlined_call_operand.vmem [shape: f32[1,256], index: 10, kind: input, shape index: {}]
  %s11 = inlined_call_operand.hbm [shape: f32[2,256,256], index: 11, kind: output, shape index: {}]
  %s12 = sld [smem:[#allocation0]]
  $region81: #{tpu_custom_call.1} parent=0
    _
  %s14 = ssub.s32 1, %s12
  %s15 = scalar_select 0, %s14, %s12
  $region1: #{tpu_custom_call.1} parent=0
    #allocation4 [shape = 'u8[589824]{0}', space=vmem, size = 0x90000, scoped, tag = 'input window, operand 2, single buffered']
    #allocation5 [shape = 's32[2]{0}', space=sflag, size = 0x8, scoped, tag = 'scoped memory for tpu_custom_call.1']
    #allocation6 [shape = 's32[2]{0}', space=sflag, size = 0x8, scoped, tag = 'scoped memory for tpu_custom_call.1']
    #allocation7 [shape = 'u8[524288]{0}', space=vmem, size = 0x80000, scoped, tag = 'output window, operand 0']
    %16 = vsyncpa [#allocation5], 0
    %17 = vsyncpa [#allocation6], 0
    %s18 = scalar_lea.sflag [#allocation6], 1
    %19 = vsyncpa %s18, 0
    loop: start=0, step=1, limit=4
    $region2: #{tpu_custom_call.1} parent=1 // loop_pre_header
      _
    $region3: #{tpu_custom_call.1} parent=1 // loop_header
      %s21 = sphi 0, %s25
      %p22 = scmp.ge.s32.totalorder %s21, 4
      %s31 = sphi 0, %s33
      %s34 = sphi 0, %s31
      %s35 = sphi 0, %s34
      %s51 = sphi 0, %s35
      %s55 = sphi 0, %s55
      %s57 = sphi 0, %s55
      %s58 = sphi 0, %s57
      %s72 = sphi 0, %s58
      %s76 = sphi 0, %s76
      %s78 = sphi 0, %s76
      %s79 = sphi 0, %s78
      %s93 = sphi 0, %s79
      %s97 = sphi 0, %s97
      %s99 = sphi 0, %s97
      %s100 = sphi 0, %s99
      %s114 = sphi 0, %s100
      %s118 = sphi 0, %s118
      %s120 = sphi 0, %s118
      %s121 = sphi 0, %s120
      %s135 = sphi 0, %s121
      %s139 = sphi 0, %s139
      %s141 = sphi 0, %s139
      %s142 = sphi 0, %s141
      %s156 = sphi 0, %s142
      %s160 = sphi 0, %s160
      %s162 = sphi 0, %s160
      %s163 = sphi 0, %s162
      %s177 = sphi 0, %s163
      %s181 = sphi 0, %s181
      %s183 = sphi 0, %s181
      %s184 = sphi 0, %s183
      %s198 = sphi 0, %s184
      %s202 = sphi 0, %s202
      %s204 = sphi 0, %s202
      %s205 = sphi 0, %s204
      %s219 = sphi 0, %s205
      %s223 = sphi 0, %s223
      %s225 = sphi 0, %s223
      %s226 = sphi 0, %s225
      %s240 = sphi 0, %s226
      %s244 = sphi 0, %s244
      %s246 = sphi 0, %s244
      %s247 = sphi 0, %s246
      %s261 = sphi 0, %s247
      %s267 = sphi 0, %s269
      %s270 = sphi 0, %s267
      %s271 = sphi 0, %s270
      %s287 = sphi 0, %s271
    $region4: #{tpu_custom_call.1} parent=1 // loop_header_branch
      %24 = sbr.rel (%p22) target = $region8
    $region5: #{tpu_custom_call.1} parent=1 // loop_body
      %s26 = ssub.s32 %s21, 1
      %s27 = ssub.s32 %s21, 2
      %s28 = sadd.s32 %s21, 1
      %s29 = ssub.s32 %s21, %s28
      %p30 = scmp.eq.s32.totalorder %s29, 0
      %s32 = sadd.s32 %s31, 1
      %s33 = scalar_select %p30, %s31, %s32
      %p36 = pneg %p30
      %p37 = scmp.eq.s32.totalorder %s21, 1
      %p38 = por %p36, %p37
      %p39 = scmp.ne.s32.totalorder %s31, %s34
      %p40 = scmp.eq.s32.totalorder %s21, 0
      %p41 = por %p39, %p40
      %p42 = scmp.ne.s32.totalorder %s31, %s34
      %p43 = scmp.eq.s32.totalorder %s26, 1
      %p44 = por %p42, %p43
      %p45 = scmp.ne.s32.totalorder %s34, %s35
      %p46 = scmp.eq.s32.totalorder %s26, 0
      %p47 = por %p45, %p46
      %p48 = scmp.ne.s32.totalorder %s34, %s35
      %p49 = scmp.eq.s32.totalorder %s27, 1
      %p50 = por %p48, %p49
      %p52 = scmp.ne.s32.totalorder %s35, %s51
      %p53 = scmp.eq.s32.totalorder %s27, 0
      %p54 = por %p52, %p53
      %s56 = sadd.s32 %s55, 1
      %p59 = scmp.eq.s32.totalorder %s21, 1
      %p60 = scmp.ne.s32.totalorder %s55, %s57
      %p61 = scmp.eq.s32.totalorder %s21, 0
      %p62 = por %p60, %p61
      %p63 = scmp.ne.s32.totalorder %s55, %s57
      %p64 = scmp.eq.s32.totalorder %s26, 1
      %p65 = por %p63, %p64
      %p66 = scmp.ne.s32.totalorder %s57, %s58
      %p67 = scmp.eq.s32.totalorder %s26, 0
      %p68 = por %p66, %p67
      %p69 = scmp.ne.s32.totalorder %s57, %s58
      %p70 = scmp.eq.s32.totalorder %s27, 1
      %p71 = por %p69, %p70
      %p73 = scmp.ne.s32.totalorder %s58, %s72
      %p74 = scmp.eq.s32.totalorder %s27, 0
      %p75 = por %p73, %p74
      %s77 = sadd.s32 %s76, 1
      %p80 = scmp.eq.s32.totalorder %s21, 1
      %p81 = scmp.ne.s32.totalorder %s76, %s78
      %p82 = scmp.eq.s32.totalorder %s21, 0
      %p83 = por %p81, %p82
      %p84 = scmp.ne.s32.totalorder %s76, %s78
      %p85 = scmp.eq.s32.totalorder %s26, 1
      %p86 = por %p84, %p85
      %p87 = scmp.ne.s32.totalorder %s78, %s79
      %p88 = scmp.eq.s32.totalorder %s26, 0
      %p89 = por %p87, %p88
      %p90 = scmp.ne.s32.totalorder %s78, %s79
      %p91 = scmp.eq.s32.totalorder %s27, 1
      %p92 = por %p90, %p91
      %p94 = scmp.ne.s32.totalorder %s79, %s93
      %p95 = scmp.eq.s32.totalorder %s27, 0
      %p96 = por %p94, %p95
      %s98 = sadd.s32 %s97, 1
      %p101 = scmp.eq.s32.totalorder %s21, 1
      %p102 = scmp.ne.s32.totalorder %s97, %s99
      %p103 = scmp.eq.s32.totalorder %s21, 0
      %p104 = por %p102, %p103
      %p105 = scmp.ne.s32.totalorder %s97, %s99
      %p106 = scmp.eq.s32.totalorder %s26, 1
      %p107 = por %p105, %p106
      %p108 = scmp.ne.s32.totalorder %s99, %s100
      %p109 = scmp.eq.s32.totalorder %s26, 0
      %p110 = por %p108, %p109
      %p111 = scmp.ne.s32.totalorder %s99, %s100
      %p112 = scmp.eq.s32.totalorder %s27, 1
      %p113 = por %p111, %p112
      %p115 = scmp.ne.s32.totalorder %s100, %s114
      %p116 = scmp.eq.s32.totalorder %s27, 0
      %p117 = por %p115, %p116
      %s119 = sadd.s32 %s118, 1
      %p122 = scmp.eq.s32.totalorder %s21, 1
      %p123 = scmp.ne.s32.totalorder %s118, %s120
      %p124 = scmp.eq.s32.totalorder %s21, 0
      %p125 = por %p123, %p124
      %p126 = scmp.ne.s32.totalorder %s118, %s120
      %p127 = scmp.eq.s32.totalorder %s26, 1
      %p128 = por %p126, %p127
      %p129 = scmp.ne.s32.totalorder %s120, %s121
      %p130 = scmp.eq.s32.totalorder %s26, 0
      %p131 = por %p129, %p130
      %p132 = scmp.ne.s32.totalorder %s120, %s121
      %p133 = scmp.eq.s32.totalorder %s27, 1
      %p134 = por %p132, %p133
      %p136 = scmp.ne.s32.totalorder %s121, %s135
      %p137 = scmp.eq.s32.totalorder %s27, 0
      %p138 = por %p136, %p137
      %s140 = sadd.s32 %s139, 1
      %p143 = scmp.eq.s32.totalorder %s21, 1
      %p144 = scmp.ne.s32.totalorder %s139, %s141
      %p145 = scmp.eq.s32.totalorder %s21, 0
      %p146 = por %p144, %p145
      %p147 = scmp.ne.s32.totalorder %s139, %s141
      %p148 = scmp.eq.s32.totalorder %s26, 1
      %p149 = por %p147, %p148
      %p150 = scmp.ne.s32.totalorder %s141, %s142
      %p151 = scmp.eq.s32.totalorder %s26, 0
      %p152 = por %p150, %p151
      %p153 = scmp.ne.s32.totalorder %s141, %s142
      %p154 = scmp.eq.s32.totalorder %s27, 1
      %p155 = por %p153, %p154
      %p157 = scmp.ne.s32.totalorder %s142, %s156
      %p158 = scmp.eq.s32.totalorder %s27, 0
      %p159 = por %p157, %p158
      %s161 = sadd.s32 %s160, 1
      %p164 = scmp.eq.s32.totalorder %s21, 1
      %p165 = scmp.ne.s32.totalorder %s160, %s162
      %p166 = scmp.eq.s32.totalorder %s21, 0
      %p167 = por %p165, %p166
      %p168 = scmp.ne.s32.totalorder %s160, %s162
      %p169 = scmp.eq.s32.totalorder %s26, 1
      %p170 = por %p168, %p169
      %p171 = scmp.ne.s32.totalorder %s162, %s163
      %p172 = scmp.eq.s32.totalorder %s26, 0
      %p173 = por %p171, %p172
      %p174 = scmp.ne.s32.totalorder %s162, %s163
      %p175 = scmp.eq.s32.totalorder %s27, 1
      %p176 = por %p174, %p175
      %p178 = scmp.ne.s32.totalorder %s163, %s177
      %p179 = scmp.eq.s32.totalorder %s27, 0
      %p180 = por %p178, %p179
      %s182 = sadd.s32 %s181, 1
      %p185 = scmp.eq.s32.totalorder %s21, 1
      %p186 = scmp.ne.s32.totalorder %s181, %s183
      %p187 = scmp.eq.s32.totalorder %s21, 0
      %p188 = por %p186, %p187
      %p189 = scmp.ne.s32.totalorder %s181, %s183
      %p190 = scmp.eq.s32.totalorder %s26, 1
      %p191 = por %p189, %p190
      %p192 = scmp.ne.s32.totalorder %s183, %s184
      %p193 = scmp.eq.s32.totalorder %s26, 0
      %p194 = por %p192, %p193
      %p195 = scmp.ne.s32.totalorder %s183, %s184
      %p196 = scmp.eq.s32.totalorder %s27, 1
      %p197 = por %p195, %p196
      %p199 = scmp.ne.s32.totalorder %s184, %s198
      %p200 = scmp.eq.s32.totalorder %s27, 0
      %p201 = por %p199, %p200
      %s203 = sadd.s32 %s202, 1
      %p206 = scmp.eq.s32.totalorder %s21, 1
      %p207 = scmp.ne.s32.totalorder %s202, %s204
      %p208 = scmp.eq.s32.totalorder %s21, 0
      %p209 = por %p207, %p208
      %p210 = scmp.ne.s32.totalorder %s202, %s204
      %p211 = scmp.eq.s32.totalorder %s26, 1
      %p212 = por %p210, %p211
      %p213 = scmp.ne.s32.totalorder %s204, %s205
      %p214 = scmp.eq.s32.totalorder %s26, 0
      %p215 = por %p213, %p214
      %p216 = scmp.ne.s32.totalorder %s204, %s205
      %p217 = scmp.eq.s32.totalorder %s27, 1
      %p218 = por %p216, %p217
      %p220 = scmp.ne.s32.totalorder %s205, %s219
      %p221 = scmp.eq.s32.totalorder %s27, 0
      %p222 = por %p220, %p221
      %s224 = sadd.s32 %s223, 1
      %p227 = scmp.eq.s32.totalorder %s21, 1
      %p228 = scmp.ne.s32.totalorder %s223, %s225
      %p229 = scmp.eq.s32.totalorder %s21, 0
      %p230 = por %p228, %p229
      %p231 = scmp.ne.s32.totalorder %s223, %s225
      %p232 = scmp.eq.s32.totalorder %s26, 1
      %p233 = por %p231, %p232
      %p234 = scmp.ne.s32.totalorder %s225, %s226
      %p235 = scmp.eq.s32.totalorder %s26, 0
      %p236 = por %p234, %p235
      %p237 = scmp.ne.s32.totalorder %s225, %s226
      %p238 = scmp.eq.s32.totalorder %s27, 1
      %p239 = por %p237, %p238
      %p241 = scmp.ne.s32.totalorder %s226, %s240
      %p242 = scmp.eq.s32.totalorder %s27, 0
      %p243 = por %p241, %p242
      %s245 = sadd.s32 %s244, 1
      %p248 = scmp.eq.s32.totalorder %s21, 1
      %p249 = scmp.ne.s32.totalorder %s244, %s246
      %p250 = scmp.eq.s32.totalorder %s21, 0
      %p251 = por %p249, %p250
      %p252 = scmp.ne.s32.totalorder %s244, %s246
      %p253 = scmp.eq.s32.totalorder %s26, 1
      %p254 = por %p252, %p253
      %p255 = scmp.ne.s32.totalorder %s246, %s247
      %p256 = scmp.eq.s32.totalorder %s26, 0
      %p257 = por %p255, %p256
      %p258 = scmp.ne.s32.totalorder %s246, %s247
      %p259 = scmp.eq.s32.totalorder %s27, 1
      %p260 = por %p258, %p259
      %p262 = scmp.ne.s32.totalorder %s247, %s261
      %p263 = scmp.eq.s32.totalorder %s27, 0
      %p264 = por %p262, %p263
      %s265 = ssub.s32 %s21, %s28
      %p266 = scmp.eq.s32.totalorder %s265, 0
      %s268 = sadd.s32 %s267, 1
      %s269 = scalar_select %p266, %s267, %s268
      %p272 = pneg %p266
      %p273 = scmp.eq.s32.totalorder %s21, 1
      %p274 = por %p272, %p273
      %p275 = scmp.ne.s32.totalorder %s267, %s270
      %p276 = scmp.eq.s32.totalorder %s21, 0
      %p277 = por %p275, %p276
      %p278 = scmp.ne.s32.totalorder %s267, %s270
      %p279 = scmp.eq.s32.totalorder %s26, 1
      %p280 = por %p278, %p279
      %p281 = scmp.ne.s32.totalorder %s270, %s271
      %p282 = scmp.eq.s32.totalorder %s26, 0
      %p283 = por %p281, %p282
      %p284 = scmp.ne.s32.totalorder %s270, %s271
      %p285 = scmp.eq.s32.totalorder %s27, 1
      %p286 = por %p284, %p285
      %p288 = scmp.ne.s32.totalorder %s271, %s287
      %p289 = scmp.eq.s32.totalorder %s27, 0
      %p290 = por %p288, %p289
      %p291 = scmp.le.s32.totalorder 1, %s21
      %p292 = scmp.lt.s32.totalorder %s21, 3
      %p293 = pnand %p291, %p292
      %p294 = pneg %p293
      // Predicated region
      $region9: #{tpu_custom_call.1} parent=5 // pred_check
        _
      $region10: #{tpu_custom_call.1} parent=5 // pred_check_branch
        %296 = sbr.rel (%p293) target = $region12
      $region11: #{tpu_custom_call.1} parent=5 // pred_region
        %s297 = ssub.s32 %s21, 1
        // Predicated region
        $region13: #{tpu_custom_call.1} parent=11 // pred_check
          %p298 = pneg %p68
        $region14: #{tpu_custom_call.1} parent=11 // pred_check_branch
          %300 = sbr.rel (%p298) target = $region16
        $region15: #{tpu_custom_call.1} parent=11 // pred_region
          _
        $region16: #{tpu_custom_call.1} parent=11 // pred_fallthru
          _
        // Predicated region
        $region17: #{tpu_custom_call.1} parent=11 // pred_check
          %p301 = pneg %p89
        $region18: #{tpu_custom_call.1} parent=11 // pred_check_branch
          %303 = sbr.rel (%p301) target = $region20
        $region19: #{tpu_custom_call.1} parent=11 // pred_region
          %305 = vsyncadd [#allocation5], 0
          %s306 = sshll.u32 %s2, 4
          %s307 = int_to_ptr.hbm [resolvable:$true] %s306
          %s308 = sshll.u32 [#allocation4], 4
          %s309 = int_to_ptr.vmem [resolvable:$true] %s308
          %314 = dma.hbm_to_vmem [thread:$0]  %s307, 18432, %s309, [#allocation5], 128, 128, 8
        $region20: #{tpu_custom_call.1} parent=11 // pred_fallthru
          _
        // Predicated region
        $region21: #{tpu_custom_call.1} parent=11 // pred_check
          %p315 = pneg %p110
        $region22: #{tpu_custom_call.1} parent=11 // pred_check_branch
          %317 = sbr.rel (%p315) target = $region24
        $region23: #{tpu_custom_call.1} parent=11 // pred_region
          _
        $region24: #{tpu_custom_call.1} parent=11 // pred_fallthru
          _
        // Predicated region
        $region25: #{tpu_custom_call.1} parent=11 // pred_check
          %p318 = pneg %p131
        $region26: #{tpu_custom_call.1} parent=11 // pred_check_branch
          %320 = sbr.rel (%p318) target = $region28
        $region27: #{tpu_custom_call.1} parent=11 // pred_region
          _
        $region28: #{tpu_custom_call.1} parent=11 // pred_fallthru
          _
        // Predicated region
        $region29: #{tpu_custom_call.1} parent=11 // pred_check
          %p321 = pneg %p152
        $region30: #{tpu_custom_call.1} parent=11 // pred_check_branch
          %323 = sbr.rel (%p321) target = $region32
        $region31: #{tpu_custom_call.1} parent=11 // pred_region
          _
        $region32: #{tpu_custom_call.1} parent=11 // pred_fallthru
          _
        // Predicated region
        $region33: #{tpu_custom_call.1} parent=11 // pred_check
          %p324 = pneg %p173
        $region34: #{tpu_custom_call.1} parent=11 // pred_check_branch
          %326 = sbr.rel (%p324) target = $region36
        $region35: #{tpu_custom_call.1} parent=11 // pred_region
          _
        $region36: #{tpu_custom_call.1} parent=11 // pred_fallthru
          _
        // Predicated region
        $region37: #{tpu_custom_call.1} parent=11 // pred_check
          %p327 = pneg %p194
        $region38: #{tpu_custom_call.1} parent=11 // pred_check_branch
          %329 = sbr.rel (%p327) target = $region40
        $region39: #{tpu_custom_call.1} parent=11 // pred_region
          _
        $region40: #{tpu_custom_call.1} parent=11 // pred_fallthru
          _
        // Predicated region
        $region41: #{tpu_custom_call.1} parent=11 // pred_check
          %p330 = pneg %p215
        $region42: #{tpu_custom_call.1} parent=11 // pred_check_branch
          %332 = sbr.rel (%p330) target = $region44
        $region43: #{tpu_custom_call.1} parent=11 // pred_region
          _
        $region44: #{tpu_custom_call.1} parent=11 // pred_fallthru
          _
        // Predicated region
        $region45: #{tpu_custom_call.1} parent=11 // pred_check
          %p333 = pneg %p236
        $region46: #{tpu_custom_call.1} parent=11 // pred_check_branch
          %335 = sbr.rel (%p333) target = $region48
        $region47: #{tpu_custom_call.1} parent=11 // pred_region
          _
        $region48: #{tpu_custom_call.1} parent=11 // pred_fallthru
          _
        // Predicated region
        $region49: #{tpu_custom_call.1} parent=11 // pred_check
          %p336 = pneg %p257
        $region50: #{tpu_custom_call.1} parent=11 // pred_check_branch
          %338 = sbr.rel (%p336) target = $region52
        $region51: #{tpu_custom_call.1} parent=11 // pred_region
          _
        $region52: #{tpu_custom_call.1} parent=11 // pred_fallthru
          _
      $region12: #{tpu_custom_call.1} parent=5 // pred_fallthru
        _
      %p339 = scmp.lt.s32.totalorder %s21, 2
      // Predicated region
      $region53: #{tpu_custom_call.1} parent=5 // pred_check
        %p340 = pneg %p339
      $region54: #{tpu_custom_call.1} parent=5 // pred_check_branch
        %342 = sbr.rel (%p340) target = $region56
      $region55: #{tpu_custom_call.1} parent=5 // pred_region
        // Predicated region
        $region57: #{tpu_custom_call.1} parent=55 // pred_check
          %p343 = pneg %p41
        $region58: #{tpu_custom_call.1} parent=55 // pred_check_branch
          %345 = sbr.rel (%p343) target = $region60
        $region59: #{tpu_custom_call.1} parent=55 // pred_region
          %p346 = scmp.lt.s32.totalorder %s21, 1
          %s347 = scalar_select %p346, %s21, 1
          %s348 = smul.addr %s347, 32
          %s349 = smul.addr %s348, 8
          %s350 = scalar_lea.vmem %s0, %s349
        $region60: #{tpu_custom_call.1} parent=55 // pred_fallthru
          _
      $region56: #{tpu_custom_call.1} parent=5 // pred_fallthru
        _
      %p351 = scmp.le.s32.totalorder 1, %s21
      %p352 = scmp.lt.s32.totalorder %s21, 3
      %p353 = pnand %p351, %p352
      %p354 = pneg %p353
      // Predicated region
      $region61: #{tpu_custom_call.1} parent=5 // pred_check
        _
      $region62: #{tpu_custom_call.1} parent=5 // pred_check_branch
        %356 = sbr.rel (%p353) target = $region64
      $region63: #{tpu_custom_call.1} parent=5 // pred_region
        %s357 = ssub.s32 %s21, 1
        // Predicated region
        $region65: #{tpu_custom_call.1} parent=63 // pred_check
          %p358 = pneg %p89
        $region66: #{tpu_custom_call.1} parent=63 // pred_check_branch
          %360 = sbr.rel (%p358) target = $region68
        $region67: #{tpu_custom_call.1} parent=63 // pred_region
          %362 = dma.done [#allocation5], 18432
        $region68: #{tpu_custom_call.1} parent=63 // pred_fallthru
          _
        %p363 = scmp.lt.s32.totalorder %s26, 1
        %s364 = scalar_select %p363, %s26, 1
        %s365 = smul.addr %s364, 32
        %s366 = smul.addr %s365, 8
        %s367 = scalar_lea.vmem %s0, %s366
        %p368 = pneg %p47
        %p369 = pneg %p44
        %p370 = pneg %p68
        %p371 = pneg %p65
        %p372 = pneg %p89
        %p373 = pneg %p86
        %p374 = pneg %p110
        %p375 = pneg %p107
        %p376 = pneg %p131
        %p377 = pneg %p128
        %p378 = pneg %p152
        %p379 = pneg %p149
        %p380 = pneg %p173
        %p381 = pneg %p170
        %p382 = pneg %p194
        %p383 = pneg %p191
        %p384 = pneg %p215
        %p385 = pneg %p212
        %p386 = pneg %p236
        %p387 = pneg %p233
        %p388 = pneg %p257
        %p389 = pneg %p254
        %p390 = pneg %p283
        %p391 = pneg %p280
        %s392 = sand.u32 %s270, 1
        %s393 = scalar_lea.sflag [#allocation6], %s392
        %s394 = sand.u32 %s270, 1
        %s395 = smul.addr %s394, 512
        %s396 = scalar_lea.vmem [#allocation7], %s395
        %p397 = scmp.lt.s32.totalorder %s26, 1
        %s398 = scalar_select %p397, %s26, 1
        %s399 = smul.addr %s398, 32
        %s400 = smul.addr %s399, 8
        %s401 = scalar_lea.vmem %s0, %s400
        %v402 = vld [vmem:[%s401] sm:$0xff]
        %v403 = vld [vmem:[%s401 + $0x8] sm:$0xff]
        %v404 = vld [vmem:[%s401 + $0x10] sm:$0xff]
        %v405 = vld [vmem:[%s401 + $0x18] sm:$0xff]
        %v406 = vld [vmem:[%s401 + $0x20] sm:$0xff]
        %v407 = vld [vmem:[%s401 + $0x28] sm:$0xff]
        %v408 = vld [vmem:[%s401 + $0x30] sm:$0xff]
        %v409 = vld [vmem:[%s401 + $0x38] sm:$0xff]
        %v410 = vld [vmem:[%s401 + $0x40] sm:$0xff]
        %v411 = vld [vmem:[%s401 + $0x48] sm:$0xff]
        %v412 = vld [vmem:[%s401 + $0x50] sm:$0xff]
        %v413 = vld [vmem:[%s401 + $0x58] sm:$0xff]
        %v414 = vld [vmem:[%s401 + $0x60] sm:$0xff]
        %v415 = vld [vmem:[%s401 + $0x68] sm:$0xff]
        %v416 = vld [vmem:[%s401 + $0x70] sm:$0xff]
        %v417 = vld [vmem:[%s401 + $0x78] sm:$0xff]
        %v418 = vld [vmem:[%s401 + $0x80] sm:$0xff]
        %v419 = vld [vmem:[%s401 + $0x88] sm:$0xff]
        %v420 = vld [vmem:[%s401 + $0x90] sm:$0xff]
        %v421 = vld [vmem:[%s401 + $0x98] sm:$0xff]
        %v422 = vld [vmem:[%s401 + $0xa0] sm:$0xff]
        %v423 = vld [vmem:[%s401 + $0xa8] sm:$0xff]
        %v424 = vld [vmem:[%s401 + $0xb0] sm:$0xff]
        %v425 = vld [vmem:[%s401 + $0xb8] sm:$0xff]
        %v426 = vld [vmem:[%s401 + $0xc0] sm:$0xff]
        %v427 = vld [vmem:[%s401 + $0xc8] sm:$0xff]
        %v428 = vld [vmem:[%s401 + $0xd0] sm:$0xff]
        %v429 = vld [vmem:[%s401 + $0xd8] sm:$0xff]
        %v430 = vld [vmem:[%s401 + $0xe0] sm:$0xff]
        %v431 = vld [vmem:[%s401 + $0xe8] sm:$0xff]
        %v432 = vld [vmem:[%s401 + $0xf0] sm:$0xff]
        %v433 = vld [vmem:[%s401 + $0xf8] sm:$0xff]
        %v434 = vld [vmem:[%s1] sm:$0xff]
        %v435 = vld [vmem:[%s1 + $0x8] sm:$0xf]
        %438 = vst [vmem:[#allocation1] ss:$2 sm:$0xff] %v434
        %s439 = scalar_lea.vmem [#allocation1], 16
        %440 = vst [vmem:[%s439] ss:$2 sm:$0xff] %v435
        %v441 = vld.sshfl [vmem:[#allocation1] sm:$0xff pattern:$0x75316420]
        %v442 = vld.sshfl [vmem:[#allocation1 + $0x8] sm:$0xff pattern:$0x75316420]
        %v443 = vld.sshfl [vmem:[#allocation1 + $0x10] sm:$0xff pattern:$0x75316420]
        %vm444 = vcmask 31744
        %v446 = vsel %vm444, %v402, 0
        %v449 = vsel %vm444, %v403, 0
        %v452 = vsel %vm444, %v404, 0
        %v455 = vsel %vm444, %v405, 0
        %v458 = vsel %vm444, %v406, 0
        %v461 = vsel %vm444, %v407, 0
        %v464 = vsel %vm444, %v408, 0
        %v467 = vsel %vm444, %v409, 0
        %v470 = vsel %vm444, %v410, 0
        %v473 = vsel %vm444, %v411, 0
        %v476 = vsel %vm444, %v412, 0
        %v479 = vsel %vm444, %v413, 0
        %v482 = vsel %vm444, %v414, 0
        %v485 = vsel %vm444, %v415, 0
        %v488 = vsel %vm444, %v416, 0
        %v491 = vsel %vm444, %v417, 0
        %v494 = vsel %vm444, %v418, 0
        %v497 = vsel %vm444, %v419, 0
        %v500 = vsel %vm444, %v420, 0
        %v503 = vsel %vm444, %v421, 0
        %v506 = vsel %vm444, %v422, 0
        %v509 = vsel %vm444, %v423, 0
        %v512 = vsel %vm444, %v424, 0
        %v515 = vsel %vm444, %v425, 0
        %v518 = vsel %vm444, %v426, 0
        %v521 = vsel %vm444, %v427, 0
        %v524 = vsel %vm444, %v428, 0
        %v527 = vsel %vm444, %v429, 0
        %v530 = vsel %vm444, %v430, 0
        %v533 = vsel %vm444, %v431, 0
        %v536 = vsel %vm444, %v432, 0
        %v539 = vsel %vm444, %v433, 0
        %vm541 = vcmask 1043456
        %v542 = vsel %vm541, %v441, 0
        %v544 = vsel %vm541, %v442, 0
        %v546 = vsel %vm541, %v443, 0
        %548 = vmatpush.msra.mxu0 0.0
        %549 = vmatpush.msra.mxu0 0.0
        %550 = vmatpush.msra.mxu0 0.0
        %551 = vmatpush.msra.mxu0 0.0
        %552 = vmatpush.msra.mxu0 0.0
        %553 = vmatpush.msra.mxu0 0.0
        %554 = vmatpush.msra.mxu0 0.0
        %555 = vmatpush.msra.mxu0 0.0
        %556 = vmatpush.msra.mxu0 0.0
        %557 = vmatpush.msra.mxu0 0.0
        %558 = vmatpush.msra.mxu0 0.0
        %559 = vmatpush.msra.mxu0 0.0
        %560 = vmatpush.msra.mxu0 0.0
        %561 = vmatpush.msra.mxu0 0.0
        %562 = vmatpush.msra.mxu0 0.0
        %563 = vmatpush.msra.mxu0 %v542
        %564 = vmatmul.f32.gmra.mxu0 %v446
        %v565 = vpop.f32.mrf.mxu0
        %v566 = vadd.f32 0.0, %v565
        %567 = vmatmul.f32.gmra.mxu0 %v449
        %v568 = vpop.f32.mrf.mxu0
        %v569 = vadd.f32 0.0, %v568
        %570 = vmatmul.f32.gmra.mxu0 %v452
        %v571 = vpop.f32.mrf.mxu0
        %v572 = vadd.f32 0.0, %v571
        %573 = vmatmul.f32.gmra.mxu0 %v455
        %v574 = vpop.f32.mrf.mxu0
        %v575 = vadd.f32 0.0, %v574
        %576 = vmatmul.f32.gmra.mxu0 %v458
        %v577 = vpop.f32.mrf.mxu0
        %v578 = vadd.f32 0.0, %v577
        %579 = vmatmul.f32.gmra.mxu0 %v461
        %v580 = vpop.f32.mrf.mxu0
        %v581 = vadd.f32 0.0, %v580
        %582 = vmatmul.f32.gmra.mxu0 %v464
        %v583 = vpop.f32.mrf.mxu0
        %v584 = vadd.f32 0.0, %v583
        %585 = vmatmul.f32.gmra.mxu0 %v467
        %v586 = vpop.f32.mrf.mxu0
        %v587 = vadd.f32 0.0, %v586
        %588 = vmatmul.f32.gmra.mxu0 %v470
        %v589 = vpop.f32.mrf.mxu0
        %v590 = vadd.f32 0.0, %v589
        %591 = vmatmul.f32.gmra.mxu0 %v473
        %v592 = vpop.f32.mrf.mxu0
        %v593 = vadd.f32 0.0, %v592
        %594 = vmatmul.f32.gmra.mxu0 %v476
        %v595 = vpop.f32.mrf.mxu0
        %v596 = vadd.f32 0.0, %v595
        %597 = vmatmul.f32.gmra.mxu0 %v479
        %v598 = vpop.f32.mrf.mxu0
        %v599 = vadd.f32 0.0, %v598
        %600 = vmatmul.f32.gmra.mxu0 %v482
        %v601 = vpop.f32.mrf.mxu0
        %v602 = vadd.f32 0.0, %v601
        %603 = vmatmul.f32.gmra.mxu0 %v485
        %v604 = vpop.f32.mrf.mxu0
        %v605 = vadd.f32 0.0, %v604
        %606 = vmatmul.f32.gmra.mxu0 %v488
        %v607 = vpop.f32.mrf.mxu0
        %v608 = vadd.f32 0.0, %v607
        %609 = vmatmul.f32.gmra.mxu0 %v491
        %v610 = vpop.f32.mrf.mxu0
        %v611 = vadd.f32 0.0, %v610
        %612 = vmatmul.f32.gmra.mxu0 %v494
        %v613 = vpop.f32.mrf.mxu0
        %v614 = vadd.f32 0.0, %v613
        %615 = vmatmul.f32.gmra.mxu0 %v497
        %v616 = vpop.f32.mrf.mxu0
        %v617 = vadd.f32 0.0, %v616
        %618 = vmatmul.f32.gmra.mxu0 %v500
        %v619 = vpop.f32.mrf.mxu0
        %v620 = vadd.f32 0.0, %v619
        %621 = vmatmul.f32.gmra.mxu0 %v503
        %v622 = vpop.f32.mrf.mxu0
        %v623 = vadd.f32 0.0, %v622
        %624 = vmatmul.f32.gmra.mxu0 %v506
        %v625 = vpop.f32.mrf.mxu0
        %v626 = vadd.f32 0.0, %v625
        %627 = vmatmul.f32.gmra.mxu0 %v509
        %v628 = vpop.f32.mrf.mxu0
        %v629 = vadd.f32 0.0, %v628
        %630 = vmatmul.f32.gmra.mxu0 %v512
        %v631 = vpop.f32.mrf.mxu0
        %v632 = vadd.f32 0.0, %v631
        %633 = vmatmul.f32.gmra.mxu0 %v515
        %v634 = vpop.f32.mrf.mxu0
        %v635 = vadd.f32 0.0, %v634
        %636 = vmatmul.f32.gmra.mxu0 %v518
        %v637 = vpop.f32.mrf.mxu0
        %v638 = vadd.f32 0.0, %v637
        %639 = vmatmul.f32.gmra.mxu0 %v521
        %v640 = vpop.f32.mrf.mxu0
        %v641 = vadd.f32 0.0, %v640
        %642 = vmatmul.f32.gmra.mxu0 %v524
        %v643 = vpop.f32.mrf.mxu0
        %v644 = vadd.f32 0.0, %v643
        %645 = vmatmul.f32.gmra.mxu0 %v527
        %v646 = vpop.f32.mrf.mxu0
        %v647 = vadd.f32 0.0, %v646
        %648 = vmatmul.f32.gmra.mxu0 %v530
        %v649 = vpop.f32.mrf.mxu0
        %v650 = vadd.f32 0.0, %v649
        %651 = vmatmul.f32.gmra.mxu0 %v533
        %v652 = vpop.f32.mrf.mxu0
        %v653 = vadd.f32 0.0, %v652
        %654 = vmatmul.f32.gmra.mxu0 %v536
        %v655 = vpop.f32.mrf.mxu0
        %v656 = vadd.f32 0.0, %v655
        %657 = vmatmul.f32.gmra.mxu0 %v539
        %v658 = vpop.f32.mrf.mxu0
        %v659 = vadd.f32 0.0, %v658
        %660 = vdwg.mxu0
        %661 = vmatpush.msra.mxu0 0.0
        %662 = vmatpush.msra.mxu0 0.0
        %663 = vmatpush.msra.mxu0 0.0
        %664 = vmatpush.msra.mxu0 0.0
        %665 = vmatpush.msra.mxu0 0.0
        %666 = vmatpush.msra.mxu0 0.0
        %667 = vmatpush.msra.mxu0 0.0
        %668 = vmatpush.msra.mxu0 0.0
        %669 = vmatpush.msra.mxu0 0.0
        %670 = vmatpush.msra.mxu0 0.0
        %671 = vmatpush.msra.mxu0 0.0
        %672 = vmatpush.msra.mxu0 0.0
        %673 = vmatpush.msra.mxu0 0.0
        %674 = vmatpush.msra.mxu0 0.0
        %675 = vmatpush.msra.mxu0 0.0
        %676 = vmatpush.msra.mxu0 %v544
        %677 = vmatmul.f32.gmra.mxu0 %v446
        %v678 = vpop.f32.mrf.mxu0
        %v679 = vadd.f32 0.0, %v678
        %680 = vmatmul.f32.gmra.mxu0 %v449
        %v681 = vpop.f32.mrf.mxu0
        %v682 = vadd.f32 0.0, %v681
        %683 = vmatmul.f32.gmra.mxu0 %v452
        %v684 = vpop.f32.mrf.mxu0
        %v685 = vadd.f32 0.0, %v684
        %686 = vmatmul.f32.gmra.mxu0 %v455
        %v687 = vpop.f32.mrf.mxu0
        %v688 = vadd.f32 0.0, %v687
        %689 = vmatmul.f32.gmra.mxu0 %v458
        %v690 = vpop.f32.mrf.mxu0
        %v691 = vadd.f32 0.0, %v690
        %692 = vmatmul.f32.gmra.mxu0 %v461
        %v693 = vpop.f32.mrf.mxu0
        %v694 = vadd.f32 0.0, %v693
        %695 = vmatmul.f32.gmra.mxu0 %v464
        %v696 = vpop.f32.mrf.mxu0
        %v697 = vadd.f32 0.0, %v696
        %698 = vmatmul.f32.gmra.mxu0 %v467
        %v699 = vpop.f32.mrf.mxu0
        %v700 = vadd.f32 0.0, %v699
        %701 = vmatmul.f32.gmra.mxu0 %v470
        %v702 = vpop.f32.mrf.mxu0
        %v703 = vadd.f32 0.0, %v702
        %704 = vmatmul.f32.gmra.mxu0 %v473
        %v705 = vpop.f32.mrf.mxu0
        %v706 = vadd.f32 0.0, %v705
        %707 = vmatmul.f32.gmra.mxu0 %v476
        %v708 = vpop.f32.mrf.mxu0
        %v709 = vadd.f32 0.0, %v708
        %710 = vmatmul.f32.gmra.mxu0 %v479
        %v711 = vpop.f32.mrf.mxu0
        %v712 = vadd.f32 0.0, %v711
        %713 = vmatmul.f32.gmra.mxu0 %v482
        %v714 = vpop.f32.mrf.mxu0
        %v715 = vadd.f32 0.0, %v714
        %716 = vmatmul.f32.gmra.mxu0 %v485
        %v717 = vpop.f32.mrf.mxu0
        %v718 = vadd.f32 0.0, %v717
        %719 = vmatmul.f32.gmra.mxu0 %v488
        %v720 = vpop.f32.mrf.mxu0
        %v721 = vadd.f32 0.0, %v720
        %722 = vmatmul.f32.gmra.mxu0 %v491
        %v723 = vpop.f32.mrf.mxu0
        %v724 = vadd.f32 0.0, %v723
        %725 = vmatmul.f32.gmra.mxu0 %v494
        %v726 = vpop.f32.mrf.mxu0
        %v727 = vadd.f32 0.0, %v726
        %728 = vmatmul.f32.gmra.mxu0 %v497
        %v729 = vpop.f32.mrf.mxu0
        %v730 = vadd.f32 0.0, %v729
        %731 = vmatmul.f32.gmra.mxu0 %v500
        %v732 = vpop.f32.mrf.mxu0
        %v733 = vadd.f32 0.0, %v732
        %734 = vmatmul.f32.gmra.mxu0 %v503
        %v735 = vpop.f32.mrf.mxu0
        %v736 = vadd.f32 0.0, %v735
        %737 = vmatmul.f32.gmra.mxu0 %v506
        %v738 = vpop.f32.mrf.mxu0
        %v739 = vadd.f32 0.0, %v738
        %740 = vmatmul.f32.gmra.mxu0 %v509
        %v741 = vpop.f32.mrf.mxu0
        %v742 = vadd.f32 0.0, %v741
        %743 = vmatmul.f32.gmra.mxu0 %v512
        %v744 = vpop.f32.mrf.mxu0
        %v745 = vadd.f32 0.0, %v744
        %746 = vmatmul.f32.gmra.mxu0 %v515
        %v747 = vpop.f32.mrf.mxu0
        %v748 = vadd.f32 0.0, %v747
        %749 = vmatmul.f32.gmra.mxu0 %v518
        %v750 = vpop.f32.mrf.mxu0
        %v751 = vadd.f32 0.0, %v750
        %752 = vmatmul.f32.gmra.mxu0 %v521
        %v753 = vpop.f32.mrf.mxu0
        %v754 = vadd.f32 0.0, %v753
        %755 = vmatmul.f32.gmra.mxu0 %v524
        %v756 = vpop.f32.mrf.mxu0
        %v757 = vadd.f32 0.0, %v756
        %758 = vmatmul.f32.gmra.mxu0 %v527
        %v759 = vpop.f32.mrf.mxu0
        %v760 = vadd.f32 0.0, %v759
        %761 = vmatmul.f32.gmra.mxu0 %v530
        %v762 = vpop.f32.mrf.mxu0
        %v763 = vadd.f32 0.0, %v762
        %764 = vmatmul.f32.gmra.mxu0 %v533
        %v765 = vpop.f32.mrf.mxu0
        %v766 = vadd.f32 0.0, %v765
        %767 = vmatmul.f32.gmra.mxu0 %v536
        %v768 = vpop.f32.mrf.mxu0
        %v769 = vadd.f32 0.0, %v768
        %770 = vmatmul.f32.gmra.mxu0 %v539
        %v771 = vpop.f32.mrf.mxu0
        %v772 = vadd.f32 0.0, %v771
        %773 = vdwg.mxu0
        %774 = vmatpush.msra.mxu0 0.0
        %775 = vmatpush.msra.mxu0 0.0
        %776 = vmatpush.msra.mxu0 0.0
        %777 = vmatpush.msra.mxu0 0.0
        %778 = vmatpush.msra.mxu0 0.0
        %779 = vmatpush.msra.mxu0 0.0
        %780 = vmatpush.msra.mxu0 0.0
        %781 = vmatpush.msra.mxu0 0.0
        %782 = vmatpush.msra.mxu0 0.0
        %783 = vmatpush.msra.mxu0 0.0
        %784 = vmatpush.msra.mxu0 0.0
        %785 = vmatpush.msra.mxu0 0.0
        %786 = vmatpush.msra.mxu0 0.0
        %787 = vmatpush.msra.mxu0 0.0
        %788 = vmatpush.msra.mxu0 0.0
        %789 = vmatpush.msra.mxu0 %v546
        %790 = vmatmul.f32.gmra.mxu0 %v446
        %v791 = vpop.f32.mrf.mxu0
        %v792 = vadd.f32 0.0, %v791
        %793 = vmatmul.f32.gmra.mxu0 %v449
        %v794 = vpop.f32.mrf.mxu0
        %v795 = vadd.f32 0.0, %v794
        %796 = vmatmul.f32.gmra.mxu0 %v452
        %v797 = vpop.f32.mrf.mxu0
        %v798 = vadd.f32 0.0, %v797
        %799 = vmatmul.f32.gmra.mxu0 %v455
        %v800 = vpop.f32.mrf.mxu0
        %v801 = vadd.f32 0.0, %v800
        %802 = vmatmul.f32.gmra.mxu0 %v458
        %v803 = vpop.f32.mrf.mxu0
        %v804 = vadd.f32 0.0, %v803
        %805 = vmatmul.f32.gmra.mxu0 %v461
        %v806 = vpop.f32.mrf.mxu0
        %v807 = vadd.f32 0.0, %v806
        %808 = vmatmul.f32.gmra.mxu0 %v464
        %v809 = vpop.f32.mrf.mxu0
        %v810 = vadd.f32 0.0, %v809
        %811 = vmatmul.f32.gmra.mxu0 %v467
        %v812 = vpop.f32.mrf.mxu0
        %v813 = vadd.f32 0.0, %v812
        %814 = vmatmul.f32.gmra.mxu0 %v470
        %v815 = vpop.f32.mrf.mxu0
        %v816 = vadd.f32 0.0, %v815
        %817 = vmatmul.f32.gmra.mxu0 %v473
        %v818 = vpop.f32.mrf.mxu0
        %v819 = vadd.f32 0.0, %v818
        %820 = vmatmul.f32.gmra.mxu0 %v476
        %v821 = vpop.f32.mrf.mxu0
        %v822 = vadd.f32 0.0, %v821
        %823 = vmatmul.f32.gmra.mxu0 %v479
        %v824 = vpop.f32.mrf.mxu0
        %v825 = vadd.f32 0.0, %v824
        %826 = vmatmul.f32.gmra.mxu0 %v482
        %v827 = vpop.f32.mrf.mxu0
        %v828 = vadd.f32 0.0, %v827
        %829 = vmatmul.f32.gmra.mxu0 %v485
        %v830 = vpop.f32.mrf.mxu0
        %v831 = vadd.f32 0.0, %v830
        %832 = vmatmul.f32.gmra.mxu0 %v488
        %v833 = vpop.f32.mrf.mxu0
        %v834 = vadd.f32 0.0, %v833
        %835 = vmatmul.f32.gmra.mxu0 %v491
        %v836 = vpop.f32.mrf.mxu0
        %v837 = vadd.f32 0.0, %v836
        %838 = vmatmul.f32.gmra.mxu0 %v494
        %v839 = vpop.f32.mrf.mxu0
        %v840 = vadd.f32 0.0, %v839
        %841 = vmatmul.f32.gmra.mxu0 %v497
        %v842 = vpop.f32.mrf.mxu0
        %v843 = vadd.f32 0.0, %v842
        %844 = vmatmul.f32.gmra.mxu0 %v500
        %v845 = vpop.f32.mrf.mxu0
        %v846 = vadd.f32 0.0, %v845
        %847 = vmatmul.f32.gmra.mxu0 %v503
        %v848 = vpop.f32.mrf.mxu0
        %v849 = vadd.f32 0.0, %v848
        %850 = vmatmul.f32.gmra.mxu0 %v506
        %v851 = vpop.f32.mrf.mxu0
        %v852 = vadd.f32 0.0, %v851
        %853 = vmatmul.f32.gmra.mxu0 %v509
        %v854 = vpop.f32.mrf.mxu0
        %v855 = vadd.f32 0.0, %v854
        %856 = vmatmul.f32.gmra.mxu0 %v512
        %v857 = vpop.f32.mrf.mxu0
        %v858 = vadd.f32 0.0, %v857
        %859 = vmatmul.f32.gmra.mxu0 %v515
        %v860 = vpop.f32.mrf.mxu0
        %v861 = vadd.f32 0.0, %v860
        %862 = vmatmul.f32.gmra.mxu0 %v518
        %v863 = vpop.f32.mrf.mxu0
        %v864 = vadd.f32 0.0, %v863
        %865 = vmatmul.f32.gmra.mxu0 %v521
        %v866 = vpop.f32.mrf.mxu0
        %v867 = vadd.f32 0.0, %v866
        %868 = vmatmul.f32.gmra.mxu0 %v524
        %v869 = vpop.f32.mrf.mxu0
        %v870 = vadd.f32 0.0, %v869
        %871 = vmatmul.f32.gmra.mxu0 %v527
        %v872 = vpop.f32.mrf.mxu0
        %v873 = vadd.f32 0.0, %v872
        %874 = vmatmul.f32.gmra.mxu0 %v530
        %v875 = vpop.f32.mrf.mxu0
        %v876 = vadd.f32 0.0, %v875
        %877 = vmatmul.f32.gmra.mxu0 %v533
        %v878 = vpop.f32.mrf.mxu0
        %v879 = vadd.f32 0.0, %v878
        %880 = vmatmul.f32.gmra.mxu0 %v536
        %v881 = vpop.f32.mrf.mxu0
        %v882 = vadd.f32 0.0, %v881
        %883 = vmatmul.f32.gmra.mxu0 %v539
        %v884 = vpop.f32.mrf.mxu0
        %v885 = vadd.f32 0.0, %v884
        %886 = vdwg.mxu0
        %v887 = vld [vmem:[%s6] sm:$0x1]
        %v889 = vperm.slane %v887, 0
        %v891 = vadd.f32 %v566, %v889
        %v892 = vadd.f32 %v569, %v889
        %v893 = vadd.f32 %v572, %v889
        %v894 = vadd.f32 %v575, %v889
        %v895 = vadd.f32 %v578, %v889
        %v896 = vadd.f32 %v581, %v889
        %v897 = vadd.f32 %v584, %v889
        %v898 = vadd.f32 %v587, %v889
        %v899 = vadd.f32 %v590, %v889
        %v900 = vadd.f32 %v593, %v889
        %v901 = vadd.f32 %v596, %v889
        %v902 = vadd.f32 %v599, %v889
        %v903 = vadd.f32 %v602, %v889
        %v904 = vadd.f32 %v605, %v889
        %v905 = vadd.f32 %v608, %v889
        %v906 = vadd.f32 %v611, %v889
        %v907 = vadd.f32 %v614, %v889
        %v908 = vadd.f32 %v617, %v889
        %v909 = vadd.f32 %v620, %v889
        %v910 = vadd.f32 %v623, %v889
        %v911 = vadd.f32 %v626, %v889
        %v912 = vadd.f32 %v629, %v889
        %v913 = vadd.f32 %v632, %v889
        %v914 = vadd.f32 %v635, %v889
        %v915 = vadd.f32 %v638, %v889
        %v916 = vadd.f32 %v641, %v889
        %v917 = vadd.f32 %v644, %v889
        %v918 = vadd.f32 %v647, %v889
        %v919 = vadd.f32 %v650, %v889
        %v920 = vadd.f32 %v653, %v889
        %v921 = vadd.f32 %v656, %v889
        %v922 = vadd.f32 %v659, %v889
        %v923 = vmax.f32 %v891, 0.0
        %v924 = vmax.f32 %v892, 0.0
        %v925 = vmax.f32 %v893, 0.0
        %v926 = vmax.f32 %v894, 0.0
        %v927 = vmax.f32 %v895, 0.0
        %v928 = vmax.f32 %v896, 0.0
        %v929 = vmax.f32 %v897, 0.0
        %v930 = vmax.f32 %v898, 0.0
        %v931 = vmax.f32 %v899, 0.0
        %v932 = vmax.f32 %v900, 0.0
        %v933 = vmax.f32 %v901, 0.0
        %v934 = vmax.f32 %v902, 0.0
        %v935 = vmax.f32 %v903, 0.0
        %v936 = vmax.f32 %v904, 0.0
        %v937 = vmax.f32 %v905, 0.0
        %v938 = vmax.f32 %v906, 0.0
        %v939 = vmax.f32 %v907, 0.0
        %v940 = vmax.f32 %v908, 0.0
        %v941 = vmax.f32 %v909, 0.0
        %v942 = vmax.f32 %v910, 0.0
        %v943 = vmax.f32 %v911, 0.0
        %v944 = vmax.f32 %v912, 0.0
        %v945 = vmax.f32 %v913, 0.0
        %v946 = vmax.f32 %v914, 0.0
        %v947 = vmax.f32 %v915, 0.0
        %v948 = vmax.f32 %v916, 0.0
        %v949 = vmax.f32 %v917, 0.0
        %v950 = vmax.f32 %v918, 0.0
        %v951 = vmax.f32 %v919, 0.0
        %v952 = vmax.f32 %v920, 0.0
        %v953 = vmax.f32 %v921, 0.0
        %v954 = vmax.f32 %v922, 0.0
        %955 = vst [vmem:[#allocation2] sm:$0xff] 0.0
        %956 = vst [vmem:[#allocation2 + $0x8] sm:$0xff] 0.0
        %957 = vst [vmem:[#allocation2 + $0x10] sm:$0xff] 0.0
        %958 = vst [vmem:[#allocation2 + $0x118] sm:$0xff] 0.0
        %959 = vst [vmem:[#allocation2 + $0x120] sm:$0xff] 0.0
        %960 = vst [vmem:[#allocation2 + $0x128] sm:$0xff] 0.0
        %961 = vst [vmem:[#allocation2 + $0x18] sm:$0xff] %v923
        %962 = vst [vmem:[#allocation2 + $0x20] sm:$0xff] %v924
        %963 = vst [vmem:[#allocation2 + $0x28] sm:$0xff] %v925
        %964 = vst [vmem:[#allocation2 + $0x30] sm:$0xff] %v926
        %965 = vst [vmem:[#allocation2 + $0x38] sm:$0xff] %v927
        %966 = vst [vmem:[#allocation2 + $0x40] sm:$0xff] %v928
        %967 = vst [vmem:[#allocation2 + $0x48] sm:$0xff] %v929
        %968 = vst [vmem:[#allocation2 + $0x50] sm:$0xff] %v930
        %969 = vst [vmem:[#allocation2 + $0x58] sm:$0xff] %v931
        %970 = vst [vmem:[#allocation2 + $0x60] sm:$0xff] %v932
        %971 = vst [vmem:[#allocation2 + $0x68] sm:$0xff] %v933
        %972 = vst [vmem:[#allocation2 + $0x70] sm:$0xff] %v934
        %973 = vst [vmem:[#allocation2 + $0x78] sm:$0xff] %v935
        %974 = vst [vmem:[#allocation2 + $0x80] sm:$0xff] %v936
        %975 = vst [vmem:[#allocation2 + $0x88] sm:$0xff] %v937
        %976 = vst [vmem:[#allocation2 + $0x90] sm:$0xff] %v938
        %977 = vst [vmem:[#allocation2 + $0x98] sm:$0xff] %v939
        %978 = vst [vmem:[#allocation2 + $0xa0] sm:$0xff] %v940
        %979 = vst [vmem:[#allocation2 + $0xa8] sm:$0xff] %v941
        %980 = vst [vmem:[#allocation2 + $0xb0] sm:$0xff] %v942
        %981 = vst [vmem:[#allocation2 + $0xb8] sm:$0xff] %v943
        %982 = vst [vmem:[#allocation2 + $0xc0] sm:$0xff] %v944
        %983 = vst [vmem:[#allocation2 + $0xc8] sm:$0xff] %v945
        %984 = vst [vmem:[#allocation2 + $0xd0] sm:$0xff] %v946
        %985 = vst [vmem:[#allocation2 + $0xd8] sm:$0xff] %v947
        %986 = vst [vmem:[#allocation2 + $0xe0] sm:$0xff] %v948
        %987 = vst [vmem:[#allocation2 + $0xe8] sm:$0xff] %v949
        %988 = vst [vmem:[#allocation2 + $0xf0] sm:$0xff] %v950
        %989 = vst [vmem:[#allocation2 + $0xf8] sm:$0xff] %v951
        %990 = vst [vmem:[#allocation2 + $0x100] sm:$0xff] %v952
        %991 = vst [vmem:[#allocation2 + $0x108] sm:$0xff] %v953
        %992 = vst [vmem:[#allocation2 + $0x110] sm:$0xff] %v954
        %v993 = vlaneseq
        %v994 = vshrl.u32 %v993, 7
        %v995 = vadd.s32 %v994, 8
        %v996 = vadd.s32 %v994, 16
        %v997 = vadd.s32 %v994, 24
        %v998 = vadd.s32 %v994, 32
        %v999 = vadd.s32 %v994, 40
        %v1000 = vadd.s32 %v994, 48
        %v1001 = vadd.s32 %v994, 56
        %v1002 = vadd.s32 %v994, 64
        %v1003 = vadd.s32 %v994, 72
        %v1004 = vadd.s32 %v994, 80
        %v1005 = vadd.s32 %v994, 88
        %v1006 = vadd.s32 %v994, 96
        %v1007 = vadd.s32 %v994, 104
        %v1008 = vadd.s32 %v994, 112
        %v1009 = vadd.s32 %v994, 120
        %v1010 = vadd.s32 %v994, 128
        %v1011 = vadd.s32 %v994, 136
        %v1012 = vadd.s32 %v994, 144
        %v1013 = vadd.s32 %v994, 152
        %v1014 = vadd.s32 %v994, 160
        %v1015 = vadd.s32 %v994, 168
        %v1016 = vadd.s32 %v994, 176
        %v1017 = vadd.s32 %v994, 184
        %v1018 = vadd.s32 %v994, 192
        %v1019 = vadd.s32 %v994, 200
        %v1020 = vadd.s32 %v994, 208
        %v1021 = vadd.s32 %v994, 216
        %v1022 = vadd.s32 %v994, 224
        %v1023 = vadd.s32 %v994, 232
        %v1024 = vadd.s32 %v994, 240
        %v1025 = vadd.s32 %v994, 248
        %vm1026 = vcmp.lt.s32.totalorder %v994, 0
        %v1027 = vsub.s32 0, %v994
        %v1028 = vsel %vm1026, %v1027, %v994
        %v1029 = vshrl.u32 %v1028, 4
        %v1030 = vand.u32 %v1028, 15
        %v1031 = vsub.s32 0, %v1030
        %v1032 = vsel %vm1026, %v1031, %v1030
        %vm1033 = vcmp.lt.s32.totalorder %v995, 0
        %v1034 = vsub.s32 0, %v995
        %v1035 = vsel %vm1033, %v1034, %v995
        %v1036 = vshrl.u32 %v1035, 4
        %v1037 = vand.u32 %v1035, 15
        %v1038 = vsub.s32 0, %v1037
        %v1039 = vsel %vm1033, %v1038, %v1037
        %vm1040 = vcmp.lt.s32.totalorder %v996, 0
        %v1041 = vsub.s32 0, %v996
        %v1042 = vsel %vm1040, %v1041, %v996
        %v1043 = vshrl.u32 %v1042, 4
        %v1044 = vand.u32 %v1042, 15
        %v1045 = vsub.s32 0, %v1044
        %v1046 = vsel %vm1040, %v1045, %v1044
        %vm1047 = vcmp.lt.s32.totalorder %v997, 0
        %v1048 = vsub.s32 0, %v997
        %v1049 = vsel %vm1047, %v1048, %v997
        %v1050 = vshrl.u32 %v1049, 4
        %v1051 = vand.u32 %v1049, 15
        %v1052 = vsub.s32 0, %v1051
        %v1053 = vsel %vm1047, %v1052, %v1051
        %vm1054 = vcmp.lt.s32.totalorder %v998, 0
        %v1055 = vsub.s32 0, %v998
        %v1056 = vsel %vm1054, %v1055, %v998
        %v1057 = vshrl.u32 %v1056, 4
        %v1058 = vand.u32 %v1056, 15
        %v1059 = vsub.s32 0, %v1058
        %v1060 = vsel %vm1054, %v1059, %v1058
        %vm1061 = vcmp.lt.s32.totalorder %v999, 0
        %v1062 = vsub.s32 0, %v999
        %v1063 = vsel %vm1061, %v1062, %v999
        %v1064 = vshrl.u32 %v1063, 4
        %v1065 = vand.u32 %v1063, 15
        %v1066 = vsub.s32 0, %v1065
        %v1067 = vsel %vm1061, %v1066, %v1065
        %vm1068 = vcmp.lt.s32.totalorder %v1000, 0
        %v1069 = vsub.s32 0, %v1000
        %v1070 = vsel %vm1068, %v1069, %v1000
        %v1071 = vshrl.u32 %v1070, 4
        %v1072 = vand.u32 %v1070, 15
        %v1073 = vsub.s32 0, %v1072
        %v1074 = vsel %vm1068, %v1073, %v1072
        %vm1075 = vcmp.lt.s32.totalorder %v1001, 0
        %v1076 = vsub.s32 0, %v1001
        %v1077 = vsel %vm1075, %v1076, %v1001
        %v1078 = vshrl.u32 %v1077, 4
        %v1079 = vand.u32 %v1077, 15
        %v1080 = vsub.s32 0, %v1079
        %v1081 = vsel %vm1075, %v1080, %v1079
        %vm1082 = vcmp.lt.s32.totalorder %v1002, 0
        %v1083 = vsub.s32 0, %v1002
        %v1084 = vsel %vm1082, %v1083, %v1002
        %v1085 = vshrl.u32 %v1084, 4
        %v1086 = vand.u32 %v1084, 15
        %v1087 = vsub.s32 0, %v1086
        %v1088 = vsel %vm1082, %v1087, %v1086
        %vm1089 = vcmp.lt.s32.totalorder %v1003, 0
        %v1090 = vsub.s32 0, %v1003
        %v1091 = vsel %vm1089, %v1090, %v1003
        %v1092 = vshrl.u32 %v1091, 4
        %v1093 = vand.u32 %v1091, 15
        %v1094 = vsub.s32 0, %v1093
        %v1095 = vsel %vm1089, %v1094, %v1093
        %vm1096 = vcmp.lt.s32.totalorder %v1004, 0
        %v1097 = vsub.s32 0, %v1004
        %v1098 = vsel %vm1096, %v1097, %v1004
        %v1099 = vshrl.u32 %v1098, 4
        %v1100 = vand.u32 %v1098, 15
        %v1101 = vsub.s32 0, %v1100
        %v1102 = vsel %vm1096, %v1101, %v1100
        %vm1103 = vcmp.lt.s32.totalorder %v1005, 0
        %v1104 = vsub.s32 0, %v1005
        %v1105 = vsel %vm1103, %v1104, %v1005
        %v1106 = vshrl.u32 %v1105, 4
        %v1107 = vand.u32 %v1105, 15
        %v1108 = vsub.s32 0, %v1107
        %v1109 = vsel %vm1103, %v1108, %v1107
        %vm1110 = vcmp.lt.s32.totalorder %v1006, 0
        %v1111 = vsub.s32 0, %v1006
        %v1112 = vsel %vm1110, %v1111, %v1006
        %v1113 = vshrl.u32 %v1112, 4
        %v1114 = vand.u32 %v1112, 15
        %v1115 = vsub.s32 0, %v1114
        %v1116 = vsel %vm1110, %v1115, %v1114
        %vm1117 = vcmp.lt.s32.totalorder %v1007, 0
        %v1118 = vsub.s32 0, %v1007
        %v1119 = vsel %vm1117, %v1118, %v1007
        %v1120 = vshrl.u32 %v1119, 4
        %v1121 = vand.u32 %v1119, 15
        %v1122 = vsub.s32 0, %v1121
        %v1123 = vsel %vm1117, %v1122, %v1121
        %vm1124 = vcmp.lt.s32.totalorder %v1008, 0
        %v1125 = vsub.s32 0, %v1008
        %v1126 = vsel %vm1124, %v1125, %v1008
        %v1127 = vshrl.u32 %v1126, 4
        %v1128 = vand.u32 %v1126, 15
        %v1129 = vsub.s32 0, %v1128
        %v1130 = vsel %vm1124, %v1129, %v1128
        %vm1131 = vcmp.lt.s32.totalorder %v1009, 0
        %v1132 = vsub.s32 0, %v1009
        %v1133 = vsel %vm1131, %v1132, %v1009
        %v1134 = vshrl.u32 %v1133, 4
        %v1135 = vand.u32 %v1133, 15
        %v1136 = vsub.s32 0, %v1135
        %v1137 = vsel %vm1131, %v1136, %v1135
        %vm1138 = vcmp.lt.s32.totalorder %v1010, 0
        %v1139 = vsub.s32 0, %v1010
        %v1140 = vsel %vm1138, %v1139, %v1010
        %v1141 = vshrl.u32 %v1140, 4
        %v1142 = vand.u32 %v1140, 15
        %v1143 = vsub.s32 0, %v1142
        %v1144 = vsel %vm1138, %v1143, %v1142
        %vm1145 = vcmp.lt.s32.totalorder %v1011, 0
        %v1146 = vsub.s32 0, %v1011
        %v1147 = vsel %vm1145, %v1146, %v1011
        %v1148 = vshrl.u32 %v1147, 4
        %v1149 = vand.u32 %v1147, 15
        %v1150 = vsub.s32 0, %v1149
        %v1151 = vsel %vm1145, %v1150, %v1149
        %vm1152 = vcmp.lt.s32.totalorder %v1012, 0
        %v1153 = vsub.s32 0, %v1012
        %v1154 = vsel %vm1152, %v1153, %v1012
        %v1155 = vshrl.u32 %v1154, 4
        %v1156 = vand.u32 %v1154, 15
        %v1157 = vsub.s32 0, %v1156
        %v1158 = vsel %vm1152, %v1157, %v1156
        %vm1159 = vcmp.lt.s32.totalorder %v1013, 0
        %v1160 = vsub.s32 0, %v1013
        %v1161 = vsel %vm1159, %v1160, %v1013
        %v1162 = vshrl.u32 %v1161, 4
        %v1163 = vand.u32 %v1161, 15
        %v1164 = vsub.s32 0, %v1163
        %v1165 = vsel %vm1159, %v1164, %v1163
        %vm1166 = vcmp.lt.s32.totalorder %v1014, 0
        %v1167 = vsub.s32 0, %v1014
        %v1168 = vsel %vm1166, %v1167, %v1014
        %v1169 = vshrl.u32 %v1168, 4
        %v1170 = vand.u32 %v1168, 15
        %v1171 = vsub.s32 0, %v1170
        %v1172 = vsel %vm1166, %v1171, %v1170
        %vm1173 = vcmp.lt.s32.totalorder %v1015, 0
        %v1174 = vsub.s32 0, %v1015
        %v1175 = vsel %vm1173, %v1174, %v1015
        %v1176 = vshrl.u32 %v1175, 4
        %v1177 = vand.u32 %v1175, 15
        %v1178 = vsub.s32 0, %v1177
        %v1179 = vsel %vm1173, %v1178, %v1177
        %vm1180 = vcmp.lt.s32.totalorder %v1016, 0
        %v1181 = vsub.s32 0, %v1016
        %v1182 = vsel %vm1180, %v1181, %v1016
        %v1183 = vshrl.u32 %v1182, 4
        %v1184 = vand.u32 %v1182, 15
        %v1185 = vsub.s32 0, %v1184
        %v1186 = vsel %vm1180, %v1185, %v1184
        %vm1187 = vcmp.lt.s32.totalorder %v1017, 0
        %v1188 = vsub.s32 0, %v1017
        %v1189 = vsel %vm1187, %v1188, %v1017
        %v1190 = vshrl.u32 %v1189, 4
        %v1191 = vand.u32 %v1189, 15
        %v1192 = vsub.s32 0, %v1191
        %v1193 = vsel %vm1187, %v1192, %v1191
        %vm1194 = vcmp.lt.s32.totalorder %v1018, 0
        %v1195 = vsub.s32 0, %v1018
        %v1196 = vsel %vm1194, %v1195, %v1018
        %v1197 = vshrl.u32 %v1196, 4
        %v1198 = vand.u32 %v1196, 15
        %v1199 = vsub.s32 0, %v1198
        %v1200 = vsel %vm1194, %v1199, %v1198
        %vm1201 = vcmp.lt.s32.totalorder %v1019, 0
        %v1202 = vsub.s32 0, %v1019
        %v1203 = vsel %vm1201, %v1202, %v1019
        %v1204 = vshrl.u32 %v1203, 4
        %v1205 = vand.u32 %v1203, 15
        %v1206 = vsub.s32 0, %v1205
        %v1207 = vsel %vm1201, %v1206, %v1205
        %vm1208 = vcmp.lt.s32.totalorder %v1020, 0
        %v1209 = vsub.s32 0, %v1020
        %v1210 = vsel %vm1208, %v1209, %v1020
        %v1211 = vshrl.u32 %v1210, 4
        %v1212 = vand.u32 %v1210, 15
        %v1213 = vsub.s32 0, %v1212
        %v1214 = vsel %vm1208, %v1213, %v1212
        %vm1215 = vcmp.lt.s32.totalorder %v1021, 0
        %v1216 = vsub.s32 0, %v1021
        %v1217 = vsel %vm1215, %v1216, %v1021
        %v1218 = vshrl.u32 %v1217, 4
        %v1219 = vand.u32 %v1217, 15
        %v1220 = vsub.s32 0, %v1219
        %v1221 = vsel %vm1215, %v1220, %v1219
        %vm1222 = vcmp.lt.s32.totalorder %v1022, 0
        %v1223 = vsub.s32 0, %v1022
        %v1224 = vsel %vm1222, %v1223, %v1022
        %v1225 = vshrl.u32 %v1224, 4
        %v1226 = vand.u32 %v1224, 15
        %v1227 = vsub.s32 0, %v1226
        %v1228 = vsel %vm1222, %v1227, %v1226
        %vm1229 = vcmp.lt.s32.totalorder %v1023, 0
        %v1230 = vsub.s32 0, %v1023
        %v1231 = vsel %vm1229, %v1230, %v1023
        %v1232 = vshrl.u32 %v1231, 4
        %v1233 = vand.u32 %v1231, 15
        %v1234 = vsub.s32 0, %v1233
        %v1235 = vsel %vm1229, %v1234, %v1233
        %vm1236 = vcmp.lt.s32.totalorder %v1024, 0
        %v1237 = vsub.s32 0, %v1024
        %v1238 = vsel %vm1236, %v1237, %v1024
        %v1239 = vshrl.u32 %v1238, 4
        %v1240 = vand.u32 %v1238, 15
        %v1241 = vsub.s32 0, %v1240
        %v1242 = vsel %vm1236, %v1241, %v1240
        %vm1243 = vcmp.lt.s32.totalorder %v1025, 0
        %v1244 = vsub.s32 0, %v1025
        %v1245 = vsel %vm1243, %v1244, %v1025
        %v1246 = vshrl.u32 %v1245, 4
        %v1247 = vand.u32 %v1245, 15
        %v1248 = vsub.s32 0, %v1247
        %v1249 = vsel %vm1243, %v1248, %v1247
        %vm1250 = vcmp.ne.s32.totalorder %v1032, 0
        %vm1251 = vcmp.ne.s32.totalorder %v1039, 0
        %vm1252 = vcmp.ne.s32.totalorder %v1046, 0
        %vm1253 = vcmp.ne.s32.totalorder %v1053, 0
        %vm1254 = vcmp.ne.s32.totalorder %v1060, 0
        %vm1255 = vcmp.ne.s32.totalorder %v1067, 0
        %vm1256 = vcmp.ne.s32.totalorder %v1074, 0
        %vm1257 = vcmp.ne.s32.totalorder %v1081, 0
        %vm1258 = vcmp.ne.s32.totalorder %v1088, 0
        %vm1259 = vcmp.ne.s32.totalorder %v1095, 0
        %vm1260 = vcmp.ne.s32.totalorder %v1102, 0
        %vm1261 = vcmp.ne.s32.totalorder %v1109, 0
        %vm1262 = vcmp.ne.s32.totalorder %v1116, 0
        %vm1263 = vcmp.ne.s32.totalorder %v1123, 0
        %vm1264 = vcmp.ne.s32.totalorder %v1130, 0
        %vm1265 = vcmp.ne.s32.totalorder %v1137, 0
        %vm1266 = vcmp.ne.s32.totalorder %v1144, 0
        %vm1267 = vcmp.ne.s32.totalorder %v1151, 0
        %vm1268 = vcmp.ne.s32.totalorder %v1158, 0
        %vm1269 = vcmp.ne.s32.totalorder %v1165, 0
        %vm1270 = vcmp.ne.s32.totalorder %v1172, 0
        %vm1271 = vcmp.ne.s32.totalorder %v1179, 0
        %vm1272 = vcmp.ne.s32.totalorder %v1186, 0
        %vm1273 = vcmp.ne.s32.totalorder %v1193, 0
        %vm1274 = vcmp.ne.s32.totalorder %v1200, 0
        %vm1275 = vcmp.ne.s32.totalorder %v1207, 0
        %vm1276 = vcmp.ne.s32.totalorder %v1214, 0
        %vm1277 = vcmp.ne.s32.totalorder %v1221, 0
        %vm1278 = vcmp.ne.s32.totalorder %v1228, 0
        %vm1279 = vcmp.ne.s32.totalorder %v1235, 0
        %vm1280 = vcmp.ne.s32.totalorder %v1242, 0
        %vm1281 = vcmp.ne.s32.totalorder %v1249, 0
        %vm1282 = vcmp.lt.s32.totalorder %v1032, 0
        %vm1283 = vcmp.lt.s32.totalorder %v1039, 0
        %vm1284 = vcmp.lt.s32.totalorder %v1046, 0
        %vm1285 = vcmp.lt.s32.totalorder %v1053, 0
        %vm1286 = vcmp.lt.s32.totalorder %v1060, 0
        %vm1287 = vcmp.lt.s32.totalorder %v1067, 0
        %vm1288 = vcmp.lt.s32.totalorder %v1074, 0
        %vm1289 = vcmp.lt.s32.totalorder %v1081, 0
        %vm1290 = vcmp.lt.s32.totalorder %v1088, 0
        %vm1291 = vcmp.lt.s32.totalorder %v1095, 0
        %vm1292 = vcmp.lt.s32.totalorder %v1102, 0
        %vm1293 = vcmp.lt.s32.totalorder %v1109, 0
        %vm1294 = vcmp.lt.s32.totalorder %v1116, 0
        %vm1295 = vcmp.lt.s32.totalorder %v1123, 0
        %vm1296 = vcmp.lt.s32.totalorder %v1130, 0
        %vm1297 = vcmp.lt.s32.totalorder %v1137, 0
        %vm1298 = vcmp.lt.s32.totalorder %v1144, 0
        %vm1299 = vcmp.lt.s32.totalorder %v1151, 0
        %vm1300 = vcmp.lt.s32.totalorder %v1158, 0
        %vm1301 = vcmp.lt.s32.totalorder %v1165, 0
        %vm1302 = vcmp.lt.s32.totalorder %v1172, 0
        %vm1303 = vcmp.lt.s32.totalorder %v1179, 0
        %vm1304 = vcmp.lt.s32.totalorder %v1186, 0
        %vm1305 = vcmp.lt.s32.totalorder %v1193, 0
        %vm1306 = vcmp.lt.s32.totalorder %v1200, 0
        %vm1307 = vcmp.lt.s32.totalorder %v1207, 0
        %vm1308 = vcmp.lt.s32.totalorder %v1214, 0
        %vm1309 = vcmp.lt.s32.totalorder %v1221, 0
        %vm1310 = vcmp.lt.s32.totalorder %v1228, 0
        %vm1311 = vcmp.lt.s32.totalorder %v1235, 0
        %vm1312 = vcmp.lt.s32.totalorder %v1242, 0
        %vm1313 = vcmp.lt.s32.totalorder %v1249, 0
        %vm1314 = vmand %vm1282, %vm1250
        %vm1315 = vmand %vm1283, %vm1251
        %vm1316 = vmand %vm1284, %vm1252
        %vm1317 = vmand %vm1285, %vm1253
        %vm1318 = vmand %vm1286, %vm1254
        %vm1319 = vmand %vm1287, %vm1255
        %vm1320 = vmand %vm1288, %vm1256
        %vm1321 = vmand %vm1289, %vm1257
        %vm1322 = vmand %vm1290, %vm1258
        %vm1323 = vmand %vm1291, %vm1259
        %vm1324 = vmand %vm1292, %vm1260
        %vm1325 = vmand %vm1293, %vm1261
        %vm1326 = vmand %vm1294, %vm1262
        %vm1327 = vmand %vm1295, %vm1263
        %vm1328 = vmand %vm1296, %vm1264
        %vm1329 = vmand %vm1297, %vm1265
        %vm1330 = vmand %vm1298, %vm1266
        %vm1331 = vmand %vm1299, %vm1267
        %vm1332 = vmand %vm1300, %vm1268
        %vm1333 = vmand %vm1301, %vm1269
        %vm1334 = vmand %vm1302, %vm1270
        %vm1335 = vmand %vm1303, %vm1271
        %vm1336 = vmand %vm1304, %vm1272
        %vm1337 = vmand %vm1305, %vm1273
        %vm1338 = vmand %vm1306, %vm1274
        %vm1339 = vmand %vm1307, %vm1275
        %vm1340 = vmand %vm1308, %vm1276
        %vm1341 = vmand %vm1309, %vm1277
        %vm1342 = vmand %vm1310, %vm1278
        %vm1343 = vmand %vm1311, %vm1279
        %vm1344 = vmand %vm1312, %vm1280
        %vm1345 = vmand %vm1313, %vm1281
        %v1346 = vadd.s32 %v1032, 16
        %v1347 = vadd.s32 %v1039, 16
        %v1348 = vadd.s32 %v1046, 16
        %v1349 = vadd.s32 %v1053, 16
        %v1350 = vadd.s32 %v1060, 16
        %v1351 = vadd.s32 %v1067, 16
        %v1352 = vadd.s32 %v1074, 16
        %v1353 = vadd.s32 %v1081, 16
        %v1354 = vadd.s32 %v1088, 16
        %v1355 = vadd.s32 %v1095, 16
        %v1356 = vadd.s32 %v1102, 16
        %v1357 = vadd.s32 %v1109, 16
        %v1358 = vadd.s32 %v1116, 16
        %v1359 = vadd.s32 %v1123, 16
        %v1360 = vadd.s32 %v1130, 16
        %v1361 = vadd.s32 %v1137, 16
        %v1362 = vadd.s32 %v1144, 16
        %v1363 = vadd.s32 %v1151, 16
        %v1364 = vadd.s32 %v1158, 16
        %v1365 = vadd.s32 %v1165, 16
        %v1366 = vadd.s32 %v1172, 16
        %v1367 = vadd.s32 %v1179, 16
        %v1368 = vadd.s32 %v1186, 16
        %v1369 = vadd.s32 %v1193, 16
        %v1370 = vadd.s32 %v1200, 16
        %v1371 = vadd.s32 %v1207, 16
        %v1372 = vadd.s32 %v1214, 16
        %v1373 = vadd.s32 %v1221, 16
        %v1374 = vadd.s32 %v1228, 16
        %v1375 = vadd.s32 %v1235, 16
        %v1376 = vadd.s32 %v1242, 16
        %v1377 = vadd.s32 %v1249, 16
        %v1378 = vsel %vm1314, %v1346, %v1032
        %v1379 = vsel %vm1315, %v1347, %v1039
        %v1380 = vsel %vm1316, %v1348, %v1046
        %v1381 = vsel %vm1317, %v1349, %v1053
        %v1382 = vsel %vm1318, %v1350, %v1060
        %v1383 = vsel %vm1319, %v1351, %v1067
        %v1384 = vsel %vm1320, %v1352, %v1074
        %v1385 = vsel %vm1321, %v1353, %v1081
        %v1386 = vsel %vm1322, %v1354, %v1088
        %v1387 = vsel %vm1323, %v1355, %v1095
        %v1388 = vsel %vm1324, %v1356, %v1102
        %v1389 = vsel %vm1325, %v1357, %v1109
        %v1390 = vsel %vm1326, %v1358, %v1116
        %v1391 = vsel %vm1327, %v1359, %v1123
        %v1392 = vsel %vm1328, %v1360, %v1130
        %v1393 = vsel %vm1329, %v1361, %v1137
        %v1394 = vsel %vm1330, %v1362, %v1144
        %v1395 = vsel %vm1331, %v1363, %v1151
        %v1396 = vsel %vm1332, %v1364, %v1158
        %v1397 = vsel %vm1333, %v1365, %v1165
        %v1398 = vsel %vm1334, %v1366, %v1172
        %v1399 = vsel %vm1335, %v1367, %v1179
        %v1400 = vsel %vm1336, %v1368, %v1186
        %v1401 = vsel %vm1337, %v1369, %v1193
        %v1402 = vsel %vm1338, %v1370, %v1200
        %v1403 = vsel %vm1339, %v1371, %v1207
        %v1404 = vsel %vm1340, %v1372, %v1214
        %v1405 = vsel %vm1341, %v1373, %v1221
        %v1406 = vsel %vm1342, %v1374, %v1228
        %v1407 = vsel %vm1343, %v1375, %v1235
        %v1408 = vsel %vm1344, %v1376, %v1242
        %v1409 = vsel %vm1345, %v1377, %v1249
        %vm1410 = vcmp.ge.s32.totalorder %v1378, 1
        %vm1411 = vcmp.ge.s32.totalorder %v1379, 1
        %vm1412 = vcmp.ge.s32.totalorder %v1380, 1
        %vm1413 = vcmp.ge.s32.totalorder %v1381, 1
        %vm1414 = vcmp.ge.s32.totalorder %v1382, 1
        %vm1415 = vcmp.ge.s32.totalorder %v1383, 1
        %vm1416 = vcmp.ge.s32.totalorder %v1384, 1
        %vm1417 = vcmp.ge.s32.totalorder %v1385, 1
        %vm1418 = vcmp.ge.s32.totalorder %v1386, 1
        %vm1419 = vcmp.ge.s32.totalorder %v1387, 1
        %vm1420 = vcmp.ge.s32.totalorder %v1388, 1
        %vm1421 = vcmp.ge.s32.totalorder %v1389, 1
        %vm1422 = vcmp.ge.s32.totalorder %v1390, 1
        %vm1423 = vcmp.ge.s32.totalorder %v1391, 1
        %vm1424 = vcmp.ge.s32.totalorder %v1392, 1
        %vm1425 = vcmp.ge.s32.totalorder %v1393, 1
        %vm1426 = vcmp.ge.s32.totalorder %v1394, 1
        %vm1427 = vcmp.ge.s32.totalorder %v1395, 1
        %vm1428 = vcmp.ge.s32.totalorder %v1396, 1
        %vm1429 = vcmp.ge.s32.totalorder %v1397, 1
        %vm1430 = vcmp.ge.s32.totalorder %v1398, 1
        %vm1431 = vcmp.ge.s32.totalorder %v1399, 1
        %vm1432 = vcmp.ge.s32.totalorder %v1400, 1
        %vm1433 = vcmp.ge.s32.totalorder %v1401, 1
        %vm1434 = vcmp.ge.s32.totalorder %v1402, 1
        %vm1435 = vcmp.ge.s32.totalorder %v1403, 1
        %vm1436 = vcmp.ge.s32.totalorder %v1404, 1
        %vm1437 = vcmp.ge.s32.totalorder %v1405, 1
        %vm1438 = vcmp.ge.s32.totalorder %v1406, 1
        %vm1439 = vcmp.ge.s32.totalorder %v1407, 1
        %vm1440 = vcmp.ge.s32.totalorder %v1408, 1
        %vm1441 = vcmp.ge.s32.totalorder %v1409, 1
        %vm1442 = vcmp.le.s32.totalorder %v1378, 14
        %vm1443 = vcmp.le.s32.totalorder %v1379, 14
        %vm1444 = vcmp.le.s32.totalorder %v1380, 14
        %vm1445 = vcmp.le.s32.totalorder %v1381, 14
        %vm1446 = vcmp.le.s32.totalorder %v1382, 14
        %vm1447 = vcmp.le.s32.totalorder %v1383, 14
        %vm1448 = vcmp.le.s32.totalorder %v1384, 14
        %vm1449 = vcmp.le.s32.totalorder %v1385, 14
        %vm1450 = vcmp.le.s32.totalorder %v1386, 14
        %vm1451 = vcmp.le.s32.totalorder %v1387, 14
        %vm1452 = vcmp.le.s32.totalorder %v1388, 14
        %vm1453 = vcmp.le.s32.totalorder %v1389, 14
        %vm1454 = vcmp.le.s32.totalorder %v1390, 14
        %vm1455 = vcmp.le.s32.totalorder %v1391, 14
        %vm1456 = vcmp.le.s32.totalorder %v1392, 14
        %vm1457 = vcmp.le.s32.totalorder %v1393, 14
        %vm1458 = vcmp.le.s32.totalorder %v1394, 14
        %vm1459 = vcmp.le.s32.totalorder %v1395, 14
        %vm1460 = vcmp.le.s32.totalorder %v1396, 14
        %vm1461 = vcmp.le.s32.totalorder %v1397, 14
        %vm1462 = vcmp.le.s32.totalorder %v1398, 14
        %vm1463 = vcmp.le.s32.totalorder %v1399, 14
        %vm1464 = vcmp.le.s32.totalorder %v1400, 14
        %vm1465 = vcmp.le.s32.totalorder %v1401, 14
        %vm1466 = vcmp.le.s32.totalorder %v1402, 14
        %vm1467 = vcmp.le.s32.totalorder %v1403, 14
        %vm1468 = vcmp.le.s32.totalorder %v1404, 14
        %vm1469 = vcmp.le.s32.totalorder %v1405, 14
        %vm1470 = vcmp.le.s32.totalorder %v1406, 14
        %vm1471 = vcmp.le.s32.totalorder %v1407, 14
        %vm1472 = vcmp.le.s32.totalorder %v1408, 14
        %vm1473 = vcmp.le.s32.totalorder %v1409, 14
        %v1474 = vld [vmem:[#allocation2 + $0x7] sm:$0xff]
        %v1475 = vld [vmem:[#allocation2 + $0xf] sm:$0xff]
        %v1476 = vld [vmem:[#allocation2 + $0x17] sm:$0xff]
        %v1477 = vld [vmem:[#allocation2 + $0x1f] sm:$0xff]
        %v1478 = vld [vmem:[#allocation2 + $0x27] sm:$0xff]
        %v1479 = vld [vmem:[#allocation2 + $0x2f] sm:$0xff]
        %v1480 = vld [vmem:[#allocation2 + $0x37] sm:$0xff]
        %v1481 = vld [vmem:[#allocation2 + $0x3f] sm:$0xff]
        %v1482 = vld [vmem:[#allocation2 + $0x47] sm:$0xff]
        %v1483 = vld [vmem:[#allocation2 + $0x4f] sm:$0xff]
        %v1484 = vld [vmem:[#allocation2 + $0x57] sm:$0xff]
        %v1485 = vld [vmem:[#allocation2 + $0x5f] sm:$0xff]
        %v1486 = vld [vmem:[#allocation2 + $0x67] sm:$0xff]
        %v1487 = vld [vmem:[#allocation2 + $0x6f] sm:$0xff]
        %v1488 = vld [vmem:[#allocation2 + $0x77] sm:$0xff]
        %v1489 = vld [vmem:[#allocation2 + $0x7f] sm:$0xff]
        %v1490 = vld [vmem:[#allocation2 + $0x87] sm:$0xff]
        %v1491 = vld [vmem:[#allocation2 + $0x8f] sm:$0xff]
        %v1492 = vld [vmem:[#allocation2 + $0x97] sm:$0xff]
        %v1493 = vld [vmem:[#allocation2 + $0x9f] sm:$0xff]
        %v1494 = vld [vmem:[#allocation2 + $0xa7] sm:$0xff]
        %v1495 = vld [vmem:[#allocation2 + $0xaf] sm:$0xff]
        %v1496 = vld [vmem:[#allocation2 + $0xb7] sm:$0xff]
        %v1497 = vld [vmem:[#allocation2 + $0xbf] sm:$0xff]
        %v1498 = vld [vmem:[#allocation2 + $0xc7] sm:$0xff]
        %v1499 = vld [vmem:[#allocation2 + $0xcf] sm:$0xff]
        %v1500 = vld [vmem:[#allocation2 + $0xd7] sm:$0xff]
        %v1501 = vld [vmem:[#allocation2 + $0xdf] sm:$0xff]
        %v1502 = vld [vmem:[#allocation2 + $0xe7] sm:$0xff]
        %v1503 = vld [vmem:[#allocation2 + $0xef] sm:$0xff]
        %v1504 = vld [vmem:[#allocation2 + $0xf7] sm:$0xff]
        %v1505 = vld [vmem:[#allocation2 + $0xff] sm:$0xff]
        %v1506 = vsel %vm1410, %v1474, 0.0
        %v1507 = vsel %vm1411, %v1475, 0.0
        %v1508 = vsel %vm1412, %v1476, 0.0
        %v1509 = vsel %vm1413, %v1477, 0.0
        %v1510 = vsel %vm1414, %v1478, 0.0
        %v1511 = vsel %vm1415, %v1479, 0.0
        %v1512 = vsel %vm1416, %v1480, 0.0
        %v1513 = vsel %vm1417, %v1481, 0.0
        %v1514 = vsel %vm1418, %v1482, 0.0
        %v1515 = vsel %vm1419, %v1483, 0.0
        %v1516 = vsel %vm1420, %v1484, 0.0
        %v1517 = vsel %vm1421, %v1485, 0.0
        %v1518 = vsel %vm1422, %v1486, 0.0
        %v1519 = vsel %vm1423, %v1487, 0.0
        %v1520 = vsel %vm1424, %v1488, 0.0
        %v1521 = vsel %vm1425, %v1489, 0.0
        %v1522 = vsel %vm1426, %v1490, 0.0
        %v1523 = vsel %vm1427, %v1491, 0.0
        %v1524 = vsel %vm1428, %v1492, 0.0
        %v1525 = vsel %vm1429, %v1493, 0.0
        %v1526 = vsel %vm1430, %v1494, 0.0
        %v1527 = vsel %vm1431, %v1495, 0.0
        %v1528 = vsel %vm1432, %v1496, 0.0
        %v1529 = vsel %vm1433, %v1497, 0.0
        %v1530 = vsel %vm1434, %v1498, 0.0
        %v1531 = vsel %vm1435, %v1499, 0.0
        %v1532 = vsel %vm1436, %v1500, 0.0
        %v1533 = vsel %vm1437, %v1501, 0.0
        %v1534 = vsel %vm1438, %v1502, 0.0
        %v1535 = vsel %vm1439, %v1503, 0.0
        %v1536 = vsel %vm1440, %v1504, 0.0
        %v1537 = vsel %vm1441, %v1505, 0.0
        %1538 = vst [vmem:[#allocation3] sm:$0xff] %v1506
        %1539 = vst [vmem:[#allocation3 + $0x48] sm:$0xff] %v1507
        %1540 = vst [vmem:[#allocation3 + $0x90] sm:$0xff] %v1508
        %1541 = vst [vmem:[#allocation3 + $0xd8] sm:$0xff] %v1509
        %1542 = vst [vmem:[#allocation3 + $0x120] sm:$0xff] %v1510
        %1543 = vst [vmem:[#allocation3 + $0x168] sm:$0xff] %v1511
        %1544 = vst [vmem:[#allocation3 + $0x1b0] sm:$0xff] %v1512
        %1545 = vst [vmem:[#allocation3 + $0x1f8] sm:$0xff] %v1513
        %1546 = vst [vmem:[#allocation3 + $0x240] sm:$0xff] %v1514
        %1547 = vst [vmem:[#allocation3 + $0x288] sm:$0xff] %v1515
        %1548 = vst [vmem:[#allocation3 + $0x2d0] sm:$0xff] %v1516
        %1549 = vst [vmem:[#allocation3 + $0x318] sm:$0xff] %v1517
        %1550 = vst [vmem:[#allocation3 + $0x360] sm:$0xff] %v1518
        %1551 = vst [vmem:[#allocation3 + $0x3a8] sm:$0xff] %v1519
        %1552 = vst [vmem:[#allocation3 + $0x3f0] sm:$0xff] %v1520
        %1553 = vst [vmem:[#allocation3 + $0x438] sm:$0xff] %v1521
        %1554 = vst [vmem:[#allocation3 + $0x480] sm:$0xff] %v1522
        %1555 = vst [vmem:[#allocation3 + $0x4c8] sm:$0xff] %v1523
        %1556 = vst [vmem:[#allocation3 + $0x510] sm:$0xff] %v1524
        %1557 = vst [vmem:[#allocation3 + $0x558] sm:$0xff] %v1525
        %1558 = vst [vmem:[#allocation3 + $0x5a0] sm:$0xff] %v1526
        %1559 = vst [vmem:[#allocation3 + $0x5e8] sm:$0xff] %v1527
        %1560 = vst [vmem:[#allocation3 + $0x630] sm:$0xff] %v1528
        %1561 = vst [vmem:[#allocation3 + $0x678] sm:$0xff] %v1529
        %1562 = vst [vmem:[#allocation3 + $0x6c0] sm:$0xff] %v1530
        %1563 = vst [vmem:[#allocation3 + $0x708] sm:$0xff] %v1531
        %1564 = vst [vmem:[#allocation3 + $0x750] sm:$0xff] %v1532
        %1565 = vst [vmem:[#allocation3 + $0x798] sm:$0xff] %v1533
        %1566 = vst [vmem:[#allocation3 + $0x7e0] sm:$0xff] %v1534
        %1567 = vst [vmem:[#allocation3 + $0x828] sm:$0xff] %v1535
        %1568 = vst [vmem:[#allocation3 + $0x870] sm:$0xff] %v1536
        %1569 = vst [vmem:[#allocation3 + $0x8b8] sm:$0xff] %v1537
        %v1570 = vld [vmem:[#allocation2 + $0x8] sm:$0xff]
        %v1571 = vld [vmem:[#allocation2 + $0x10] sm:$0xff]
        %v1572 = vld [vmem:[#allocation2 + $0x18] sm:$0xff]
        %v1573 = vld [vmem:[#allocation2 + $0x20] sm:$0xff]
        %v1574 = vld [vmem:[#allocation2 + $0x28] sm:$0xff]
        %v1575 = vld [vmem:[#allocation2 + $0x30] sm:$0xff]
        %v1576 = vld [vmem:[#allocation2 + $0x38] sm:$0xff]
        %v1577 = vld [vmem:[#allocation2 + $0x40] sm:$0xff]
        %v1578 = vld [vmem:[#allocation2 + $0x48] sm:$0xff]
        %v1579 = vld [vmem:[#allocation2 + $0x50] sm:$0xff]
        %v1580 = vld [vmem:[#allocation2 + $0x58] sm:$0xff]
        %v1581 = vld [vmem:[#allocation2 + $0x60] sm:$0xff]
        %v1582 = vld [vmem:[#allocation2 + $0x68] sm:$0xff]
        %v1583 = vld [vmem:[#allocation2 + $0x70] sm:$0xff]
        %v1584 = vld [vmem:[#allocation2 + $0x78] sm:$0xff]
        %v1585 = vld [vmem:[#allocation2 + $0x80] sm:$0xff]
        %v1586 = vld [vmem:[#allocation2 + $0x88] sm:$0xff]
        %v1587 = vld [vmem:[#allocation2 + $0x90] sm:$0xff]
        %v1588 = vld [vmem:[#allocation2 + $0x98] sm:$0xff]
        %v1589 = vld [vmem:[#allocation2 + $0xa0] sm:$0xff]
        %v1590 = vld [vmem:[#allocation2 + $0xa8] sm:$0xff]
        %v1591 = vld [vmem:[#allocation2 + $0xb0] sm:$0xff]
        %v1592 = vld [vmem:[#allocation2 + $0xb8] sm:$0xff]
        %v1593 = vld [vmem:[#allocation2 + $0xc0] sm:$0xff]
        %v1594 = vld [vmem:[#allocation2 + $0xc8] sm:$0xff]
        %v1595 = vld [vmem:[#allocation2 + $0xd0] sm:$0xff]
        %v1596 = vld [vmem:[#allocation2 + $0xd8] sm:$0xff]
        %v1597 = vld [vmem:[#allocation2 + $0xe0] sm:$0xff]
        %v1598 = vld [vmem:[#allocation2 + $0xe8] sm:$0xff]
        %v1599 = vld [vmem:[#allocation2 + $0xf0] sm:$0xff]
        %v1600 = vld [vmem:[#allocation2 + $0xf8] sm:$0xff]
        %v1601 = vld [vmem:[#allocation2 + $0x100] sm:$0xff]
        %1602 = vst [vmem:[#allocation3 + $0x8] sm:$0xff] %v1570
        %1603 = vst [vmem:[#allocation3 + $0x50] sm:$0xff] %v1571
        %1604 = vst [vmem:[#allocation3 + $0x98] sm:$0xff] %v1572
        %1605 = vst [vmem:[#allocation3 + $0xe0] sm:$0xff] %v1573
        %1606 = vst [vmem:[#allocation3 + $0x128] sm:$0xff] %v1574
        %1607 = vst [vmem:[#allocation3 + $0x170] sm:$0xff] %v1575
        %1608 = vst [vmem:[#allocation3 + $0x1b8] sm:$0xff] %v1576
        %1609 = vst [vmem:[#allocation3 + $0x200] sm:$0xff] %v1577
        %1610 = vst [vmem:[#allocation3 + $0x248] sm:$0xff] %v1578
        %1611 = vst [vmem:[#allocation3 + $0x290] sm:$0xff] %v1579
        %1612 = vst [vmem:[#allocation3 + $0x2d8] sm:$0xff] %v1580
        %1613 = vst [vmem:[#allocation3 + $0x320] sm:$0xff] %v1581
        %1614 = vst [vmem:[#allocation3 + $0x368] sm:$0xff] %v1582
        %1615 = vst [vmem:[#allocation3 + $0x3b0] sm:$0xff] %v1583
        %1616 = vst [vmem:[#allocation3 + $0x3f8] sm:$0xff] %v1584
        %1617 = vst [vmem:[#allocation3 + $0x440] sm:$0xff] %v1585
        %1618 = vst [vmem:[#allocation3 + $0x488] sm:$0xff] %v1586
        %1619 = vst [vmem:[#allocation3 + $0x4d0] sm:$0xff] %v1587
        %1620 = vst [vmem:[#allocation3 + $0x518] sm:$0xff] %v1588
        %1621 = vst [vmem:[#allocation3 + $0x560] sm:$0xff] %v1589
        %1622 = vst [vmem:[#allocation3 + $0x5a8] sm:$0xff] %v1590
        %1623 = vst [vmem:[#allocation3 + $0x5f0] sm:$0xff] %v1591
        %1624 = vst [vmem:[#allocation3 + $0x638] sm:$0xff] %v1592
        %1625 = vst [vmem:[#allocation3 + $0x680] sm:$0xff] %v1593
        %1626 = vst [vmem:[#allocation3 + $0x6c8] sm:$0xff] %v1594
        %1627 = vst [vmem:[#allocation3 + $0x710] sm:$0xff] %v1595
        %1628 = vst [vmem:[#allocation3 + $0x758] sm:$0xff] %v1596
        %1629 = vst [vmem:[#allocation3 + $0x7a0] sm:$0xff] %v1597
        %1630 = vst [vmem:[#allocation3 + $0x7e8] sm:$0xff] %v1598
        %1631 = vst [vmem:[#allocation3 + $0x830] sm:$0xff] %v1599
        %1632 = vst [vmem:[#allocation3 + $0x878] sm:$0xff] %v1600
        %1633 = vst [vmem:[#allocation3 + $0x8c0] sm:$0xff] %v1601
        %v1634 = vld [vmem:[#allocation2 + $0x9] sm:$0xff]
        %v1635 = vld [vmem:[#allocation2 + $0x11] sm:$0xff]
        %v1636 = vld [vmem:[#allocation2 + $0x19] sm:$0xff]
        %v1637 = vld [vmem:[#allocation2 + $0x21] sm:$0xff]
        %v1638 = vld [vmem:[#allocation2 + $0x29] sm:$0xff]
        %v1639 = vld [vmem:[#allocation2 + $0x31] sm:$0xff]
        %v1640 = vld [vmem:[#allocation2 + $0x39] sm:$0xff]
        %v1641 = vld [vmem:[#allocation2 + $0x41] sm:$0xff]
        %v1642 = vld [vmem:[#allocation2 + $0x49] sm:$0xff]
        %v1643 = vld [vmem:[#allocation2 + $0x51] sm:$0xff]
        %v1644 = vld [vmem:[#allocation2 + $0x59] sm:$0xff]
        %v1645 = vld [vmem:[#allocation2 + $0x61] sm:$0xff]
        %v1646 = vld [vmem:[#allocation2 + $0x69] sm:$0xff]
        %v1647 = vld [vmem:[#allocation2 + $0x71] sm:$0xff]
        %v1648 = vld [vmem:[#allocation2 + $0x79] sm:$0xff]
        %v1649 = vld [vmem:[#allocation2 + $0x81] sm:$0xff]
        %v1650 = vld [vmem:[#allocation2 + $0x89] sm:$0xff]
        %v1651 = vld [vmem:[#allocation2 + $0x91] sm:$0xff]
        %v1652 = vld [vmem:[#allocation2 + $0x99] sm:$0xff]
        %v1653 = vld [vmem:[#allocation2 + $0xa1] sm:$0xff]
        %v1654 = vld [vmem:[#allocation2 + $0xa9] sm:$0xff]
        %v1655 = vld [vmem:[#allocation2 + $0xb1] sm:$0xff]
        %v1656 = vld [vmem:[#allocation2 + $0xb9] sm:$0xff]
        %v1657 = vld [vmem:[#allocation2 + $0xc1] sm:$0xff]
        %v1658 = vld [vmem:[#allocation2 + $0xc9] sm:$0xff]
        %v1659 = vld [vmem:[#allocation2 + $0xd1] sm:$0xff]
        %v1660 = vld [vmem:[#allocation2 + $0xd9] sm:$0xff]
        %v1661 = vld [vmem:[#allocation2 + $0xe1] sm:$0xff]
        %v1662 = vld [vmem:[#allocation2 + $0xe9] sm:$0xff]
        %v1663 = vld [vmem:[#allocation2 + $0xf1] sm:$0xff]
        %v1664 = vld [vmem:[#allocation2 + $0xf9] sm:$0xff]
        %v1665 = vld [vmem:[#allocation2 + $0x101] sm:$0xff]
        %v1666 = vsel %vm1442, %v1634, 0.0
        %v1667 = vsel %vm1443, %v1635, 0.0
        %v1668 = vsel %vm1444, %v1636, 0.0
        %v1669 = vsel %vm1445, %v1637, 0.0
        %v1670 = vsel %vm1446, %v1638, 0.0
        %v1671 = vsel %vm1447, %v1639, 0.0
        %v1672 = vsel %vm1448, %v1640, 0.0
        %v1673 = vsel %vm1449, %v1641, 0.0
        %v1674 = vsel %vm1450, %v1642, 0.0
        %v1675 = vsel %vm1451, %v1643, 0.0
        %v1676 = vsel %vm1452, %v1644, 0.0
        %v1677 = vsel %vm1453, %v1645, 0.0
        %v1678 = vsel %vm1454, %v1646, 0.0
        %v1679 = vsel %vm1455, %v1647, 0.0
        %v1680 = vsel %vm1456, %v1648, 0.0
        %v1681 = vsel %vm1457, %v1649, 0.0
        %v1682 = vsel %vm1458, %v1650, 0.0
        %v1683 = vsel %vm1459, %v1651, 0.0
        %v1684 = vsel %vm1460, %v1652, 0.0
        %v1685 = vsel %vm1461, %v1653, 0.0
        %v1686 = vsel %vm1462, %v1654, 0.0
        %v1687 = vsel %vm1463, %v1655, 0.0
        %v1688 = vsel %vm1464, %v1656, 0.0
        %v1689 = vsel %vm1465, %v1657, 0.0
        %v1690 = vsel %vm1466, %v1658, 0.0
        %v1691 = vsel %vm1467, %v1659, 0.0
        %v1692 = vsel %vm1468, %v1660, 0.0
        %v1693 = vsel %vm1469, %v1661, 0.0
        %v1694 = vsel %vm1470, %v1662, 0.0
        %v1695 = vsel %vm1471, %v1663, 0.0
        %v1696 = vsel %vm1472, %v1664, 0.0
        %v1697 = vsel %vm1473, %v1665, 0.0
        %1698 = vst [vmem:[#allocation3 + $0x10] sm:$0xff] %v1666
        %1699 = vst [vmem:[#allocation3 + $0x58] sm:$0xff] %v1667
        %1700 = vst [vmem:[#allocation3 + $0xa0] sm:$0xff] %v1668
        %1701 = vst [vmem:[#allocation3 + $0xe8] sm:$0xff] %v1669
        %1702 = vst [vmem:[#allocation3 + $0x130] sm:$0xff] %v1670
        %1703 = vst [vmem:[#allocation3 + $0x178] sm:$0xff] %v1671
        %1704 = vst [vmem:[#allocation3 + $0x1c0] sm:$0xff] %v1672
        %1705 = vst [vmem:[#allocation3 + $0x208] sm:$0xff] %v1673
        %1706 = vst [vmem:[#allocation3 + $0x250] sm:$0xff] %v1674
        %1707 = vst [vmem:[#allocation3 + $0x298] sm:$0xff] %v1675
        %1708 = vst [vmem:[#allocation3 + $0x2e0] sm:$0xff] %v1676
        %1709 = vst [vmem:[#allocation3 + $0x328] sm:$0xff] %v1677
        %1710 = vst [vmem:[#allocation3 + $0x370] sm:$0xff] %v1678
        %1711 = vst [vmem:[#allocation3 + $0x3b8] sm:$0xff] %v1679
        %1712 = vst [vmem:[#allocation3 + $0x400] sm:$0xff] %v1680
        %1713 = vst [vmem:[#allocation3 + $0x448] sm:$0xff] %v1681
        %1714 = vst [vmem:[#allocation3 + $0x490] sm:$0xff] %v1682
        %1715 = vst [vmem:[#allocation3 + $0x4d8] sm:$0xff] %v1683
        %1716 = vst [vmem:[#allocation3 + $0x520] sm:$0xff] %v1684
        %1717 = vst [vmem:[#allocation3 + $0x568] sm:$0xff] %v1685
        %1718 = vst [vmem:[#allocation3 + $0x5b0] sm:$0xff] %v1686
        %1719 = vst [vmem:[#allocation3 + $0x5f8] sm:$0xff] %v1687
        %1720 = vst [vmem:[#allocation3 + $0x640] sm:$0xff] %v1688
        %1721 = vst [vmem:[#allocation3 + $0x688] sm:$0xff] %v1689
        %1722 = vst [vmem:[#allocation3 + $0x6d0] sm:$0xff] %v1690
        %1723 = vst [vmem:[#allocation3 + $0x718] sm:$0xff] %v1691
        %1724 = vst [vmem:[#allocation3 + $0x760] sm:$0xff] %v1692
        %1725 = vst [vmem:[#allocation3 + $0x7a8] sm:$0xff] %v1693
        %1726 = vst [vmem:[#allocation3 + $0x7f0] sm:$0xff] %v1694
        %1727 = vst [vmem:[#allocation3 + $0x838] sm:$0xff] %v1695
        %1728 = vst [vmem:[#allocation3 + $0x880] sm:$0xff] %v1696
        %1729 = vst [vmem:[#allocation3 + $0x8c8] sm:$0xff] %v1697
        %v1730 = vld [vmem:[#allocation2 + $0x17] sm:$0xff]
        %v1731 = vld [vmem:[#allocation2 + $0x1f] sm:$0xff]
        %v1732 = vld [vmem:[#allocation2 + $0x27] sm:$0xff]
        %v1733 = vld [vmem:[#allocation2 + $0x2f] sm:$0xff]
        %v1734 = vld [vmem:[#allocation2 + $0x37] sm:$0xff]
        %v1735 = vld [vmem:[#allocation2 + $0x3f] sm:$0xff]
        %v1736 = vld [vmem:[#allocation2 + $0x47] sm:$0xff]
        %v1737 = vld [vmem:[#allocation2 + $0x4f] sm:$0xff]
        %v1738 = vld [vmem:[#allocation2 + $0x57] sm:$0xff]
        %v1739 = vld [vmem:[#allocation2 + $0x5f] sm:$0xff]
        %v1740 = vld [vmem:[#allocation2 + $0x67] sm:$0xff]
        %v1741 = vld [vmem:[#allocation2 + $0x6f] sm:$0xff]
        %v1742 = vld [vmem:[#allocation2 + $0x77] sm:$0xff]
        %v1743 = vld [vmem:[#allocation2 + $0x7f] sm:$0xff]
        %v1744 = vld [vmem:[#allocation2 + $0x87] sm:$0xff]
        %v1745 = vld [vmem:[#allocation2 + $0x8f] sm:$0xff]
        %v1746 = vld [vmem:[#allocation2 + $0x97] sm:$0xff]
        %v1747 = vld [vmem:[#allocation2 + $0x9f] sm:$0xff]
        %v1748 = vld [vmem:[#allocation2 + $0xa7] sm:$0xff]
        %v1749 = vld [vmem:[#allocation2 + $0xaf] sm:$0xff]
        %v1750 = vld [vmem:[#allocation2 + $0xb7] sm:$0xff]
        %v1751 = vld [vmem:[#allocation2 + $0xbf] sm:$0xff]
        %v1752 = vld [vmem:[#allocation2 + $0xc7] sm:$0xff]
        %v1753 = vld [vmem:[#allocation2 + $0xcf] sm:$0xff]
        %v1754 = vld [vmem:[#allocation2 + $0xd7] sm:$0xff]
        %v1755 = vld [vmem:[#allocation2 + $0xdf] sm:$0xff]
        %v1756 = vld [vmem:[#allocation2 + $0xe7] sm:$0xff]
        %v1757 = vld [vmem:[#allocation2 + $0xef] sm:$0xff]
        %v1758 = vld [vmem:[#allocation2 + $0xf7] sm:$0xff]
        %v1759 = vld [vmem:[#allocation2 + $0xff] sm:$0xff]
        %v1760 = vld [vmem:[#allocation2 + $0x107] sm:$0xff]
        %v1761 = vld [vmem:[#allocation2 + $0x10f] sm:$0xff]
        %v1762 = vsel %vm1410, %v1730, 0.0
        %v1763 = vsel %vm1411, %v1731, 0.0
        %v1764 = vsel %vm1412, %v1732, 0.0
        %v1765 = vsel %vm1413, %v1733, 0.0
        %v1766 = vsel %vm1414, %v1734, 0.0
        %v1767 = vsel %vm1415, %v1735, 0.0
        %v1768 = vsel %vm1416, %v1736, 0.0
        %v1769 = vsel %vm1417, %v1737, 0.0
        %v1770 = vsel %vm1418, %v1738, 0.0
        %v1771 = vsel %vm1419, %v1739, 0.0
        %v1772 = vsel %vm1420, %v1740, 0.0
        %v1773 = vsel %vm1421, %v1741, 0.0
        %v1774 = vsel %vm1422, %v1742, 0.0
        %v1775 = vsel %vm1423, %v1743, 0.0
        %v1776 = vsel %vm1424, %v1744, 0.0
        %v1777 = vsel %vm1425, %v1745, 0.0
        %v1778 = vsel %vm1426, %v1746, 0.0
        %v1779 = vsel %vm1427, %v1747, 0.0
        %v1780 = vsel %vm1428, %v1748, 0.0
        %v1781 = vsel %vm1429, %v1749, 0.0
        %v1782 = vsel %vm1430, %v1750, 0.0
        %v1783 = vsel %vm1431, %v1751, 0.0
        %v1784 = vsel %vm1432, %v1752, 0.0
        %v1785 = vsel %vm1433, %v1753, 0.0
        %v1786 = vsel %vm1434, %v1754, 0.0
        %v1787 = vsel %vm1435, %v1755, 0.0
        %v1788 = vsel %vm1436, %v1756, 0.0
        %v1789 = vsel %vm1437, %v1757, 0.0
        %v1790 = vsel %vm1438, %v1758, 0.0
        %v1791 = vsel %vm1439, %v1759, 0.0
        %v1792 = vsel %vm1440, %v1760, 0.0
        %v1793 = vsel %vm1441, %v1761, 0.0
        %1794 = vst [vmem:[#allocation3 + $0x18] sm:$0xff] %v1762
        %1795 = vst [vmem:[#allocation3 + $0x60] sm:$0xff] %v1763
        %1796 = vst [vmem:[#allocation3 + $0xa8] sm:$0xff] %v1764
        %1797 = vst [vmem:[#allocation3 + $0xf0] sm:$0xff] %v1765
        %1798 = vst [vmem:[#allocation3 + $0x138] sm:$0xff] %v1766
        %1799 = vst [vmem:[#allocation3 + $0x180] sm:$0xff] %v1767
        %1800 = vst [vmem:[#allocation3 + $0x1c8] sm:$0xff] %v1768
        %1801 = vst [vmem:[#allocation3 + $0x210] sm:$0xff] %v1769
        %1802 = vst [vmem:[#allocation3 + $0x258] sm:$0xff] %v1770
        %1803 = vst [vmem:[#allocation3 + $0x2a0] sm:$0xff] %v1771
        %1804 = vst [vmem:[#allocation3 + $0x2e8] sm:$0xff] %v1772
        %1805 = vst [vmem:[#allocation3 + $0x330] sm:$0xff] %v1773
        %1806 = vst [vmem:[#allocation3 + $0x378] sm:$0xff] %v1774
        %1807 = vst [vmem:[#allocation3 + $0x3c0] sm:$0xff] %v1775
        %1808 = vst [vmem:[#allocation3 + $0x408] sm:$0xff] %v1776
        %1809 = vst [vmem:[#allocation3 + $0x450] sm:$0xff] %v1777
        %1810 = vst [vmem:[#allocation3 + $0x498] sm:$0xff] %v1778
        %1811 = vst [vmem:[#allocation3 + $0x4e0] sm:$0xff] %v1779
        %1812 = vst [vmem:[#allocation3 + $0x528] sm:$0xff] %v1780
        %1813 = vst [vmem:[#allocation3 + $0x570] sm:$0xff] %v1781
        %1814 = vst [vmem:[#allocation3 + $0x5b8] sm:$0xff] %v1782
        %1815 = vst [vmem:[#allocation3 + $0x600] sm:$0xff] %v1783
        %1816 = vst [vmem:[#allocation3 + $0x648] sm:$0xff] %v1784
        %1817 = vst [vmem:[#allocation3 + $0x690] sm:$0xff] %v1785
        %1818 = vst [vmem:[#allocation3 + $0x6d8] sm:$0xff] %v1786
        %1819 = vst [vmem:[#allocation3 + $0x720] sm:$0xff] %v1787
        %1820 = vst [vmem:[#allocation3 + $0x768] sm:$0xff] %v1788
        %1821 = vst [vmem:[#allocation3 + $0x7b0] sm:$0xff] %v1789
        %1822 = vst [vmem:[#allocation3 + $0x7f8] sm:$0xff] %v1790
        %1823 = vst [vmem:[#allocation3 + $0x840] sm:$0xff] %v1791
        %1824 = vst [vmem:[#allocation3 + $0x888] sm:$0xff] %v1792
        %1825 = vst [vmem:[#allocation3 + $0x8d0] sm:$0xff] %v1793
        %v1826 = vld [vmem:[#allocation2 + $0x18] sm:$0xff]
        %v1827 = vld [vmem:[#allocation2 + $0x20] sm:$0xff]
        %v1828 = vld [vmem:[#allocation2 + $0x28] sm:$0xff]
        %v1829 = vld [vmem:[#allocation2 + $0x30] sm:$0xff]
        %v1830 = vld [vmem:[#allocation2 + $0x38] sm:$0xff]
        %v1831 = vld [vmem:[#allocation2 + $0x40] sm:$0xff]
        %v1832 = vld [vmem:[#allocation2 + $0x48] sm:$0xff]
        %v1833 = vld [vmem:[#allocation2 + $0x50] sm:$0xff]
        %v1834 = vld [vmem:[#allocation2 + $0x58] sm:$0xff]
        %v1835 = vld [vmem:[#allocation2 + $0x60] sm:$0xff]
        %v1836 = vld [vmem:[#allocation2 + $0x68] sm:$0xff]
        %v1837 = vld [vmem:[#allocation2 + $0x70] sm:$0xff]
        %v1838 = vld [vmem:[#allocation2 + $0x78] sm:$0xff]
        %v1839 = vld [vmem:[#allocation2 + $0x80] sm:$0xff]
        %v1840 = vld [vmem:[#allocation2 + $0x88] sm:$0xff]
        %v1841 = vld [vmem:[#allocation2 + $0x90] sm:$0xff]
        %v1842 = vld [vmem:[#allocation2 + $0x98] sm:$0xff]
        %v1843 = vld [vmem:[#allocation2 + $0xa0] sm:$0xff]
        %v1844 = vld [vmem:[#allocation2 + $0xa8] sm:$0xff]
        %v1845 = vld [vmem:[#allocation2 + $0xb0] sm:$0xff]
        %v1846 = vld [vmem:[#allocation2 + $0xb8] sm:$0xff]
        %v1847 = vld [vmem:[#allocation2 + $0xc0] sm:$0xff]
        %v1848 = vld [vmem:[#allocation2 + $0xc8] sm:$0xff]
        %v1849 = vld [vmem:[#allocation2 + $0xd0] sm:$0xff]
        %v1850 = vld [vmem:[#allocation2 + $0xd8] sm:$0xff]
        %v1851 = vld [vmem:[#allocation2 + $0xe0] sm:$0xff]
        %v1852 = vld [vmem:[#allocation2 + $0xe8] sm:$0xff]
        %v1853 = vld [vmem:[#allocation2 + $0xf0] sm:$0xff]
        %v1854 = vld [vmem:[#allocation2 + $0xf8] sm:$0xff]
        %v1855 = vld [vmem:[#allocation2 + $0x100] sm:$0xff]
        %v1856 = vld [vmem:[#allocation2 + $0x108] sm:$0xff]
        %v1857 = vld [vmem:[#allocation2 + $0x110] sm:$0xff]
        %1858 = vst [vmem:[#allocation3 + $0x20] sm:$0xff] %v1826
        %1859 = vst [vmem:[#allocation3 + $0x68] sm:$0xff] %v1827
        %1860 = vst [vmem:[#allocation3 + $0xb0] sm:$0xff] %v1828
        %1861 = vst [vmem:[#allocation3 + $0xf8] sm:$0xff] %v1829
        %1862 = vst [vmem:[#allocation3 + $0x140] sm:$0xff] %v1830
        %1863 = vst [vmem:[#allocation3 + $0x188] sm:$0xff] %v1831
        %1864 = vst [vmem:[#allocation3 + $0x1d0] sm:$0xff] %v1832
        %1865 = vst [vmem:[#allocation3 + $0x218] sm:$0xff] %v1833
        %1866 = vst [vmem:[#allocation3 + $0x260] sm:$0xff] %v1834
        %1867 = vst [vmem:[#allocation3 + $0x2a8] sm:$0xff] %v1835
        %1868 = vst [vmem:[#allocation3 + $0x2f0] sm:$0xff] %v1836
        %1869 = vst [vmem:[#allocation3 + $0x338] sm:$0xff] %v1837
        %1870 = vst [vmem:[#allocation3 + $0x380] sm:$0xff] %v1838
        %1871 = vst [vmem:[#allocation3 + $0x3c8] sm:$0xff] %v1839
        %1872 = vst [vmem:[#allocation3 + $0x410] sm:$0xff] %v1840
        %1873 = vst [vmem:[#allocation3 + $0x458] sm:$0xff] %v1841
        %1874 = vst [vmem:[#allocation3 + $0x4a0] sm:$0xff] %v1842
        %1875 = vst [vmem:[#allocation3 + $0x4e8] sm:$0xff] %v1843
        %1876 = vst [vmem:[#allocation3 + $0x530] sm:$0xff] %v1844
        %1877 = vst [vmem:[#allocation3 + $0x578] sm:$0xff] %v1845
        %1878 = vst [vmem:[#allocation3 + $0x5c0] sm:$0xff] %v1846
        %1879 = vst [vmem:[#allocation3 + $0x608] sm:$0xff] %v1847
        %1880 = vst [vmem:[#allocation3 + $0x650] sm:$0xff] %v1848
        %1881 = vst [vmem:[#allocation3 + $0x698] sm:$0xff] %v1849
        %1882 = vst [vmem:[#allocation3 + $0x6e0] sm:$0xff] %v1850
        %1883 = vst [vmem:[#allocation3 + $0x728] sm:$0xff] %v1851
        %1884 = vst [vmem:[#allocation3 + $0x770] sm:$0xff] %v1852
        %1885 = vst [vmem:[#allocation3 + $0x7b8] sm:$0xff] %v1853
        %1886 = vst [vmem:[#allocation3 + $0x800] sm:$0xff] %v1854
        %1887 = vst [vmem:[#allocation3 + $0x848] sm:$0xff] %v1855
        %1888 = vst [vmem:[#allocation3 + $0x890] sm:$0xff] %v1856
        %1889 = vst [vmem:[#allocation3 + $0x8d8] sm:$0xff] %v1857
        %v1890 = vld [vmem:[#allocation2 + $0x19] sm:$0xff]
        %v1891 = vld [vmem:[#allocation2 + $0x21] sm:$0xff]
        %v1892 = vld [vmem:[#allocation2 + $0x29] sm:$0xff]
        %v1893 = vld [vmem:[#allocation2 + $0x31] sm:$0xff]
        %v1894 = vld [vmem:[#allocation2 + $0x39] sm:$0xff]
        %v1895 = vld [vmem:[#allocation2 + $0x41] sm:$0xff]
        %v1896 = vld [vmem:[#allocation2 + $0x49] sm:$0xff]
        %v1897 = vld [vmem:[#allocation2 + $0x51] sm:$0xff]
        %v1898 = vld [vmem:[#allocation2 + $0x59] sm:$0xff]
        %v1899 = vld [vmem:[#allocation2 + $0x61] sm:$0xff]
        %v1900 = vld [vmem:[#allocation2 + $0x69] sm:$0xff]
        %v1901 = vld [vmem:[#allocation2 + $0x71] sm:$0xff]
        %v1902 = vld [vmem:[#allocation2 + $0x79] sm:$0xff]
        %v1903 = vld [vmem:[#allocation2 + $0x81] sm:$0xff]
        %v1904 = vld [vmem:[#allocation2 + $0x89] sm:$0xff]
        %v1905 = vld [vmem:[#allocation2 + $0x91] sm:$0xff]
        %v1906 = vld [vmem:[#allocation2 + $0x99] sm:$0xff]
        %v1907 = vld [vmem:[#allocation2 + $0xa1] sm:$0xff]
        %v1908 = vld [vmem:[#allocation2 + $0xa9] sm:$0xff]
        %v1909 = vld [vmem:[#allocation2 + $0xb1] sm:$0xff]
        %v1910 = vld [vmem:[#allocation2 + $0xb9] sm:$0xff]
        %v1911 = vld [vmem:[#allocation2 + $0xc1] sm:$0xff]
        %v1912 = vld [vmem:[#allocation2 + $0xc9] sm:$0xff]
        %v1913 = vld [vmem:[#allocation2 + $0xd1] sm:$0xff]
        %v1914 = vld [vmem:[#allocation2 + $0xd9] sm:$0xff]
        %v1915 = vld [vmem:[#allocation2 + $0xe1] sm:$0xff]
        %v1916 = vld [vmem:[#allocation2 + $0xe9] sm:$0xff]
        %v1917 = vld [vmem:[#allocation2 + $0xf1] sm:$0xff]
        %v1918 = vld [vmem:[#allocation2 + $0xf9] sm:$0xff]
        %v1919 = vld [vmem:[#allocation2 + $0x101] sm:$0xff]
        %v1920 = vld [vmem:[#allocation2 + $0x109] sm:$0xff]
        %v1921 = vld [vmem:[#allocation2 + $0x111] sm:$0xff]
        %v1922 = vsel %vm1442, %v1890, 0.0
        %v1923 = vsel %vm1443, %v1891, 0.0
        %v1924 = vsel %vm1444, %v1892, 0.0
        %v1925 = vsel %vm1445, %v1893, 0.0
        %v1926 = vsel %vm1446, %v1894, 0.0
        %v1927 = vsel %vm1447, %v1895, 0.0
        %v1928 = vsel %vm1448, %v1896, 0.0
        %v1929 = vsel %vm1449, %v1897, 0.0
        %v1930 = vsel %vm1450, %v1898, 0.0
        %v1931 = vsel %vm1451, %v1899, 0.0
        %v1932 = vsel %vm1452, %v1900, 0.0
        %v1933 = vsel %vm1453, %v1901, 0.0
        %v1934 = vsel %vm1454, %v1902, 0.0
        %v1935 = vsel %vm1455, %v1903, 0.0
        %v1936 = vsel %vm1456, %v1904, 0.0
        %v1937 = vsel %vm1457, %v1905, 0.0
        %v1938 = vsel %vm1458, %v1906, 0.0
        %v1939 = vsel %vm1459, %v1907, 0.0
        %v1940 = vsel %vm1460, %v1908, 0.0
        %v1941 = vsel %vm1461, %v1909, 0.0
        %v1942 = vsel %vm1462, %v1910, 0.0
        %v1943 = vsel %vm1463, %v1911, 0.0
        %v1944 = vsel %vm1464, %v1912, 0.0
        %v1945 = vsel %vm1465, %v1913, 0.0
        %v1946 = vsel %vm1466, %v1914, 0.0
        %v1947 = vsel %vm1467, %v1915, 0.0
        %v1948 = vsel %vm1468, %v1916, 0.0
        %v1949 = vsel %vm1469, %v1917, 0.0
        %v1950 = vsel %vm1470, %v1918, 0.0
        %v1951 = vsel %vm1471, %v1919, 0.0
        %v1952 = vsel %vm1472, %v1920, 0.0
        %v1953 = vsel %vm1473, %v1921, 0.0
        %1954 = vst [vmem:[#allocation3 + $0x28] sm:$0xff] %v1922
        %1955 = vst [vmem:[#allocation3 + $0x70] sm:$0xff] %v1923
        %1956 = vst [vmem:[#allocation3 + $0xb8] sm:$0xff] %v1924
        %1957 = vst [vmem:[#allocation3 + $0x100] sm:$0xff] %v1925
        %1958 = vst [vmem:[#allocation3 + $0x148] sm:$0xff] %v1926
        %1959 = vst [vmem:[#allocation3 + $0x190] sm:$0xff] %v1927
        %1960 = vst [vmem:[#allocation3 + $0x1d8] sm:$0xff] %v1928
        %1961 = vst [vmem:[#allocation3 + $0x220] sm:$0xff] %v1929
        %1962 = vst [vmem:[#allocation3 + $0x268] sm:$0xff] %v1930
        %1963 = vst [vmem:[#allocation3 + $0x2b0] sm:$0xff] %v1931
        %1964 = vst [vmem:[#allocation3 + $0x2f8] sm:$0xff] %v1932
        %1965 = vst [vmem:[#allocation3 + $0x340] sm:$0xff] %v1933
        %1966 = vst [vmem:[#allocation3 + $0x388] sm:$0xff] %v1934
        %1967 = vst [vmem:[#allocation3 + $0x3d0] sm:$0xff] %v1935
        %1968 = vst [vmem:[#allocation3 + $0x418] sm:$0xff] %v1936
        %1969 = vst [vmem:[#allocation3 + $0x460] sm:$0xff] %v1937
        %1970 = vst [vmem:[#allocation3 + $0x4a8] sm:$0xff] %v1938
        %1971 = vst [vmem:[#allocation3 + $0x4f0] sm:$0xff] %v1939
        %1972 = vst [vmem:[#allocation3 + $0x538] sm:$0xff] %v1940
        %1973 = vst [vmem:[#allocation3 + $0x580] sm:$0xff] %v1941
        %1974 = vst [vmem:[#allocation3 + $0x5c8] sm:$0xff] %v1942
        %1975 = vst [vmem:[#allocation3 + $0x610] sm:$0xff] %v1943
        %1976 = vst [vmem:[#allocation3 + $0x658] sm:$0xff] %v1944
        %1977 = vst [vmem:[#allocation3 + $0x6a0] sm:$0xff] %v1945
        %1978 = vst [vmem:[#allocation3 + $0x6e8] sm:$0xff] %v1946
        %1979 = vst [vmem:[#allocation3 + $0x730] sm:$0xff] %v1947
        %1980 = vst [vmem:[#allocation3 + $0x778] sm:$0xff] %v1948
        %1981 = vst [vmem:[#allocation3 + $0x7c0] sm:$0xff] %v1949
        %1982 = vst [vmem:[#allocation3 + $0x808] sm:$0xff] %v1950
        %1983 = vst [vmem:[#allocation3 + $0x850] sm:$0xff] %v1951
        %1984 = vst [vmem:[#allocation3 + $0x898] sm:$0xff] %v1952
        %1985 = vst [vmem:[#allocation3 + $0x8e0] sm:$0xff] %v1953
        %v1986 = vld [vmem:[#allocation2 + $0x27] sm:$0xff]
        %v1987 = vld [vmem:[#allocation2 + $0x2f] sm:$0xff]
        %v1988 = vld [vmem:[#allocation2 + $0x37] sm:$0xff]
        %v1989 = vld [vmem:[#allocation2 + $0x3f] sm:$0xff]
        %v1990 = vld [vmem:[#allocation2 + $0x47] sm:$0xff]
        %v1991 = vld [vmem:[#allocation2 + $0x4f] sm:$0xff]
        %v1992 = vld [vmem:[#allocation2 + $0x57] sm:$0xff]
        %v1993 = vld [vmem:[#allocation2 + $0x5f] sm:$0xff]
        %v1994 = vld [vmem:[#allocation2 + $0x67] sm:$0xff]
        %v1995 = vld [vmem:[#allocation2 + $0x6f] sm:$0xff]
        %v1996 = vld [vmem:[#allocation2 + $0x77] sm:$0xff]
        %v1997 = vld [vmem:[#allocation2 + $0x7f] sm:$0xff]
        %v1998 = vld [vmem:[#allocation2 + $0x87] sm:$0xff]
        %v1999 = vld [vmem:[#allocation2 + $0x8f] sm:$0xff]
        %v2000 = vld [vmem:[#allocation2 + $0x97] sm:$0xff]
        %v2001 = vld [vmem:[#allocation2 + $0x9f] sm:$0xff]
        %v2002 = vld [vmem:[#allocation2 + $0xa7] sm:$0xff]
        %v2003 = vld [vmem:[#allocation2 + $0xaf] sm:$0xff]
        %v2004 = vld [vmem:[#allocation2 + $0xb7] sm:$0xff]
        %v2005 = vld [vmem:[#allocation2 + $0xbf] sm:$0xff]
        %v2006 = vld [vmem:[#allocation2 + $0xc7] sm:$0xff]
        %v2007 = vld [vmem:[#allocation2 + $0xcf] sm:$0xff]
        %v2008 = vld [vmem:[#allocation2 + $0xd7] sm:$0xff]
        %v2009 = vld [vmem:[#allocation2 + $0xdf] sm:$0xff]
        %v2010 = vld [vmem:[#allocation2 + $0xe7] sm:$0xff]
        %v2011 = vld [vmem:[#allocation2 + $0xef] sm:$0xff]
        %v2012 = vld [vmem:[#allocation2 + $0xf7] sm:$0xff]
        %v2013 = vld [vmem:[#allocation2 + $0xff] sm:$0xff]
        %v2014 = vld [vmem:[#allocation2 + $0x107] sm:$0xff]
        %v2015 = vld [vmem:[#allocation2 + $0x10f] sm:$0xff]
        %v2016 = vld [vmem:[#allocation2 + $0x117] sm:$0xff]
        %v2017 = vld [vmem:[#allocation2 + $0x11f] sm:$0xff]
        %v2018 = vsel %vm1410, %v1986, 0.0
        %v2019 = vsel %vm1411, %v1987, 0.0
        %v2020 = vsel %vm1412, %v1988, 0.0
        %v2021 = vsel %vm1413, %v1989, 0.0
        %v2022 = vsel %vm1414, %v1990, 0.0
        %v2023 = vsel %vm1415, %v1991, 0.0
        %v2024 = vsel %vm1416, %v1992, 0.0
        %v2025 = vsel %vm1417, %v1993, 0.0
        %v2026 = vsel %vm1418, %v1994, 0.0
        %v2027 = vsel %vm1419, %v1995, 0.0
        %v2028 = vsel %vm1420, %v1996, 0.0
        %v2029 = vsel %vm1421, %v1997, 0.0
        %v2030 = vsel %vm1422, %v1998, 0.0
        %v2031 = vsel %vm1423, %v1999, 0.0
        %v2032 = vsel %vm1424, %v2000, 0.0
        %v2033 = vsel %vm1425, %v2001, 0.0
        %v2034 = vsel %vm1426, %v2002, 0.0
        %v2035 = vsel %vm1427, %v2003, 0.0
        %v2036 = vsel %vm1428, %v2004, 0.0
        %v2037 = vsel %vm1429, %v2005, 0.0
        %v2038 = vsel %vm1430, %v2006, 0.0
        %v2039 = vsel %vm1431, %v2007, 0.0
        %v2040 = vsel %vm1432, %v2008, 0.0
        %v2041 = vsel %vm1433, %v2009, 0.0
        %v2042 = vsel %vm1434, %v2010, 0.0
        %v2043 = vsel %vm1435, %v2011, 0.0
        %v2044 = vsel %vm1436, %v2012, 0.0
        %v2045 = vsel %vm1437, %v2013, 0.0
        %v2046 = vsel %vm1438, %v2014, 0.0
        %v2047 = vsel %vm1439, %v2015, 0.0
        %v2048 = vsel %vm1440, %v2016, 0.0
        %v2049 = vsel %vm1441, %v2017, 0.0
        %2050 = vst [vmem:[#allocation3 + $0x30] sm:$0xff] %v2018
        %2051 = vst [vmem:[#allocation3 + $0x78] sm:$0xff] %v2019
        %2052 = vst [vmem:[#allocation3 + $0xc0] sm:$0xff] %v2020
        %2053 = vst [vmem:[#allocation3 + $0x108] sm:$0xff] %v2021
        %2054 = vst [vmem:[#allocation3 + $0x150] sm:$0xff] %v2022
        %2055 = vst [vmem:[#allocation3 + $0x198] sm:$0xff] %v2023
        %2056 = vst [vmem:[#allocation3 + $0x1e0] sm:$0xff] %v2024
        %2057 = vst [vmem:[#allocation3 + $0x228] sm:$0xff] %v2025
        %2058 = vst [vmem:[#allocation3 + $0x270] sm:$0xff] %v2026
        %2059 = vst [vmem:[#allocation3 + $0x2b8] sm:$0xff] %v2027
        %2060 = vst [vmem:[#allocation3 + $0x300] sm:$0xff] %v2028
        %2061 = vst [vmem:[#allocation3 + $0x348] sm:$0xff] %v2029
        %2062 = vst [vmem:[#allocation3 + $0x390] sm:$0xff] %v2030
        %2063 = vst [vmem:[#allocation3 + $0x3d8] sm:$0xff] %v2031
        %2064 = vst [vmem:[#allocation3 + $0x420] sm:$0xff] %v2032
        %2065 = vst [vmem:[#allocation3 + $0x468] sm:$0xff] %v2033
        %2066 = vst [vmem:[#allocation3 + $0x4b0] sm:$0xff] %v2034
        %2067 = vst [vmem:[#allocation3 + $0x4f8] sm:$0xff] %v2035
        %2068 = vst [vmem:[#allocation3 + $0x540] sm:$0xff] %v2036
        %2069 = vst [vmem:[#allocation3 + $0x588] sm:$0xff] %v2037
        %2070 = vst [vmem:[#allocation3 + $0x5d0] sm:$0xff] %v2038
        %2071 = vst [vmem:[#allocation3 + $0x618] sm:$0xff] %v2039
        %2072 = vst [vmem:[#allocation3 + $0x660] sm:$0xff] %v2040
        %2073 = vst [vmem:[#allocation3 + $0x6a8] sm:$0xff] %v2041
        %2074 = vst [vmem:[#allocation3 + $0x6f0] sm:$0xff] %v2042
        %2075 = vst [vmem:[#allocation3 + $0x738] sm:$0xff] %v2043
        %2076 = vst [vmem:[#allocation3 + $0x780] sm:$0xff] %v2044
        %2077 = vst [vmem:[#allocation3 + $0x7c8] sm:$0xff] %v2045
        %2078 = vst [vmem:[#allocation3 + $0x810] sm:$0xff] %v2046
        %2079 = vst [vmem:[#allocation3 + $0x858] sm:$0xff] %v2047
        %2080 = vst [vmem:[#allocation3 + $0x8a0] sm:$0xff] %v2048
        %2081 = vst [vmem:[#allocation3 + $0x8e8] sm:$0xff] %v2049
        %v2082 = vld [vmem:[#allocation2 + $0x28] sm:$0xff]
        %v2083 = vld [vmem:[#allocation2 + $0x30] sm:$0xff]
        %v2084 = vld [vmem:[#allocation2 + $0x38] sm:$0xff]
        %v2085 = vld [vmem:[#allocation2 + $0x40] sm:$0xff]
        %v2086 = vld [vmem:[#allocation2 + $0x48] sm:$0xff]
        %v2087 = vld [vmem:[#allocation2 + $0x50] sm:$0xff]
        %v2088 = vld [vmem:[#allocation2 + $0x58] sm:$0xff]
        %v2089 = vld [vmem:[#allocation2 + $0x60] sm:$0xff]
        %v2090 = vld [vmem:[#allocation2 + $0x68] sm:$0xff]
        %v2091 = vld [vmem:[#allocation2 + $0x70] sm:$0xff]
        %v2092 = vld [vmem:[#allocation2 + $0x78] sm:$0xff]
        %v2093 = vld [vmem:[#allocation2 + $0x80] sm:$0xff]
        %v2094 = vld [vmem:[#allocation2 + $0x88] sm:$0xff]
        %v2095 = vld [vmem:[#allocation2 + $0x90] sm:$0xff]
        %v2096 = vld [vmem:[#allocation2 + $0x98] sm:$0xff]
        %v2097 = vld [vmem:[#allocation2 + $0xa0] sm:$0xff]
        %v2098 = vld [vmem:[#allocation2 + $0xa8] sm:$0xff]
        %v2099 = vld [vmem:[#allocation2 + $0xb0] sm:$0xff]
        %v2100 = vld [vmem:[#allocation2 + $0xb8] sm:$0xff]
        %v2101 = vld [vmem:[#allocation2 + $0xc0] sm:$0xff]
        %v2102 = vld [vmem:[#allocation2 + $0xc8] sm:$0xff]
        %v2103 = vld [vmem:[#allocation2 + $0xd0] sm:$0xff]
        %v2104 = vld [vmem:[#allocation2 + $0xd8] sm:$0xff]
        %v2105 = vld [vmem:[#allocation2 + $0xe0] sm:$0xff]
        %v2106 = vld [vmem:[#allocation2 + $0xe8] sm:$0xff]
        %v2107 = vld [vmem:[#allocation2 + $0xf0] sm:$0xff]
        %v2108 = vld [vmem:[#allocation2 + $0xf8] sm:$0xff]
        %v2109 = vld [vmem:[#allocation2 + $0x100] sm:$0xff]
        %v2110 = vld [vmem:[#allocation2 + $0x108] sm:$0xff]
        %v2111 = vld [vmem:[#allocation2 + $0x110] sm:$0xff]
        %v2112 = vld [vmem:[#allocation2 + $0x118] sm:$0xff]
        %v2113 = vld [vmem:[#allocation2 + $0x120] sm:$0xff]
        %2114 = vst [vmem:[#allocation3 + $0x38] sm:$0xff] %v2082
        %2115 = vst [vmem:[#allocation3 + $0x80] sm:$0xff] %v2083
        %2116 = vst [vmem:[#allocation3 + $0xc8] sm:$0xff] %v2084
        %2117 = vst [vmem:[#allocation3 + $0x110] sm:$0xff] %v2085
        %2118 = vst [vmem:[#allocation3 + $0x158] sm:$0xff] %v2086
        %2119 = vst [vmem:[#allocation3 + $0x1a0] sm:$0xff] %v2087
        %2120 = vst [vmem:[#allocation3 + $0x1e8] sm:$0xff] %v2088
        %2121 = vst [vmem:[#allocation3 + $0x230] sm:$0xff] %v2089
        %2122 = vst [vmem:[#allocation3 + $0x278] sm:$0xff] %v2090
        %2123 = vst [vmem:[#allocation3 + $0x2c0] sm:$0xff] %v2091
        %2124 = vst [vmem:[#allocation3 + $0x308] sm:$0xff] %v2092
        %2125 = vst [vmem:[#allocation3 + $0x350] sm:$0xff] %v2093
        %2126 = vst [vmem:[#allocation3 + $0x398] sm:$0xff] %v2094
        %2127 = vst [vmem:[#allocation3 + $0x3e0] sm:$0xff] %v2095
        %2128 = vst [vmem:[#allocation3 + $0x428] sm:$0xff] %v2096
        %2129 = vst [vmem:[#allocation3 + $0x470] sm:$0xff] %v2097
        %2130 = vst [vmem:[#allocation3 + $0x4b8] sm:$0xff] %v2098
        %2131 = vst [vmem:[#allocation3 + $0x500] sm:$0xff] %v2099
        %2132 = vst [vmem:[#allocation3 + $0x548] sm:$0xff] %v2100
        %2133 = vst [vmem:[#allocation3 + $0x590] sm:$0xff] %v2101
        %2134 = vst [vmem:[#allocation3 + $0x5d8] sm:$0xff] %v2102
        %2135 = vst [vmem:[#allocation3 + $0x620] sm:$0xff] %v2103
        %2136 = vst [vmem:[#allocation3 + $0x668] sm:$0xff] %v2104
        %2137 = vst [vmem:[#allocation3 + $0x6b0] sm:$0xff] %v2105
        %2138 = vst [vmem:[#allocation3 + $0x6f8] sm:$0xff] %v2106
        %2139 = vst [vmem:[#allocation3 + $0x740] sm:$0xff] %v2107
        %2140 = vst [vmem:[#allocation3 + $0x788] sm:$0xff] %v2108
        %2141 = vst [vmem:[#allocation3 + $0x7d0] sm:$0xff] %v2109
        %2142 = vst [vmem:[#allocation3 + $0x818] sm:$0xff] %v2110
        %2143 = vst [vmem:[#allocation3 + $0x860] sm:$0xff] %v2111
        %2144 = vst [vmem:[#allocation3 + $0x8a8] sm:$0xff] %v2112
        %2145 = vst [vmem:[#allocation3 + $0x8f0] sm:$0xff] %v2113
        %v2146 = vld [vmem:[#allocation2 + $0x29] sm:$0xff]
        %v2147 = vld [vmem:[#allocation2 + $0x31] sm:$0xff]
        %v2148 = vld [vmem:[#allocation2 + $0x39] sm:$0xff]
        %v2149 = vld [vmem:[#allocation2 + $0x41] sm:$0xff]
        %v2150 = vld [vmem:[#allocation2 + $0x49] sm:$0xff]
        %v2151 = vld [vmem:[#allocation2 + $0x51] sm:$0xff]
        %v2152 = vld [vmem:[#allocation2 + $0x59] sm:$0xff]
        %v2153 = vld [vmem:[#allocation2 + $0x61] sm:$0xff]
        %v2154 = vld [vmem:[#allocation2 + $0x69] sm:$0xff]
        %v2155 = vld [vmem:[#allocation2 + $0x71] sm:$0xff]
        %v2156 = vld [vmem:[#allocation2 + $0x79] sm:$0xff]
        %v2157 = vld [vmem:[#allocation2 + $0x81] sm:$0xff]
        %v2158 = vld [vmem:[#allocation2 + $0x89] sm:$0xff]
        %v2159 = vld [vmem:[#allocation2 + $0x91] sm:$0xff]
        %v2160 = vld [vmem:[#allocation2 + $0x99] sm:$0xff]
        %v2161 = vld [vmem:[#allocation2 + $0xa1] sm:$0xff]
        %v2162 = vld [vmem:[#allocation2 + $0xa9] sm:$0xff]
        %v2163 = vld [vmem:[#allocation2 + $0xb1] sm:$0xff]
        %v2164 = vld [vmem:[#allocation2 + $0xb9] sm:$0xff]
        %v2165 = vld [vmem:[#allocation2 + $0xc1] sm:$0xff]
        %v2166 = vld [vmem:[#allocation2 + $0xc9] sm:$0xff]
        %v2167 = vld [vmem:[#allocation2 + $0xd1] sm:$0xff]
        %v2168 = vld [vmem:[#allocation2 + $0xd9] sm:$0xff]
        %v2169 = vld [vmem:[#allocation2 + $0xe1] sm:$0xff]
        %v2170 = vld [vmem:[#allocation2 + $0xe9] sm:$0xff]
        %v2171 = vld [vmem:[#allocation2 + $0xf1] sm:$0xff]
        %v2172 = vld [vmem:[#allocation2 + $0xf9] sm:$0xff]
        %v2173 = vld [vmem:[#allocation2 + $0x101] sm:$0xff]
        %v2174 = vld [vmem:[#allocation2 + $0x109] sm:$0xff]
        %v2175 = vld [vmem:[#allocation2 + $0x111] sm:$0xff]
        %v2176 = vld [vmem:[#allocation2 + $0x119] sm:$0xff]
        %v2177 = vld [vmem:[#allocation2 + $0x121] sm:$0xff]
        %v2178 = vsel %vm1442, %v2146, 0.0
        %v2179 = vsel %vm1443, %v2147, 0.0
        %v2180 = vsel %vm1444, %v2148, 0.0
        %v2181 = vsel %vm1445, %v2149, 0.0
        %v2182 = vsel %vm1446, %v2150, 0.0
        %v2183 = vsel %vm1447, %v2151, 0.0
        %v2184 = vsel %vm1448, %v2152, 0.0
        %v2185 = vsel %vm1449, %v2153, 0.0
        %v2186 = vsel %vm1450, %v2154, 0.0
        %v2187 = vsel %vm1451, %v2155, 0.0
        %v2188 = vsel %vm1452, %v2156, 0.0
        %v2189 = vsel %vm1453, %v2157, 0.0
        %v2190 = vsel %vm1454, %v2158, 0.0
        %v2191 = vsel %vm1455, %v2159, 0.0
        %v2192 = vsel %vm1456, %v2160, 0.0
        %v2193 = vsel %vm1457, %v2161, 0.0
        %v2194 = vsel %vm1458, %v2162, 0.0
        %v2195 = vsel %vm1459, %v2163, 0.0
        %v2196 = vsel %vm1460, %v2164, 0.0
        %v2197 = vsel %vm1461, %v2165, 0.0
        %v2198 = vsel %vm1462, %v2166, 0.0
        %v2199 = vsel %vm1463, %v2167, 0.0
        %v2200 = vsel %vm1464, %v2168, 0.0
        %v2201 = vsel %vm1465, %v2169, 0.0
        %v2202 = vsel %vm1466, %v2170, 0.0
        %v2203 = vsel %vm1467, %v2171, 0.0
        %v2204 = vsel %vm1468, %v2172, 0.0
        %v2205 = vsel %vm1469, %v2173, 0.0
        %v2206 = vsel %vm1470, %v2174, 0.0
        %v2207 = vsel %vm1471, %v2175, 0.0
        %v2208 = vsel %vm1472, %v2176, 0.0
        %v2209 = vsel %vm1473, %v2177, 0.0
        %2210 = vst [vmem:[#allocation3 + $0x40] sm:$0xff] %v2178
        %2211 = vst [vmem:[#allocation3 + $0x88] sm:$0xff] %v2179
        %2212 = vst [vmem:[#allocation3 + $0xd0] sm:$0xff] %v2180
        %2213 = vst [vmem:[#allocation3 + $0x118] sm:$0xff] %v2181
        %2214 = vst [vmem:[#allocation3 + $0x160] sm:$0xff] %v2182
        %2215 = vst [vmem:[#allocation3 + $0x1a8] sm:$0xff] %v2183
        %2216 = vst [vmem:[#allocation3 + $0x1f0] sm:$0xff] %v2184
        %2217 = vst [vmem:[#allocation3 + $0x238] sm:$0xff] %v2185
        %2218 = vst [vmem:[#allocation3 + $0x280] sm:$0xff] %v2186
        %2219 = vst [vmem:[#allocation3 + $0x2c8] sm:$0xff] %v2187
        %2220 = vst [vmem:[#allocation3 + $0x310] sm:$0xff] %v2188
        %2221 = vst [vmem:[#allocation3 + $0x358] sm:$0xff] %v2189
        %2222 = vst [vmem:[#allocation3 + $0x3a0] sm:$0xff] %v2190
        %2223 = vst [vmem:[#allocation3 + $0x3e8] sm:$0xff] %v2191
        %2224 = vst [vmem:[#allocation3 + $0x430] sm:$0xff] %v2192
        %2225 = vst [vmem:[#allocation3 + $0x478] sm:$0xff] %v2193
        %2226 = vst [vmem:[#allocation3 + $0x4c0] sm:$0xff] %v2194
        %2227 = vst [vmem:[#allocation3 + $0x508] sm:$0xff] %v2195
        %2228 = vst [vmem:[#allocation3 + $0x550] sm:$0xff] %v2196
        %2229 = vst [vmem:[#allocation3 + $0x598] sm:$0xff] %v2197
        %2230 = vst [vmem:[#allocation3 + $0x5e0] sm:$0xff] %v2198
        %2231 = vst [vmem:[#allocation3 + $0x628] sm:$0xff] %v2199
        %2232 = vst [vmem:[#allocation3 + $0x670] sm:$0xff] %v2200
        %2233 = vst [vmem:[#allocation3 + $0x6b8] sm:$0xff] %v2201
        %2234 = vst [vmem:[#allocation3 + $0x700] sm:$0xff] %v2202
        %2235 = vst [vmem:[#allocation3 + $0x748] sm:$0xff] %v2203
        %2236 = vst [vmem:[#allocation3 + $0x790] sm:$0xff] %v2204
        %2237 = vst [vmem:[#allocation3 + $0x7d8] sm:$0xff] %v2205
        %2238 = vst [vmem:[#allocation3 + $0x820] sm:$0xff] %v2206
        %2239 = vst [vmem:[#allocation3 + $0x868] sm:$0xff] %v2207
        %2240 = vst [vmem:[#allocation3 + $0x8b0] sm:$0xff] %v2208
        %2241 = vst [vmem:[#allocation3 + $0x8f8] sm:$0xff] %v2209
        %v2242 = vld [vmem:[#allocation3] sm:$0xff]
        %v2243 = vld [vmem:[#allocation3 + $0x8] sm:$0xff]
        %v2244 = vld [vmem:[#allocation3 + $0x10] sm:$0xff]
        %v2245 = vld [vmem:[#allocation3 + $0x18] sm:$0xff]
        %v2246 = vld [vmem:[#allocation3 + $0x20] sm:$0xff]
        %v2247 = vld [vmem:[#allocation3 + $0x28] sm:$0xff]
        %v2248 = vld [vmem:[#allocation3 + $0x30] sm:$0xff]
        %v2249 = vld [vmem:[#allocation3 + $0x38] sm:$0xff]
        %v2250 = vld [vmem:[#allocation3 + $0x40] sm:$0xff]
        %v2251 = vld [vmem:[#allocation3 + $0x48] sm:$0xff]
        %v2252 = vld [vmem:[#allocation3 + $0x50] sm:$0xff]
        %v2253 = vld [vmem:[#allocation3 + $0x58] sm:$0xff]
        %v2254 = vld [vmem:[#allocation3 + $0x60] sm:$0xff]
        %v2255 = vld [vmem:[#allocation3 + $0x68] sm:$0xff]
        %v2256 = vld [vmem:[#allocation3 + $0x70] sm:$0xff]
        %v2257 = vld [vmem:[#allocation3 + $0x78] sm:$0xff]
        %v2258 = vld [vmem:[#allocation3 + $0x80] sm:$0xff]
        %v2259 = vld [vmem:[#allocation3 + $0x88] sm:$0xff]
        %v2260 = vld [vmem:[#allocation3 + $0x90] sm:$0xff]
        %v2261 = vld [vmem:[#allocation3 + $0x98] sm:$0xff]
        %v2262 = vld [vmem:[#allocation3 + $0xa0] sm:$0xff]
        %v2263 = vld [vmem:[#allocation3 + $0xa8] sm:$0xff]
        %v2264 = vld [vmem:[#allocation3 + $0xb0] sm:$0xff]
        %v2265 = vld [vmem:[#allocation3 + $0xb8] sm:$0xff]
        %v2266 = vld [vmem:[#allocation3 + $0xc0] sm:$0xff]
        %v2267 = vld [vmem:[#allocation3 + $0xc8] sm:$0xff]
        %v2268 = vld [vmem:[#allocation3 + $0xd0] sm:$0xff]
        %v2269 = vld [vmem:[#allocation3 + $0xd8] sm:$0xff]
        %v2270 = vld [vmem:[#allocation3 + $0xe0] sm:$0xff]
        %v2271 = vld [vmem:[#allocation3 + $0xe8] sm:$0xff]
        %v2272 = vld [vmem:[#allocation3 + $0xf0] sm:$0xff]
        %v2273 = vld [vmem:[#allocation3 + $0xf8] sm:$0xff]
        %v2274 = vld [vmem:[#allocation3 + $0x100] sm:$0xff]
        %v2275 = vld [vmem:[#allocation3 + $0x108] sm:$0xff]
        %v2276 = vld [vmem:[#allocation3 + $0x110] sm:$0xff]
        %v2277 = vld [vmem:[#allocation3 + $0x118] sm:$0xff]
        %v2278 = vld [vmem:[#allocation3 + $0x120] sm:$0xff]
        %v2279 = vld [vmem:[#allocation3 + $0x128] sm:$0xff]
        %v2280 = vld [vmem:[#allocation3 + $0x130] sm:$0xff]
        %v2281 = vld [vmem:[#allocation3 + $0x138] sm:$0xff]
        %v2282 = vld [vmem:[#allocation3 + $0x140] sm:$0xff]
        %v2283 = vld [vmem:[#allocation3 + $0x148] sm:$0xff]
        %v2284 = vld [vmem:[#allocation3 + $0x150] sm:$0xff]
        %v2285 = vld [vmem:[#allocation3 + $0x158] sm:$0xff]
        %v2286 = vld [vmem:[#allocation3 + $0x160] sm:$0xff]
        %v2287 = vld [vmem:[#allocation3 + $0x168] sm:$0xff]
        %v2288 = vld [vmem:[#allocation3 + $0x170] sm:$0xff]
        %v2289 = vld [vmem:[#allocation3 + $0x178] sm:$0xff]
        %v2290 = vld [vmem:[#allocation3 + $0x180] sm:$0xff]
        %v2291 = vld [vmem:[#allocation3 + $0x188] sm:$0xff]
        %v2292 = vld [vmem:[#allocation3 + $0x190] sm:$0xff]
        %v2293 = vld [vmem:[#allocation3 + $0x198] sm:$0xff]
        %v2294 = vld [vmem:[#allocation3 + $0x1a0] sm:$0xff]
        %v2295 = vld [vmem:[#allocation3 + $0x1a8] sm:$0xff]
        %v2296 = vld [vmem:[#allocation3 + $0x1b0] sm:$0xff]
        %v2297 = vld [vmem:[#allocation3 + $0x1b8] sm:$0xff]
        %v2298 = vld [vmem:[#allocation3 + $0x1c0] sm:$0xff]
        %v2299 = vld [vmem:[#allocation3 + $0x1c8] sm:$0xff]
        %v2300 = vld [vmem:[#allocation3 + $0x1d0] sm:$0xff]
        %v2301 = vld [vmem:[#allocation3 + $0x1d8] sm:$0xff]
        %v2302 = vld [vmem:[#allocation3 + $0x1e0] sm:$0xff]
        %v2303 = vld [vmem:[#allocation3 + $0x1e8] sm:$0xff]
        %v2304 = vld [vmem:[#allocation3 + $0x1f0] sm:$0xff]
        %v2305 = vld [vmem:[#allocation3 + $0x1f8] sm:$0xff]
        %v2306 = vld [vmem:[#allocation3 + $0x200] sm:$0xff]
        %v2307 = vld [vmem:[#allocation3 + $0x208] sm:$0xff]
        %v2308 = vld [vmem:[#allocation3 + $0x210] sm:$0xff]
        %v2309 = vld [vmem:[#allocation3 + $0x218] sm:$0xff]
        %v2310 = vld [vmem:[#allocation3 + $0x220] sm:$0xff]
        %v2311 = vld [vmem:[#allocation3 + $0x228] sm:$0xff]
        %v2312 = vld [vmem:[#allocation3 + $0x230] sm:$0xff]
        %v2313 = vld [vmem:[#allocation3 + $0x238] sm:$0xff]
        %v2314 = vld [vmem:[#allocation3 + $0x240] sm:$0xff]
        %v2315 = vld [vmem:[#allocation3 + $0x248] sm:$0xff]
        %v2316 = vld [vmem:[#allocation3 + $0x250] sm:$0xff]
        %v2317 = vld [vmem:[#allocation3 + $0x258] sm:$0xff]
        %v2318 = vld [vmem:[#allocation3 + $0x260] sm:$0xff]
        %v2319 = vld [vmem:[#allocation3 + $0x268] sm:$0xff]
        %v2320 = vld [vmem:[#allocation3 + $0x270] sm:$0xff]
        %v2321 = vld [vmem:[#allocation3 + $0x278] sm:$0xff]
        %v2322 = vld [vmem:[#allocation3 + $0x280] sm:$0xff]
        %v2323 = vld [vmem:[#allocation3 + $0x288] sm:$0xff]
        %v2324 = vld [vmem:[#allocation3 + $0x290] sm:$0xff]
        %v2325 = vld [vmem:[#allocation3 + $0x298] sm:$0xff]
        %v2326 = vld [vmem:[#allocation3 + $0x2a0] sm:$0xff]
        %v2327 = vld [vmem:[#allocation3 + $0x2a8] sm:$0xff]
        %v2328 = vld [vmem:[#allocation3 + $0x2b0] sm:$0xff]
        %v2329 = vld [vmem:[#allocation3 + $0x2b8] sm:$0xff]
        %v2330 = vld [vmem:[#allocation3 + $0x2c0] sm:$0xff]
        %v2331 = vld [vmem:[#allocation3 + $0x2c8] sm:$0xff]
        %v2332 = vld [vmem:[#allocation3 + $0x2d0] sm:$0xff]
        %v2333 = vld [vmem:[#allocation3 + $0x2d8] sm:$0xff]
        %v2334 = vld [vmem:[#allocation3 + $0x2e0] sm:$0xff]
        %v2335 = vld [vmem:[#allocation3 + $0x2e8] sm:$0xff]
        %v2336 = vld [vmem:[#allocation3 + $0x2f0] sm:$0xff]
        %v2337 = vld [vmem:[#allocation3 + $0x2f8] sm:$0xff]
        %v2338 = vld [vmem:[#allocation3 + $0x300] sm:$0xff]
        %v2339 = vld [vmem:[#allocation3 + $0x308] sm:$0xff]
        %v2340 = vld [vmem:[#allocation3 + $0x310] sm:$0xff]
        %v2341 = vld [vmem:[#allocation3 + $0x318] sm:$0xff]
        %v2342 = vld [vmem:[#allocation3 + $0x320] sm:$0xff]
        %v2343 = vld [vmem:[#allocation3 + $0x328] sm:$0xff]
        %v2344 = vld [vmem:[#allocation3 + $0x330] sm:$0xff]
        %v2345 = vld [vmem:[#allocation3 + $0x338] sm:$0xff]
        %v2346 = vld [vmem:[#allocation3 + $0x340] sm:$0xff]
        %v2347 = vld [vmem:[#allocation3 + $0x348] sm:$0xff]
        %v2348 = vld [vmem:[#allocation3 + $0x350] sm:$0xff]
        %v2349 = vld [vmem:[#allocation3 + $0x358] sm:$0xff]
        %v2350 = vld [vmem:[#allocation3 + $0x360] sm:$0xff]
        %v2351 = vld [vmem:[#allocation3 + $0x368] sm:$0xff]
        %v2352 = vld [vmem:[#allocation3 + $0x370] sm:$0xff]
        %v2353 = vld [vmem:[#allocation3 + $0x378] sm:$0xff]
        %v2354 = vld [vmem:[#allocation3 + $0x380] sm:$0xff]
        %v2355 = vld [vmem:[#allocation3 + $0x388] sm:$0xff]
        %v2356 = vld [vmem:[#allocation3 + $0x390] sm:$0xff]
        %v2357 = vld [vmem:[#allocation3 + $0x398] sm:$0xff]
        %v2358 = vld [vmem:[#allocation3 + $0x3a0] sm:$0xff]
        %v2359 = vld [vmem:[#allocation3 + $0x3a8] sm:$0xff]
        %v2360 = vld [vmem:[#allocation3 + $0x3b0] sm:$0xff]
        %v2361 = vld [vmem:[#allocation3 + $0x3b8] sm:$0xff]
        %v2362 = vld [vmem:[#allocation3 + $0x3c0] sm:$0xff]
        %v2363 = vld [vmem:[#allocation3 + $0x3c8] sm:$0xff]
        %v2364 = vld [vmem:[#allocation3 + $0x3d0] sm:$0xff]
        %v2365 = vld [vmem:[#allocation3 + $0x3d8] sm:$0xff]
        %v2366 = vld [vmem:[#allocation3 + $0x3e0] sm:$0xff]
        %v2367 = vld [vmem:[#allocation3 + $0x3e8] sm:$0xff]
        %v2368 = vld [vmem:[#allocation3 + $0x3f0] sm:$0xff]
        %v2369 = vld [vmem:[#allocation3 + $0x3f8] sm:$0xff]
        %v2370 = vld [vmem:[#allocation3 + $0x400] sm:$0xff]
        %v2371 = vld [vmem:[#allocation3 + $0x408] sm:$0xff]
        %v2372 = vld [vmem:[#allocation3 + $0x410] sm:$0xff]
        %v2373 = vld [vmem:[#allocation3 + $0x418] sm:$0xff]
        %v2374 = vld [vmem:[#allocation3 + $0x420] sm:$0xff]
        %v2375 = vld [vmem:[#allocation3 + $0x428] sm:$0xff]
        %v2376 = vld [vmem:[#allocation3 + $0x430] sm:$0xff]
        %v2377 = vld [vmem:[#allocation3 + $0x438] sm:$0xff]
        %v2378 = vld [vmem:[#allocation3 + $0x440] sm:$0xff]
        %v2379 = vld [vmem:[#allocation3 + $0x448] sm:$0xff]
        %v2380 = vld [vmem:[#allocation3 + $0x450] sm:$0xff]
        %v2381 = vld [vmem:[#allocation3 + $0x458] sm:$0xff]
        %v2382 = vld [vmem:[#allocation3 + $0x460] sm:$0xff]
        %v2383 = vld [vmem:[#allocation3 + $0x468] sm:$0xff]
        %v2384 = vld [vmem:[#allocation3 + $0x470] sm:$0xff]
        %v2385 = vld [vmem:[#allocation3 + $0x478] sm:$0xff]
        %v2386 = vld [vmem:[#allocation3 + $0x480] sm:$0xff]
        %v2387 = vld [vmem:[#allocation3 + $0x488] sm:$0xff]
        %v2388 = vld [vmem:[#allocation3 + $0x490] sm:$0xff]
        %v2389 = vld [vmem:[#allocation3 + $0x498] sm:$0xff]
        %v2390 = vld [vmem:[#allocation3 + $0x4a0] sm:$0xff]
        %v2391 = vld [vmem:[#allocation3 + $0x4a8] sm:$0xff]
        %v2392 = vld [vmem:[#allocation3 + $0x4b0] sm:$0xff]
        %v2393 = vld [vmem:[#allocation3 + $0x4b8] sm:$0xff]
        %v2394 = vld [vmem:[#allocation3 + $0x4c0] sm:$0xff]
        %v2395 = vld [vmem:[#allocation3 + $0x4c8] sm:$0xff]
        %v2396 = vld [vmem:[#allocation3 + $0x4d0] sm:$0xff]
        %v2397 = vld [vmem:[#allocation3 + $0x4d8] sm:$0xff]
        %v2398 = vld [vmem:[#allocation3 + $0x4e0] sm:$0xff]
        %v2399 = vld [vmem:[#allocation3 + $0x4e8] sm:$0xff]
        %v2400 = vld [vmem:[#allocation3 + $0x4f0] sm:$0xff]
        %v2401 = vld [vmem:[#allocation3 + $0x4f8] sm:$0xff]
        %v2402 = vld [vmem:[#allocation3 + $0x500] sm:$0xff]
        %v2403 = vld [vmem:[#allocation3 + $0x508] sm:$0xff]
        %v2404 = vld [vmem:[#allocation3 + $0x510] sm:$0xff]
        %v2405 = vld [vmem:[#allocation3 + $0x518] sm:$0xff]
        %v2406 = vld [vmem:[#allocation3 + $0x520] sm:$0xff]
        %v2407 = vld [vmem:[#allocation3 + $0x528] sm:$0xff]
        %v2408 = vld [vmem:[#allocation3 + $0x530] sm:$0xff]
        %v2409 = vld [vmem:[#allocation3 + $0x538] sm:$0xff]
        %v2410 = vld [vmem:[#allocation3 + $0x540] sm:$0xff]
        %v2411 = vld [vmem:[#allocation3 + $0x548] sm:$0xff]
        %v2412 = vld [vmem:[#allocation3 + $0x550] sm:$0xff]
        %v2413 = vld [vmem:[#allocation3 + $0x558] sm:$0xff]
        %v2414 = vld [vmem:[#allocation3 + $0x560] sm:$0xff]
        %v2415 = vld [vmem:[#allocation3 + $0x568] sm:$0xff]
        %v2416 = vld [vmem:[#allocation3 + $0x570] sm:$0xff]
        %v2417 = vld [vmem:[#allocation3 + $0x578] sm:$0xff]
        %v2418 = vld [vmem:[#allocation3 + $0x580] sm:$0xff]
        %v2419 = vld [vmem:[#allocation3 + $0x588] sm:$0xff]
        %v2420 = vld [vmem:[#allocation3 + $0x590] sm:$0xff]
        %v2421 = vld [vmem:[#allocation3 + $0x598] sm:$0xff]
        %v2422 = vld [vmem:[#allocation3 + $0x5a0] sm:$0xff]
        %v2423 = vld [vmem:[#allocation3 + $0x5a8] sm:$0xff]
        %v2424 = vld [vmem:[#allocation3 + $0x5b0] sm:$0xff]
        %v2425 = vld [vmem:[#allocation3 + $0x5b8] sm:$0xff]
        %v2426 = vld [vmem:[#allocation3 + $0x5c0] sm:$0xff]
        %v2427 = vld [vmem:[#allocation3 + $0x5c8] sm:$0xff]
        %v2428 = vld [vmem:[#allocation3 + $0x5d0] sm:$0xff]
        %v2429 = vld [vmem:[#allocation3 + $0x5d8] sm:$0xff]
        %v2430 = vld [vmem:[#allocation3 + $0x5e0] sm:$0xff]
        %v2431 = vld [vmem:[#allocation3 + $0x5e8] sm:$0xff]
        %v2432 = vld [vmem:[#allocation3 + $0x5f0] sm:$0xff]
        %v2433 = vld [vmem:[#allocation3 + $0x5f8] sm:$0xff]
        %v2434 = vld [vmem:[#allocation3 + $0x600] sm:$0xff]
        %v2435 = vld [vmem:[#allocation3 + $0x608] sm:$0xff]
        %v2436 = vld [vmem:[#allocation3 + $0x610] sm:$0xff]
        %v2437 = vld [vmem:[#allocation3 + $0x618] sm:$0xff]
        %v2438 = vld [vmem:[#allocation3 + $0x620] sm:$0xff]
        %v2439 = vld [vmem:[#allocation3 + $0x628] sm:$0xff]
        %v2440 = vld [vmem:[#allocation3 + $0x630] sm:$0xff]
        %v2441 = vld [vmem:[#allocation3 + $0x638] sm:$0xff]
        %v2442 = vld [vmem:[#allocation3 + $0x640] sm:$0xff]
        %v2443 = vld [vmem:[#allocation3 + $0x648] sm:$0xff]
        %v2444 = vld [vmem:[#allocation3 + $0x650] sm:$0xff]
        %v2445 = vld [vmem:[#allocation3 + $0x658] sm:$0xff]
        %v2446 = vld [vmem:[#allocation3 + $0x660] sm:$0xff]
        %v2447 = vld [vmem:[#allocation3 + $0x668] sm:$0xff]
        %v2448 = vld [vmem:[#allocation3 + $0x670] sm:$0xff]
        %v2449 = vld [vmem:[#allocation3 + $0x678] sm:$0xff]
        %v2450 = vld [vmem:[#allocation3 + $0x680] sm:$0xff]
        %v2451 = vld [vmem:[#allocation3 + $0x688] sm:$0xff]
        %v2452 = vld [vmem:[#allocation3 + $0x690] sm:$0xff]
        %v2453 = vld [vmem:[#allocation3 + $0x698] sm:$0xff]
        %v2454 = vld [vmem:[#allocation3 + $0x6a0] sm:$0xff]
        %v2455 = vld [vmem:[#allocation3 + $0x6a8] sm:$0xff]
        %v2456 = vld [vmem:[#allocation3 + $0x6b0] sm:$0xff]
        %v2457 = vld [vmem:[#allocation3 + $0x6b8] sm:$0xff]
        %v2458 = vld [vmem:[#allocation3 + $0x6c0] sm:$0xff]
        %v2459 = vld [vmem:[#allocation3 + $0x6c8] sm:$0xff]
        %v2460 = vld [vmem:[#allocation3 + $0x6d0] sm:$0xff]
        %v2461 = vld [vmem:[#allocation3 + $0x6d8] sm:$0xff]
        %v2462 = vld [vmem:[#allocation3 + $0x6e0] sm:$0xff]
        %v2463 = vld [vmem:[#allocation3 + $0x6e8] sm:$0xff]
        %v2464 = vld [vmem:[#allocation3 + $0x6f0] sm:$0xff]
        %v2465 = vld [vmem:[#allocation3 + $0x6f8] sm:$0xff]
        %v2466 = vld [vmem:[#allocation3 + $0x700] sm:$0xff]
        %v2467 = vld [vmem:[#allocation3 + $0x708] sm:$0xff]
        %v2468 = vld [vmem:[#allocation3 + $0x710] sm:$0xff]
        %v2469 = vld [vmem:[#allocation3 + $0x718] sm:$0xff]
        %v2470 = vld [vmem:[#allocation3 + $0x720] sm:$0xff]
        %v2471 = vld [vmem:[#allocation3 + $0x728] sm:$0xff]
        %v2472 = vld [vmem:[#allocation3 + $0x730] sm:$0xff]
        %v2473 = vld [vmem:[#allocation3 + $0x738] sm:$0xff]
        %v2474 = vld [vmem:[#allocation3 + $0x740] sm:$0xff]
        %v2475 = vld [vmem:[#allocation3 + $0x748] sm:$0xff]
        %v2476 = vld [vmem:[#allocation3 + $0x750] sm:$0xff]
        %v2477 = vld [vmem:[#allocation3 + $0x758] sm:$0xff]
        %v2478 = vld [vmem:[#allocation3 + $0x760] sm:$0xff]
        %v2479 = vld [vmem:[#allocation3 + $0x768] sm:$0xff]
        %v2480 = vld [vmem:[#allocation3 + $0x770] sm:$0xff]
        %v2481 = vld [vmem:[#allocation3 + $0x778] sm:$0xff]
        %v2482 = vld [vmem:[#allocation3 + $0x780] sm:$0xff]
        %v2483 = vld [vmem:[#allocation3 + $0x788] sm:$0xff]
        %v2484 = vld [vmem:[#allocation3 + $0x790] sm:$0xff]
        %v2485 = vld [vmem:[#allocation3 + $0x798] sm:$0xff]
        %v2486 = vld [vmem:[#allocation3 + $0x7a0] sm:$0xff]
        %v2487 = vld [vmem:[#allocation3 + $0x7a8] sm:$0xff]
        %v2488 = vld [vmem:[#allocation3 + $0x7b0] sm:$0xff]
        %v2489 = vld [vmem:[#allocation3 + $0x7b8] sm:$0xff]
        %v2490 = vld [vmem:[#allocation3 + $0x7c0] sm:$0xff]
        %v2491 = vld [vmem:[#allocation3 + $0x7c8] sm:$0xff]
        %v2492 = vld [vmem:[#allocation3 + $0x7d0] sm:$0xff]
        %v2493 = vld [vmem:[#allocation3 + $0x7d8] sm:$0xff]
        %v2494 = vld [vmem:[#allocation3 + $0x7e0] sm:$0xff]
        %v2495 = vld [vmem:[#allocation3 + $0x7e8] sm:$0xff]
        %v2496 = vld [vmem:[#allocation3 + $0x7f0] sm:$0xff]
        %v2497 = vld [vmem:[#allocation3 + $0x7f8] sm:$0xff]
        %v2498 = vld [vmem:[#allocation3 + $0x800] sm:$0xff]
        %v2499 = vld [vmem:[#allocation3 + $0x808] sm:$0xff]
        %v2500 = vld [vmem:[#allocation3 + $0x810] sm:$0xff]
        %v2501 = vld [vmem:[#allocation3 + $0x818] sm:$0xff]
        %v2502 = vld [vmem:[#allocation3 + $0x820] sm:$0xff]
        %v2503 = vld [vmem:[#allocation3 + $0x828] sm:$0xff]
        %v2504 = vld [vmem:[#allocation3 + $0x830] sm:$0xff]
        %v2505 = vld [vmem:[#allocation3 + $0x838] sm:$0xff]
        %v2506 = vld [vmem:[#allocation3 + $0x840] sm:$0xff]
        %v2507 = vld [vmem:[#allocation3 + $0x848] sm:$0xff]
        %v2508 = vld [vmem:[#allocation3 + $0x850] sm:$0xff]
        %v2509 = vld [vmem:[#allocation3 + $0x858] sm:$0xff]
        %v2510 = vld [vmem:[#allocation3 + $0x860] sm:$0xff]
        %v2511 = vld [vmem:[#allocation3 + $0x868] sm:$0xff]
        %v2512 = vld [vmem:[#allocation3 + $0x870] sm:$0xff]
        %v2513 = vld [vmem:[#allocation3 + $0x878] sm:$0xff]
        %v2514 = vld [vmem:[#allocation3 + $0x880] sm:$0xff]
        %v2515 = vld [vmem:[#allocation3 + $0x888] sm:$0xff]
        %v2516 = vld [vmem:[#allocation3 + $0x890] sm:$0xff]
        %v2517 = vld [vmem:[#allocation3 + $0x898] sm:$0xff]
        %v2518 = vld [vmem:[#allocation3 + $0x8a0] sm:$0xff]
        %v2519 = vld [vmem:[#allocation3 + $0x8a8] sm:$0xff]
        %v2520 = vld [vmem:[#allocation3 + $0x8b0] sm:$0xff]
        %v2521 = vld [vmem:[#allocation3 + $0x8b8] sm:$0xff]
        %v2522 = vld [vmem:[#allocation3 + $0x8c0] sm:$0xff]
        %v2523 = vld [vmem:[#allocation3 + $0x8c8] sm:$0xff]
        %v2524 = vld [vmem:[#allocation3 + $0x8d0] sm:$0xff]
        %v2525 = vld [vmem:[#allocation3 + $0x8d8] sm:$0xff]
        %v2526 = vld [vmem:[#allocation3 + $0x8e0] sm:$0xff]
        %v2527 = vld [vmem:[#allocation3 + $0x8e8] sm:$0xff]
        %v2528 = vld [vmem:[#allocation3 + $0x8f0] sm:$0xff]
        %v2529 = vld [vmem:[#allocation3 + $0x8f8] sm:$0xff]
        %v2530 = vld [vmem:[#allocation4] sm:$0xff]
        %v2531 = vld [vmem:[#allocation4 + $0x8] sm:$0xff]
        %v2532 = vld [vmem:[#allocation4 + $0x10] sm:$0xff]
        %v2533 = vld [vmem:[#allocation4 + $0x18] sm:$0xff]
        %v2534 = vld [vmem:[#allocation4 + $0x20] sm:$0xff]
        %v2535 = vld [vmem:[#allocation4 + $0x28] sm:$0xff]
        %v2536 = vld [vmem:[#allocation4 + $0x30] sm:$0xff]
        %v2537 = vld [vmem:[#allocation4 + $0x38] sm:$0xff]
        %v2538 = vld [vmem:[#allocation4 + $0x40] sm:$0xff]
        %v2539 = vld [vmem:[#allocation4 + $0x48] sm:$0xff]
        %v2540 = vld [vmem:[#allocation4 + $0x50] sm:$0xff]
        %v2541 = vld [vmem:[#allocation4 + $0x58] sm:$0xff]
        %v2542 = vld [vmem:[#allocation4 + $0x60] sm:$0xff]
        %v2543 = vld [vmem:[#allocation4 + $0x68] sm:$0xff]
        %v2544 = vld [vmem:[#allocation4 + $0x70] sm:$0xff]
        %v2545 = vld [vmem:[#allocation4 + $0x78] sm:$0xff]
        %v2546 = vld [vmem:[#allocation4 + $0x80] sm:$0xff]
        %v2547 = vld [vmem:[#allocation4 + $0x88] sm:$0xff]
        %v2548 = vld [vmem:[#allocation4 + $0x90] sm:$0xff]
        %v2549 = vld [vmem:[#allocation4 + $0x98] sm:$0xff]
        %v2550 = vld [vmem:[#allocation4 + $0xa0] sm:$0xff]
        %v2551 = vld [vmem:[#allocation4 + $0xa8] sm:$0xff]
        %v2552 = vld [vmem:[#allocation4 + $0xb0] sm:$0xff]
        %v2553 = vld [vmem:[#allocation4 + $0xb8] sm:$0xff]
        %v2554 = vld [vmem:[#allocation4 + $0xc0] sm:$0xff]
        %v2555 = vld [vmem:[#allocation4 + $0xc8] sm:$0xff]
        %v2556 = vld [vmem:[#allocation4 + $0xd0] sm:$0xff]
        %v2557 = vld [vmem:[#allocation4 + $0xd8] sm:$0xff]
        %v2558 = vld [vmem:[#allocation4 + $0xe0] sm:$0xff]
        %v2559 = vld [vmem:[#allocation4 + $0xe8] sm:$0xff]
        %v2560 = vld [vmem:[#allocation4 + $0xf0] sm:$0xff]
        %v2561 = vld [vmem:[#allocation4 + $0xf8] sm:$0xff]
        %v2562 = vld [vmem:[#allocation4 + $0x100] sm:$0xff]
        %v2563 = vld [vmem:[#allocation4 + $0x108] sm:$0xff]
        %v2564 = vld [vmem:[#allocation4 + $0x110] sm:$0xff]
        %v2565 = vld [vmem:[#allocation4 + $0x118] sm:$0xff]
        %v2566 = vld [vmem:[#allocation4 + $0x120] sm:$0xff]
        %v2567 = vld [vmem:[#allocation4 + $0x128] sm:$0xff]
        %v2568 = vld [vmem:[#allocation4 + $0x130] sm:$0xff]
        %v2569 = vld [vmem:[#allocation4 + $0x138] sm:$0xff]
        %v2570 = vld [vmem:[#allocation4 + $0x140] sm:$0xff]
        %v2571 = vld [vmem:[#allocation4 + $0x148] sm:$0xff]
        %v2572 = vld [vmem:[#allocation4 + $0x150] sm:$0xff]
        %v2573 = vld [vmem:[#allocation4 + $0x158] sm:$0xff]
        %v2574 = vld [vmem:[#allocation4 + $0x160] sm:$0xff]
        %v2575 = vld [vmem:[#allocation4 + $0x168] sm:$0xff]
        %v2576 = vld [vmem:[#allocation4 + $0x170] sm:$0xff]
        %v2577 = vld [vmem:[#allocation4 + $0x178] sm:$0xff]
        %v2578 = vld [vmem:[#allocation4 + $0x180] sm:$0xff]
        %v2579 = vld [vmem:[#allocation4 + $0x188] sm:$0xff]
        %v2580 = vld [vmem:[#allocation4 + $0x190] sm:$0xff]
        %v2581 = vld [vmem:[#allocation4 + $0x198] sm:$0xff]
        %v2582 = vld [vmem:[#allocation4 + $0x1a0] sm:$0xff]
        %v2583 = vld [vmem:[#allocation4 + $0x1a8] sm:$0xff]
        %v2584 = vld [vmem:[#allocation4 + $0x1b0] sm:$0xff]
        %v2585 = vld [vmem:[#allocation4 + $0x1b8] sm:$0xff]
        %v2586 = vld [vmem:[#allocation4 + $0x1c0] sm:$0xff]
        %v2587 = vld [vmem:[#allocation4 + $0x1c8] sm:$0xff]
        %v2588 = vld [vmem:[#allocation4 + $0x1d0] sm:$0xff]
        %v2589 = vld [vmem:[#allocation4 + $0x1d8] sm:$0xff]
        %v2590 = vld [vmem:[#allocation4 + $0x1e0] sm:$0xff]
        %v2591 = vld [vmem:[#allocation4 + $0x1e8] sm:$0xff]
        %v2592 = vld [vmem:[#allocation4 + $0x1f0] sm:$0xff]
        %v2593 = vld [vmem:[#allocation4 + $0x1f8] sm:$0xff]
        %v2594 = vld [vmem:[#allocation4 + $0x200] sm:$0xff]
        %v2595 = vld [vmem:[#allocation4 + $0x208] sm:$0xff]
        %v2596 = vld [vmem:[#allocation4 + $0x210] sm:$0xff]
        %v2597 = vld [vmem:[#allocation4 + $0x218] sm:$0xff]
        %v2598 = vld [vmem:[#allocation4 + $0x220] sm:$0xff]
        %v2599 = vld [vmem:[#allocation4 + $0x228] sm:$0xff]
        %v2600 = vld [vmem:[#allocation4 + $0x230] sm:$0xff]
        %v2601 = vld [vmem:[#allocation4 + $0x238] sm:$0xff]
        %v2602 = vld [vmem:[#allocation4 + $0x240] sm:$0xff]
        %v2603 = vld [vmem:[#allocation4 + $0x248] sm:$0xff]
        %v2604 = vld [vmem:[#allocation4 + $0x250] sm:$0xff]
        %v2605 = vld [vmem:[#allocation4 + $0x258] sm:$0xff]
        %v2606 = vld [vmem:[#allocation4 + $0x260] sm:$0xff]
        %v2607 = vld [vmem:[#allocation4 + $0x268] sm:$0xff]
        %v2608 = vld [vmem:[#allocation4 + $0x270] sm:$0xff]
        %v2609 = vld [vmem:[#allocation4 + $0x278] sm:$0xff]
        %v2610 = vld [vmem:[#allocation4 + $0x280] sm:$0xff]
        %v2611 = vld [vmem:[#allocation4 + $0x288] sm:$0xff]
        %v2612 = vld [vmem:[#allocation4 + $0x290] sm:$0xff]
        %v2613 = vld [vmem:[#allocation4 + $0x298] sm:$0xff]
        %v2614 = vld [vmem:[#allocation4 + $0x2a0] sm:$0xff]
        %v2615 = vld [vmem:[#allocation4 + $0x2a8] sm:$0xff]
        %v2616 = vld [vmem:[#allocation4 + $0x2b0] sm:$0xff]
        %v2617 = vld [vmem:[#allocation4 + $0x2b8] sm:$0xff]
        %v2618 = vld [vmem:[#allocation4 + $0x2c0] sm:$0xff]
        %v2619 = vld [vmem:[#allocation4 + $0x2c8] sm:$0xff]
        %v2620 = vld [vmem:[#allocation4 + $0x2d0] sm:$0xff]
        %v2621 = vld [vmem:[#allocation4 + $0x2d8] sm:$0xff]
        %v2622 = vld [vmem:[#allocation4 + $0x2e0] sm:$0xff]
        %v2623 = vld [vmem:[#allocation4 + $0x2e8] sm:$0xff]
        %v2624 = vld [vmem:[#allocation4 + $0x2f0] sm:$0xff]
        %v2625 = vld [vmem:[#allocation4 + $0x2f8] sm:$0xff]
        %v2626 = vld [vmem:[#allocation4 + $0x300] sm:$0xff]
        %v2627 = vld [vmem:[#allocation4 + $0x308] sm:$0xff]
        %v2628 = vld [vmem:[#allocation4 + $0x310] sm:$0xff]
        %v2629 = vld [vmem:[#allocation4 + $0x318] sm:$0xff]
        %v2630 = vld [vmem:[#allocation4 + $0x320] sm:$0xff]
        %v2631 = vld [vmem:[#allocation4 + $0x328] sm:$0xff]
        %v2632 = vld [vmem:[#allocation4 + $0x330] sm:$0xff]
        %v2633 = vld [vmem:[#allocation4 + $0x338] sm:$0xff]
        %v2634 = vld [vmem:[#allocation4 + $0x340] sm:$0xff]
        %v2635 = vld [vmem:[#allocation4 + $0x348] sm:$0xff]
        %v2636 = vld [vmem:[#allocation4 + $0x350] sm:$0xff]
        %v2637 = vld [vmem:[#allocation4 + $0x358] sm:$0xff]
        %v2638 = vld [vmem:[#allocation4 + $0x360] sm:$0xff]
        %v2639 = vld [vmem:[#allocation4 + $0x368] sm:$0xff]
        %v2640 = vld [vmem:[#allocation4 + $0x370] sm:$0xff]
        %v2641 = vld [vmem:[#allocation4 + $0x378] sm:$0xff]
        %v2642 = vld [vmem:[#allocation4 + $0x380] sm:$0xff]
        %v2643 = vld [vmem:[#allocation4 + $0x388] sm:$0xff]
        %v2644 = vld [vmem:[#allocation4 + $0x390] sm:$0xff]
        %v2645 = vld [vmem:[#allocation4 + $0x398] sm:$0xff]
        %v2646 = vld [vmem:[#allocation4 + $0x3a0] sm:$0xff]
        %v2647 = vld [vmem:[#allocation4 + $0x3a8] sm:$0xff]
        %v2648 = vld [vmem:[#allocation4 + $0x3b0] sm:$0xff]
        %v2649 = vld [vmem:[#allocation4 + $0x3b8] sm:$0xff]
        %v2650 = vld [vmem:[#allocation4 + $0x3c0] sm:$0xff]
        %v2651 = vld [vmem:[#allocation4 + $0x3c8] sm:$0xff]
        %v2652 = vld [vmem:[#allocation4 + $0x3d0] sm:$0xff]
        %v2653 = vld [vmem:[#allocation4 + $0x3d8] sm:$0xff]
        %v2654 = vld [vmem:[#allocation4 + $0x3e0] sm:$0xff]
        %v2655 = vld [vmem:[#allocation4 + $0x3e8] sm:$0xff]
        %v2656 = vld [vmem:[#allocation4 + $0x3f0] sm:$0xff]
        %v2657 = vld [vmem:[#allocation4 + $0x3f8] sm:$0xff]
        %v2658 = vld [vmem:[#allocation4 + $0x400] sm:$0xff]
        %v2659 = vld [vmem:[#allocation4 + $0x408] sm:$0xff]
        %v2660 = vld [vmem:[#allocation4 + $0x410] sm:$0xff]
        %v2661 = vld [vmem:[#allocation4 + $0x418] sm:$0xff]
        %v2662 = vld [vmem:[#allocation4 + $0x420] sm:$0xff]
        %v2663 = vld [vmem:[#allocation4 + $0x428] sm:$0xff]
        %v2664 = vld [vmem:[#allocation4 + $0x430] sm:$0xff]
        %v2665 = vld [vmem:[#allocation4 + $0x438] sm:$0xff]
        %v2666 = vld [vmem:[#allocation4 + $0x440] sm:$0xff]
        %v2667 = vld [vmem:[#allocation4 + $0x448] sm:$0xff]
        %v2668 = vld [vmem:[#allocation4 + $0x450] sm:$0xff]
        %v2669 = vld [vmem:[#allocation4 + $0x458] sm:$0xff]
        %v2670 = vld [vmem:[#allocation4 + $0x460] sm:$0xff]
        %v2671 = vld [vmem:[#allocation4 + $0x468] sm:$0xff]
        %v2672 = vld [vmem:[#allocation4 + $0x470] sm:$0xff]
        %v2673 = vld [vmem:[#allocation4 + $0x478] sm:$0xff]
        %v2674 = vld [vmem:[%s7] sm:$0x1]
        %v2676 = vperm.slane %v2674, 0
        %2678 = vmatpush.msra.mxu0 %v2545
        %2679 = vmatpush.msra.mxu0 %v2544
        %2680 = vmatpush.msra.mxu0 %v2543
        %2681 = vmatpush.msra.mxu0 %v2542
        %2682 = vmatpush.msra.mxu0 %v2541
        %2683 = vmatpush.msra.mxu0 %v2540
        %2684 = vmatpush.msra.mxu0 %v2539
        %2685 = vmatpush.msra.mxu0 %v2538
        %2686 = vmatpush.msra.mxu0 %v2537
        %2687 = vmatpush.msra.mxu0 %v2536
        %2688 = vmatpush.msra.mxu0 %v2535
        %2689 = vmatpush.msra.mxu0 %v2534
        %2690 = vmatpush.msra.mxu0 %v2533
        %2691 = vmatpush.msra.mxu0 %v2532
        %2692 = vmatpush.msra.mxu0 %v2531
        %2693 = vmatpush.msra.mxu0 %v2530
        %2694 = vmatmul.f32.gmra.mxu0 %v2242
        %v2695 = vpop.f32.mrf.mxu0
        %v2696 = vadd.f32 %v2676, %v2695
        %2697 = vmatmul.f32.gmra.mxu0 %v2251
        %v2698 = vpop.f32.mrf.mxu0
        %v2699 = vadd.f32 %v2676, %v2698
        %2700 = vmatmul.f32.gmra.mxu0 %v2260
        %v2701 = vpop.f32.mrf.mxu0
        %v2702 = vadd.f32 %v2676, %v2701
        %2703 = vmatmul.f32.gmra.mxu0 %v2269
        %v2704 = vpop.f32.mrf.mxu0
        %v2705 = vadd.f32 %v2676, %v2704
        %2706 = vmatmul.f32.gmra.mxu0 %v2278
        %v2707 = vpop.f32.mrf.mxu0
        %v2708 = vadd.f32 %v2676, %v2707
        %2709 = vmatmul.f32.gmra.mxu0 %v2287
        %v2710 = vpop.f32.mrf.mxu0
        %v2711 = vadd.f32 %v2676, %v2710
        %2712 = vmatmul.f32.gmra.mxu0 %v2296
        %v2713 = vpop.f32.mrf.mxu0
        %v2714 = vadd.f32 %v2676, %v2713
        %2715 = vmatmul.f32.gmra.mxu0 %v2305
        %v2716 = vpop.f32.mrf.mxu0
        %v2717 = vadd.f32 %v2676, %v2716
        %2718 = vmatmul.f32.gmra.mxu0 %v2314
        %v2719 = vpop.f32.mrf.mxu0
        %v2720 = vadd.f32 %v2676, %v2719
        %2721 = vmatmul.f32.gmra.mxu0 %v2323
        %v2722 = vpop.f32.mrf.mxu0
        %v2723 = vadd.f32 %v2676, %v2722
        %2724 = vmatmul.f32.gmra.mxu0 %v2332
        %v2725 = vpop.f32.mrf.mxu0
        %v2726 = vadd.f32 %v2676, %v2725
        %2727 = vmatmul.f32.gmra.mxu0 %v2341
        %v2728 = vpop.f32.mrf.mxu0
        %v2729 = vadd.f32 %v2676, %v2728
        %2730 = vmatmul.f32.gmra.mxu0 %v2350
        %v2731 = vpop.f32.mrf.mxu0
        %v2732 = vadd.f32 %v2676, %v2731
        %2733 = vmatmul.f32.gmra.mxu0 %v2359
        %v2734 = vpop.f32.mrf.mxu0
        %v2735 = vadd.f32 %v2676, %v2734
        %2736 = vmatmul.f32.gmra.mxu0 %v2368
        %v2737 = vpop.f32.mrf.mxu0
        %v2738 = vadd.f32 %v2676, %v2737
        %2739 = vmatmul.f32.gmra.mxu0 %v2377
        %v2740 = vpop.f32.mrf.mxu0
        %v2741 = vadd.f32 %v2676, %v2740
        %2742 = vmatmul.f32.gmra.mxu0 %v2386
        %v2743 = vpop.f32.mrf.mxu0
        %v2744 = vadd.f32 %v2676, %v2743
        %2745 = vmatmul.f32.gmra.mxu0 %v2395
        %v2746 = vpop.f32.mrf.mxu0
        %v2747 = vadd.f32 %v2676, %v2746
        %2748 = vmatmul.f32.gmra.mxu0 %v2404
        %v2749 = vpop.f32.mrf.mxu0
        %v2750 = vadd.f32 %v2676, %v2749
        %2751 = vmatmul.f32.gmra.mxu0 %v2413
        %v2752 = vpop.f32.mrf.mxu0
        %v2753 = vadd.f32 %v2676, %v2752
        %2754 = vmatmul.f32.gmra.mxu0 %v2422
        %v2755 = vpop.f32.mrf.mxu0
        %v2756 = vadd.f32 %v2676, %v2755
        %2757 = vmatmul.f32.gmra.mxu0 %v2431
        %v2758 = vpop.f32.mrf.mxu0
        %v2759 = vadd.f32 %v2676, %v2758
        %2760 = vmatmul.f32.gmra.mxu0 %v2440
        %v2761 = vpop.f32.mrf.mxu0
        %v2762 = vadd.f32 %v2676, %v2761
        %2763 = vmatmul.f32.gmra.mxu0 %v2449
        %v2764 = vpop.f32.mrf.mxu0
        %v2765 = vadd.f32 %v2676, %v2764
        %2766 = vmatmul.f32.gmra.mxu0 %v2458
        %v2767 = vpop.f32.mrf.mxu0
        %v2768 = vadd.f32 %v2676, %v2767
        %2769 = vmatmul.f32.gmra.mxu0 %v2467
        %v2770 = vpop.f32.mrf.mxu0
        %v2771 = vadd.f32 %v2676, %v2770
        %2772 = vmatmul.f32.gmra.mxu0 %v2476
        %v2773 = vpop.f32.mrf.mxu0
        %v2774 = vadd.f32 %v2676, %v2773
        %2775 = vmatmul.f32.gmra.mxu0 %v2485
        %v2776 = vpop.f32.mrf.mxu0
        %v2777 = vadd.f32 %v2676, %v2776
        %2778 = vmatmul.f32.gmra.mxu0 %v2494
        %v2779 = vpop.f32.mrf.mxu0
        %v2780 = vadd.f32 %v2676, %v2779
        %2781 = vmatmul.f32.gmra.mxu0 %v2503
        %v2782 = vpop.f32.mrf.mxu0
        %v2783 = vadd.f32 %v2676, %v2782
        %2784 = vmatmul.f32.gmra.mxu0 %v2512
        %v2785 = vpop.f32.mrf.mxu0
        %v2786 = vadd.f32 %v2676, %v2785
        %2787 = vmatmul.f32.gmra.mxu0 %v2521
        %v2788 = vpop.f32.mrf.mxu0
        %v2789 = vadd.f32 %v2676, %v2788
        %2790 = vdwg.mxu0
        %2791 = vmatpush.msra.mxu0 %v2561
        %2792 = vmatpush.msra.mxu0 %v2560
        %2793 = vmatpush.msra.mxu0 %v2559
        %2794 = vmatpush.msra.mxu0 %v2558
        %2795 = vmatpush.msra.mxu0 %v2557
        %2796 = vmatpush.msra.mxu0 %v2556
        %2797 = vmatpush.msra.mxu0 %v2555
        %2798 = vmatpush.msra.mxu0 %v2554
        %2799 = vmatpush.msra.mxu0 %v2553
        %2800 = vmatpush.msra.mxu0 %v2552
        %2801 = vmatpush.msra.mxu0 %v2551
        %2802 = vmatpush.msra.mxu0 %v2550
        %2803 = vmatpush.msra.mxu0 %v2549
        %2804 = vmatpush.msra.mxu0 %v2548
        %2805 = vmatpush.msra.mxu0 %v2547
        %2806 = vmatpush.msra.mxu0 %v2546
        %2807 = vmatmul.f32.gmra.mxu0 %v2243
        %v2808 = vpop.f32.mrf.mxu0
        %v2809 = vadd.f32 %v2696, %v2808
        %2810 = vmatmul.f32.gmra.mxu0 %v2252
        %v2811 = vpop.f32.mrf.mxu0
        %v2812 = vadd.f32 %v2699, %v2811
        %2813 = vmatmul.f32.gmra.mxu0 %v2261
        %v2814 = vpop.f32.mrf.mxu0
        %v2815 = vadd.f32 %v2702, %v2814
        %2816 = vmatmul.f32.gmra.mxu0 %v2270
        %v2817 = vpop.f32.mrf.mxu0
        %v2818 = vadd.f32 %v2705, %v2817
        %2819 = vmatmul.f32.gmra.mxu0 %v2279
        %v2820 = vpop.f32.mrf.mxu0
        %v2821 = vadd.f32 %v2708, %v2820
        %2822 = vmatmul.f32.gmra.mxu0 %v2288
        %v2823 = vpop.f32.mrf.mxu0
        %v2824 = vadd.f32 %v2711, %v2823
        %2825 = vmatmul.f32.gmra.mxu0 %v2297
        %v2826 = vpop.f32.mrf.mxu0
        %v2827 = vadd.f32 %v2714, %v2826
        %2828 = vmatmul.f32.gmra.mxu0 %v2306
        %v2829 = vpop.f32.mrf.mxu0
        %v2830 = vadd.f32 %v2717, %v2829
        %2831 = vmatmul.f32.gmra.mxu0 %v2315
        %v2832 = vpop.f32.mrf.mxu0
        %v2833 = vadd.f32 %v2720, %v2832
        %2834 = vmatmul.f32.gmra.mxu0 %v2324
        %v2835 = vpop.f32.mrf.mxu0
        %v2836 = vadd.f32 %v2723, %v2835
        %2837 = vmatmul.f32.gmra.mxu0 %v2333
        %v2838 = vpop.f32.mrf.mxu0
        %v2839 = vadd.f32 %v2726, %v2838
        %2840 = vmatmul.f32.gmra.mxu0 %v2342
        %v2841 = vpop.f32.mrf.mxu0
        %v2842 = vadd.f32 %v2729, %v2841
        %2843 = vmatmul.f32.gmra.mxu0 %v2351
        %v2844 = vpop.f32.mrf.mxu0
        %v2845 = vadd.f32 %v2732, %v2844
        %2846 = vmatmul.f32.gmra.mxu0 %v2360
        %v2847 = vpop.f32.mrf.mxu0
        %v2848 = vadd.f32 %v2735, %v2847
        %2849 = vmatmul.f32.gmra.mxu0 %v2369
        %v2850 = vpop.f32.mrf.mxu0
        %v2851 = vadd.f32 %v2738, %v2850
        %2852 = vmatmul.f32.gmra.mxu0 %v2378
        %v2853 = vpop.f32.mrf.mxu0
        %v2854 = vadd.f32 %v2741, %v2853
        %2855 = vmatmul.f32.gmra.mxu0 %v2387
        %v2856 = vpop.f32.mrf.mxu0
        %v2857 = vadd.f32 %v2744, %v2856
        %2858 = vmatmul.f32.gmra.mxu0 %v2396
        %v2859 = vpop.f32.mrf.mxu0
        %v2860 = vadd.f32 %v2747, %v2859
        %2861 = vmatmul.f32.gmra.mxu0 %v2405
        %v2862 = vpop.f32.mrf.mxu0
        %v2863 = vadd.f32 %v2750, %v2862
        %2864 = vmatmul.f32.gmra.mxu0 %v2414
        %v2865 = vpop.f32.mrf.mxu0
        %v2866 = vadd.f32 %v2753, %v2865
        %2867 = vmatmul.f32.gmra.mxu0 %v2423
        %v2868 = vpop.f32.mrf.mxu0
        %v2869 = vadd.f32 %v2756, %v2868
        %2870 = vmatmul.f32.gmra.mxu0 %v2432
        %v2871 = vpop.f32.mrf.mxu0
        %v2872 = vadd.f32 %v2759, %v2871
        %2873 = vmatmul.f32.gmra.mxu0 %v2441
        %v2874 = vpop.f32.mrf.mxu0
        %v2875 = vadd.f32 %v2762, %v2874
        %2876 = vmatmul.f32.gmra.mxu0 %v2450
        %v2877 = vpop.f32.mrf.mxu0
        %v2878 = vadd.f32 %v2765, %v2877
        %2879 = vmatmul.f32.gmra.mxu0 %v2459
        %v2880 = vpop.f32.mrf.mxu0
        %v2881 = vadd.f32 %v2768, %v2880
        %2882 = vmatmul.f32.gmra.mxu0 %v2468
        %v2883 = vpop.f32.mrf.mxu0
        %v2884 = vadd.f32 %v2771, %v2883
        %2885 = vmatmul.f32.gmra.mxu0 %v2477
        %v2886 = vpop.f32.mrf.mxu0
        %v2887 = vadd.f32 %v2774, %v2886
        %2888 = vmatmul.f32.gmra.mxu0 %v2486
        %v2889 = vpop.f32.mrf.mxu0
        %v2890 = vadd.f32 %v2777, %v2889
        %2891 = vmatmul.f32.gmra.mxu0 %v2495
        %v2892 = vpop.f32.mrf.mxu0
        %v2893 = vadd.f32 %v2780, %v2892
        %2894 = vmatmul.f32.gmra.mxu0 %v2504
        %v2895 = vpop.f32.mrf.mxu0
        %v2896 = vadd.f32 %v2783, %v2895
        %2897 = vmatmul.f32.gmra.mxu0 %v2513
        %v2898 = vpop.f32.mrf.mxu0
        %v2899 = vadd.f32 %v2786, %v2898
        %2900 = vmatmul.f32.gmra.mxu0 %v2522
        %v2901 = vpop.f32.mrf.mxu0
        %v2902 = vadd.f32 %v2789, %v2901
        %2903 = vdwg.mxu0
        %2904 = vmatpush.msra.mxu0 %v2577
        %2905 = vmatpush.msra.mxu0 %v2576
        %2906 = vmatpush.msra.mxu0 %v2575
        %2907 = vmatpush.msra.mxu0 %v2574
        %2908 = vmatpush.msra.mxu0 %v2573
        %2909 = vmatpush.msra.mxu0 %v2572
        %2910 = vmatpush.msra.mxu0 %v2571
        %2911 = vmatpush.msra.mxu0 %v2570
        %2912 = vmatpush.msra.mxu0 %v2569
        %2913 = vmatpush.msra.mxu0 %v2568
        %2914 = vmatpush.msra.mxu0 %v2567
        %2915 = vmatpush.msra.mxu0 %v2566
        %2916 = vmatpush.msra.mxu0 %v2565
        %2917 = vmatpush.msra.mxu0 %v2564
        %2918 = vmatpush.msra.mxu0 %v2563
        %2919 = vmatpush.msra.mxu0 %v2562
        %2920 = vmatmul.f32.gmra.mxu0 %v2244
        %v2921 = vpop.f32.mrf.mxu0
        %v2922 = vadd.f32 %v2809, %v2921
        %2923 = vmatmul.f32.gmra.mxu0 %v2253
        %v2924 = vpop.f32.mrf.mxu0
        %v2925 = vadd.f32 %v2812, %v2924
        %2926 = vmatmul.f32.gmra.mxu0 %v2262
        %v2927 = vpop.f32.mrf.mxu0
        %v2928 = vadd.f32 %v2815, %v2927
        %2929 = vmatmul.f32.gmra.mxu0 %v2271
        %v2930 = vpop.f32.mrf.mxu0
        %v2931 = vadd.f32 %v2818, %v2930
        %2932 = vmatmul.f32.gmra.mxu0 %v2280
        %v2933 = vpop.f32.mrf.mxu0
        %v2934 = vadd.f32 %v2821, %v2933
        %2935 = vmatmul.f32.gmra.mxu0 %v2289
        %v2936 = vpop.f32.mrf.mxu0
        %v2937 = vadd.f32 %v2824, %v2936
        %2938 = vmatmul.f32.gmra.mxu0 %v2298
        %v2939 = vpop.f32.mrf.mxu0
        %v2940 = vadd.f32 %v2827, %v2939
        %2941 = vmatmul.f32.gmra.mxu0 %v2307
        %v2942 = vpop.f32.mrf.mxu0
        %v2943 = vadd.f32 %v2830, %v2942
        %2944 = vmatmul.f32.gmra.mxu0 %v2316
        %v2945 = vpop.f32.mrf.mxu0
        %v2946 = vadd.f32 %v2833, %v2945
        %2947 = vmatmul.f32.gmra.mxu0 %v2325
        %v2948 = vpop.f32.mrf.mxu0
        %v2949 = vadd.f32 %v2836, %v2948
        %2950 = vmatmul.f32.gmra.mxu0 %v2334
        %v2951 = vpop.f32.mrf.mxu0
        %v2952 = vadd.f32 %v2839, %v2951
        %2953 = vmatmul.f32.gmra.mxu0 %v2343
        %v2954 = vpop.f32.mrf.mxu0
        %v2955 = vadd.f32 %v2842, %v2954
        %2956 = vmatmul.f32.gmra.mxu0 %v2352
        %v2957 = vpop.f32.mrf.mxu0
        %v2958 = vadd.f32 %v2845, %v2957
        %2959 = vmatmul.f32.gmra.mxu0 %v2361
        %v2960 = vpop.f32.mrf.mxu0
        %v2961 = vadd.f32 %v2848, %v2960
        %2962 = vmatmul.f32.gmra.mxu0 %v2370
        %v2963 = vpop.f32.mrf.mxu0
        %v2964 = vadd.f32 %v2851, %v2963
        %2965 = vmatmul.f32.gmra.mxu0 %v2379
        %v2966 = vpop.f32.mrf.mxu0
        %v2967 = vadd.f32 %v2854, %v2966
        %2968 = vmatmul.f32.gmra.mxu0 %v2388
        %v2969 = vpop.f32.mrf.mxu0
        %v2970 = vadd.f32 %v2857, %v2969
        %2971 = vmatmul.f32.gmra.mxu0 %v2397
        %v2972 = vpop.f32.mrf.mxu0
        %v2973 = vadd.f32 %v2860, %v2972
        %2974 = vmatmul.f32.gmra.mxu0 %v2406
        %v2975 = vpop.f32.mrf.mxu0
        %v2976 = vadd.f32 %v2863, %v2975
        %2977 = vmatmul.f32.gmra.mxu0 %v2415
        %v2978 = vpop.f32.mrf.mxu0
        %v2979 = vadd.f32 %v2866, %v2978
        %2980 = vmatmul.f32.gmra.mxu0 %v2424
        %v2981 = vpop.f32.mrf.mxu0
        %v2982 = vadd.f32 %v2869, %v2981
        %2983 = vmatmul.f32.gmra.mxu0 %v2433
        %v2984 = vpop.f32.mrf.mxu0
        %v2985 = vadd.f32 %v2872, %v2984
        %2986 = vmatmul.f32.gmra.mxu0 %v2442
        %v2987 = vpop.f32.mrf.mxu0
        %v2988 = vadd.f32 %v2875, %v2987
        %2989 = vmatmul.f32.gmra.mxu0 %v2451
        %v2990 = vpop.f32.mrf.mxu0
        %v2991 = vadd.f32 %v2878, %v2990
        %2992 = vmatmul.f32.gmra.mxu0 %v2460
        %v2993 = vpop.f32.mrf.mxu0
        %v2994 = vadd.f32 %v2881, %v2993
        %2995 = vmatmul.f32.gmra.mxu0 %v2469
        %v2996 = vpop.f32.mrf.mxu0
        %v2997 = vadd.f32 %v2884, %v2996
        %2998 = vmatmul.f32.gmra.mxu0 %v2478
        %v2999 = vpop.f32.mrf.mxu0
        %v3000 = vadd.f32 %v2887, %v2999
        %3001 = vmatmul.f32.gmra.mxu0 %v2487
        %v3002 = vpop.f32.mrf.mxu0
        %v3003 = vadd.f32 %v2890, %v3002
        %3004 = vmatmul.f32.gmra.mxu0 %v2496
        %v3005 = vpop.f32.mrf.mxu0
        %v3006 = vadd.f32 %v2893, %v3005
        %3007 = vmatmul.f32.gmra.mxu0 %v2505
        %v3008 = vpop.f32.mrf.mxu0
        %v3009 = vadd.f32 %v2896, %v3008
        %3010 = vmatmul.f32.gmra.mxu0 %v2514
        %v3011 = vpop.f32.mrf.mxu0
        %v3012 = vadd.f32 %v2899, %v3011
        %3013 = vmatmul.f32.gmra.mxu0 %v2523
        %v3014 = vpop.f32.mrf.mxu0
        %v3015 = vadd.f32 %v2902, %v3014
        %3016 = vdwg.mxu0
        %3017 = vmatpush.msra.mxu0 %v2593
        %3018 = vmatpush.msra.mxu0 %v2592
        %3019 = vmatpush.msra.mxu0 %v2591
        %3020 = vmatpush.msra.mxu0 %v2590
        %3021 = vmatpush.msra.mxu0 %v2589
        %3022 = vmatpush.msra.mxu0 %v2588
        %3023 = vmatpush.msra.mxu0 %v2587
        %3024 = vmatpush.msra.mxu0 %v2586
        %3025 = vmatpush.msra.mxu0 %v2585
        %3026 = vmatpush.msra.mxu0 %v2584
        %3027 = vmatpush.msra.mxu0 %v2583
        %3028 = vmatpush.msra.mxu0 %v2582
        %3029 = vmatpush.msra.mxu0 %v2581
        %3030 = vmatpush.msra.mxu0 %v2580
        %3031 = vmatpush.msra.mxu0 %v2579
        %3032 = vmatpush.msra.mxu0 %v2578
        %3033 = vmatmul.f32.gmra.mxu0 %v2245
        %v3034 = vpop.f32.mrf.mxu0
        %v3035 = vadd.f32 %v2922, %v3034
        %3036 = vmatmul.f32.gmra.mxu0 %v2254
        %v3037 = vpop.f32.mrf.mxu0
        %v3038 = vadd.f32 %v2925, %v3037
        %3039 = vmatmul.f32.gmra.mxu0 %v2263
        %v3040 = vpop.f32.mrf.mxu0
        %v3041 = vadd.f32 %v2928, %v3040
        %3042 = vmatmul.f32.gmra.mxu0 %v2272
        %v3043 = vpop.f32.mrf.mxu0
        %v3044 = vadd.f32 %v2931, %v3043
        %3045 = vmatmul.f32.gmra.mxu0 %v2281
        %v3046 = vpop.f32.mrf.mxu0
        %v3047 = vadd.f32 %v2934, %v3046
        %3048 = vmatmul.f32.gmra.mxu0 %v2290
        %v3049 = vpop.f32.mrf.mxu0
        %v3050 = vadd.f32 %v2937, %v3049
        %3051 = vmatmul.f32.gmra.mxu0 %v2299
        %v3052 = vpop.f32.mrf.mxu0
        %v3053 = vadd.f32 %v2940, %v3052
        %3054 = vmatmul.f32.gmra.mxu0 %v2308
        %v3055 = vpop.f32.mrf.mxu0
        %v3056 = vadd.f32 %v2943, %v3055
        %3057 = vmatmul.f32.gmra.mxu0 %v2317
        %v3058 = vpop.f32.mrf.mxu0
        %v3059 = vadd.f32 %v2946, %v3058
        %3060 = vmatmul.f32.gmra.mxu0 %v2326
        %v3061 = vpop.f32.mrf.mxu0
        %v3062 = vadd.f32 %v2949, %v3061
        %3063 = vmatmul.f32.gmra.mxu0 %v2335
        %v3064 = vpop.f32.mrf.mxu0
        %v3065 = vadd.f32 %v2952, %v3064
        %3066 = vmatmul.f32.gmra.mxu0 %v2344
        %v3067 = vpop.f32.mrf.mxu0
        %v3068 = vadd.f32 %v2955, %v3067
        %3069 = vmatmul.f32.gmra.mxu0 %v2353
        %v3070 = vpop.f32.mrf.mxu0
        %v3071 = vadd.f32 %v2958, %v3070
        %3072 = vmatmul.f32.gmra.mxu0 %v2362
        %v3073 = vpop.f32.mrf.mxu0
        %v3074 = vadd.f32 %v2961, %v3073
        %3075 = vmatmul.f32.gmra.mxu0 %v2371
        %v3076 = vpop.f32.mrf.mxu0
        %v3077 = vadd.f32 %v2964, %v3076
        %3078 = vmatmul.f32.gmra.mxu0 %v2380
        %v3079 = vpop.f32.mrf.mxu0
        %v3080 = vadd.f32 %v2967, %v3079
        %3081 = vmatmul.f32.gmra.mxu0 %v2389
        %v3082 = vpop.f32.mrf.mxu0
        %v3083 = vadd.f32 %v2970, %v3082
        %3084 = vmatmul.f32.gmra.mxu0 %v2398
        %v3085 = vpop.f32.mrf.mxu0
        %v3086 = vadd.f32 %v2973, %v3085
        %3087 = vmatmul.f32.gmra.mxu0 %v2407
        %v3088 = vpop.f32.mrf.mxu0
        %v3089 = vadd.f32 %v2976, %v3088
        %3090 = vmatmul.f32.gmra.mxu0 %v2416
        %v3091 = vpop.f32.mrf.mxu0
        %v3092 = vadd.f32 %v2979, %v3091
        %3093 = vmatmul.f32.gmra.mxu0 %v2425
        %v3094 = vpop.f32.mrf.mxu0
        %v3095 = vadd.f32 %v2982, %v3094
        %3096 = vmatmul.f32.gmra.mxu0 %v2434
        %v3097 = vpop.f32.mrf.mxu0
        %v3098 = vadd.f32 %v2985, %v3097
        %3099 = vmatmul.f32.gmra.mxu0 %v2443
        %v3100 = vpop.f32.mrf.mxu0
        %v3101 = vadd.f32 %v2988, %v3100
        %3102 = vmatmul.f32.gmra.mxu0 %v2452
        %v3103 = vpop.f32.mrf.mxu0
        %v3104 = vadd.f32 %v2991, %v3103
        %3105 = vmatmul.f32.gmra.mxu0 %v2461
        %v3106 = vpop.f32.mrf.mxu0
        %v3107 = vadd.f32 %v2994, %v3106
        %3108 = vmatmul.f32.gmra.mxu0 %v2470
        %v3109 = vpop.f32.mrf.mxu0
        %v3110 = vadd.f32 %v2997, %v3109
        %3111 = vmatmul.f32.gmra.mxu0 %v2479
        %v3112 = vpop.f32.mrf.mxu0
        %v3113 = vadd.f32 %v3000, %v3112
        %3114 = vmatmul.f32.gmra.mxu0 %v2488
        %v3115 = vpop.f32.mrf.mxu0
        %v3116 = vadd.f32 %v3003, %v3115
        %3117 = vmatmul.f32.gmra.mxu0 %v2497
        %v3118 = vpop.f32.mrf.mxu0
        %v3119 = vadd.f32 %v3006, %v3118
        %3120 = vmatmul.f32.gmra.mxu0 %v2506
        %v3121 = vpop.f32.mrf.mxu0
        %v3122 = vadd.f32 %v3009, %v3121
        %3123 = vmatmul.f32.gmra.mxu0 %v2515
        %v3124 = vpop.f32.mrf.mxu0
        %v3125 = vadd.f32 %v3012, %v3124
        %3126 = vmatmul.f32.gmra.mxu0 %v2524
        %v3127 = vpop.f32.mrf.mxu0
        %v3128 = vadd.f32 %v3015, %v3127
        %3129 = vdwg.mxu0
        %3130 = vmatpush.msra.mxu0 %v2609
        %3131 = vmatpush.msra.mxu0 %v2608
        %3132 = vmatpush.msra.mxu0 %v2607
        %3133 = vmatpush.msra.mxu0 %v2606
        %3134 = vmatpush.msra.mxu0 %v2605
        %3135 = vmatpush.msra.mxu0 %v2604
        %3136 = vmatpush.msra.mxu0 %v2603
        %3137 = vmatpush.msra.mxu0 %v2602
        %3138 = vmatpush.msra.mxu0 %v2601
        %3139 = vmatpush.msra.mxu0 %v2600
        %3140 = vmatpush.msra.mxu0 %v2599
        %3141 = vmatpush.msra.mxu0 %v2598
        %3142 = vmatpush.msra.mxu0 %v2597
        %3143 = vmatpush.msra.mxu0 %v2596
        %3144 = vmatpush.msra.mxu0 %v2595
        %3145 = vmatpush.msra.mxu0 %v2594
        %3146 = vmatmul.f32.gmra.mxu0 %v2246
        %v3147 = vpop.f32.mrf.mxu0
        %v3148 = vadd.f32 %v3035, %v3147
        %3149 = vmatmul.f32.gmra.mxu0 %v2255
        %v3150 = vpop.f32.mrf.mxu0
        %v3151 = vadd.f32 %v3038, %v3150
        %3152 = vmatmul.f32.gmra.mxu0 %v2264
        %v3153 = vpop.f32.mrf.mxu0
        %v3154 = vadd.f32 %v3041, %v3153
        %3155 = vmatmul.f32.gmra.mxu0 %v2273
        %v3156 = vpop.f32.mrf.mxu0
        %v3157 = vadd.f32 %v3044, %v3156
        %3158 = vmatmul.f32.gmra.mxu0 %v2282
        %v3159 = vpop.f32.mrf.mxu0
        %v3160 = vadd.f32 %v3047, %v3159
        %3161 = vmatmul.f32.gmra.mxu0 %v2291
        %v3162 = vpop.f32.mrf.mxu0
        %v3163 = vadd.f32 %v3050, %v3162
        %3164 = vmatmul.f32.gmra.mxu0 %v2300
        %v3165 = vpop.f32.mrf.mxu0
        %v3166 = vadd.f32 %v3053, %v3165
        %3167 = vmatmul.f32.gmra.mxu0 %v2309
        %v3168 = vpop.f32.mrf.mxu0
        %v3169 = vadd.f32 %v3056, %v3168
        %3170 = vmatmul.f32.gmra.mxu0 %v2318
        %v3171 = vpop.f32.mrf.mxu0
        %v3172 = vadd.f32 %v3059, %v3171
        %3173 = vmatmul.f32.gmra.mxu0 %v2327
        %v3174 = vpop.f32.mrf.mxu0
        %v3175 = vadd.f32 %v3062, %v3174
        %3176 = vmatmul.f32.gmra.mxu0 %v2336
        %v3177 = vpop.f32.mrf.mxu0
        %v3178 = vadd.f32 %v3065, %v3177
        %3179 = vmatmul.f32.gmra.mxu0 %v2345
        %v3180 = vpop.f32.mrf.mxu0
        %v3181 = vadd.f32 %v3068, %v3180
        %3182 = vmatmul.f32.gmra.mxu0 %v2354
        %v3183 = vpop.f32.mrf.mxu0
        %v3184 = vadd.f32 %v3071, %v3183
        %3185 = vmatmul.f32.gmra.mxu0 %v2363
        %v3186 = vpop.f32.mrf.mxu0
        %v3187 = vadd.f32 %v3074, %v3186
        %3188 = vmatmul.f32.gmra.mxu0 %v2372
        %v3189 = vpop.f32.mrf.mxu0
        %v3190 = vadd.f32 %v3077, %v3189
        %3191 = vmatmul.f32.gmra.mxu0 %v2381
        %v3192 = vpop.f32.mrf.mxu0
        %v3193 = vadd.f32 %v3080, %v3192
        %3194 = vmatmul.f32.gmra.mxu0 %v2390
        %v3195 = vpop.f32.mrf.mxu0
        %v3196 = vadd.f32 %v3083, %v3195
        %3197 = vmatmul.f32.gmra.mxu0 %v2399
        %v3198 = vpop.f32.mrf.mxu0
        %v3199 = vadd.f32 %v3086, %v3198
        %3200 = vmatmul.f32.gmra.mxu0 %v2408
        %v3201 = vpop.f32.mrf.mxu0
        %v3202 = vadd.f32 %v3089, %v3201
        %3203 = vmatmul.f32.gmra.mxu0 %v2417
        %v3204 = vpop.f32.mrf.mxu0
        %v3205 = vadd.f32 %v3092, %v3204
        %3206 = vmatmul.f32.gmra.mxu0 %v2426
        %v3207 = vpop.f32.mrf.mxu0
        %v3208 = vadd.f32 %v3095, %v3207
        %3209 = vmatmul.f32.gmra.mxu0 %v2435
        %v3210 = vpop.f32.mrf.mxu0
        %v3211 = vadd.f32 %v3098, %v3210
        %3212 = vmatmul.f32.gmra.mxu0 %v2444
        %v3213 = vpop.f32.mrf.mxu0
        %v3214 = vadd.f32 %v3101, %v3213
        %3215 = vmatmul.f32.gmra.mxu0 %v2453
        %v3216 = vpop.f32.mrf.mxu0
        %v3217 = vadd.f32 %v3104, %v3216
        %3218 = vmatmul.f32.gmra.mxu0 %v2462
        %v3219 = vpop.f32.mrf.mxu0
        %v3220 = vadd.f32 %v3107, %v3219
        %3221 = vmatmul.f32.gmra.mxu0 %v2471
        %v3222 = vpop.f32.mrf.mxu0
        %v3223 = vadd.f32 %v3110, %v3222
        %3224 = vmatmul.f32.gmra.mxu0 %v2480
        %v3225 = vpop.f32.mrf.mxu0
        %v3226 = vadd.f32 %v3113, %v3225
        %3227 = vmatmul.f32.gmra.mxu0 %v2489
        %v3228 = vpop.f32.mrf.mxu0
        %v3229 = vadd.f32 %v3116, %v3228
        %3230 = vmatmul.f32.gmra.mxu0 %v2498
        %v3231 = vpop.f32.mrf.mxu0
        %v3232 = vadd.f32 %v3119, %v3231
        %3233 = vmatmul.f32.gmra.mxu0 %v2507
        %v3234 = vpop.f32.mrf.mxu0
        %v3235 = vadd.f32 %v3122, %v3234
        %3236 = vmatmul.f32.gmra.mxu0 %v2516
        %v3237 = vpop.f32.mrf.mxu0
        %v3238 = vadd.f32 %v3125, %v3237
        %3239 = vmatmul.f32.gmra.mxu0 %v2525
        %v3240 = vpop.f32.mrf.mxu0
        %v3241 = vadd.f32 %v3128, %v3240
        %3242 = vdwg.mxu0
        %3243 = vmatpush.msra.mxu0 %v2625
        %3244 = vmatpush.msra.mxu0 %v2624
        %3245 = vmatpush.msra.mxu0 %v2623
        %3246 = vmatpush.msra.mxu0 %v2622
        %3247 = vmatpush.msra.mxu0 %v2621
        %3248 = vmatpush.msra.mxu0 %v2620
        %3249 = vmatpush.msra.mxu0 %v2619
        %3250 = vmatpush.msra.mxu0 %v2618
        %3251 = vmatpush.msra.mxu0 %v2617
        %3252 = vmatpush.msra.mxu0 %v2616
        %3253 = vmatpush.msra.mxu0 %v2615
        %3254 = vmatpush.msra.mxu0 %v2614
        %3255 = vmatpush.msra.mxu0 %v2613
        %3256 = vmatpush.msra.mxu0 %v2612
        %3257 = vmatpush.msra.mxu0 %v2611
        %3258 = vmatpush.msra.mxu0 %v2610
        %3259 = vmatmul.f32.gmra.mxu0 %v2247
        %v3260 = vpop.f32.mrf.mxu0
        %v3261 = vadd.f32 %v3148, %v3260
        %3262 = vmatmul.f32.gmra.mxu0 %v2256
        %v3263 = vpop.f32.mrf.mxu0
        %v3264 = vadd.f32 %v3151, %v3263
        %3265 = vmatmul.f32.gmra.mxu0 %v2265
        %v3266 = vpop.f32.mrf.mxu0
        %v3267 = vadd.f32 %v3154, %v3266
        %3268 = vmatmul.f32.gmra.mxu0 %v2274
        %v3269 = vpop.f32.mrf.mxu0
        %v3270 = vadd.f32 %v3157, %v3269
        %3271 = vmatmul.f32.gmra.mxu0 %v2283
        %v3272 = vpop.f32.mrf.mxu0
        %v3273 = vadd.f32 %v3160, %v3272
        %3274 = vmatmul.f32.gmra.mxu0 %v2292
        %v3275 = vpop.f32.mrf.mxu0
        %v3276 = vadd.f32 %v3163, %v3275
        %3277 = vmatmul.f32.gmra.mxu0 %v2301
        %v3278 = vpop.f32.mrf.mxu0
        %v3279 = vadd.f32 %v3166, %v3278
        %3280 = vmatmul.f32.gmra.mxu0 %v2310
        %v3281 = vpop.f32.mrf.mxu0
        %v3282 = vadd.f32 %v3169, %v3281
        %3283 = vmatmul.f32.gmra.mxu0 %v2319
        %v3284 = vpop.f32.mrf.mxu0
        %v3285 = vadd.f32 %v3172, %v3284
        %3286 = vmatmul.f32.gmra.mxu0 %v2328
        %v3287 = vpop.f32.mrf.mxu0
        %v3288 = vadd.f32 %v3175, %v3287
        %3289 = vmatmul.f32.gmra.mxu0 %v2337
        %v3290 = vpop.f32.mrf.mxu0
        %v3291 = vadd.f32 %v3178, %v3290
        %3292 = vmatmul.f32.gmra.mxu0 %v2346
        %v3293 = vpop.f32.mrf.mxu0
        %v3294 = vadd.f32 %v3181, %v3293
        %3295 = vmatmul.f32.gmra.mxu0 %v2355
        %v3296 = vpop.f32.mrf.mxu0
        %v3297 = vadd.f32 %v3184, %v3296
        %3298 = vmatmul.f32.gmra.mxu0 %v2364
        %v3299 = vpop.f32.mrf.mxu0
        %v3300 = vadd.f32 %v3187, %v3299
        %3301 = vmatmul.f32.gmra.mxu0 %v2373
        %v3302 = vpop.f32.mrf.mxu0
        %v3303 = vadd.f32 %v3190, %v3302
        %3304 = vmatmul.f32.gmra.mxu0 %v2382
        %v3305 = vpop.f32.mrf.mxu0
        %v3306 = vadd.f32 %v3193, %v3305
        %3307 = vmatmul.f32.gmra.mxu0 %v2391
        %v3308 = vpop.f32.mrf.mxu0
        %v3309 = vadd.f32 %v3196, %v3308
        %3310 = vmatmul.f32.gmra.mxu0 %v2400
        %v3311 = vpop.f32.mrf.mxu0
        %v3312 = vadd.f32 %v3199, %v3311
        %3313 = vmatmul.f32.gmra.mxu0 %v2409
        %v3314 = vpop.f32.mrf.mxu0
        %v3315 = vadd.f32 %v3202, %v3314
        %3316 = vmatmul.f32.gmra.mxu0 %v2418
        %v3317 = vpop.f32.mrf.mxu0
        %v3318 = vadd.f32 %v3205, %v3317
        %3319 = vmatmul.f32.gmra.mxu0 %v2427
        %v3320 = vpop.f32.mrf.mxu0
        %v3321 = vadd.f32 %v3208, %v3320
        %3322 = vmatmul.f32.gmra.mxu0 %v2436
        %v3323 = vpop.f32.mrf.mxu0
        %v3324 = vadd.f32 %v3211, %v3323
        %3325 = vmatmul.f32.gmra.mxu0 %v2445
        %v3326 = vpop.f32.mrf.mxu0
        %v3327 = vadd.f32 %v3214, %v3326
        %3328 = vmatmul.f32.gmra.mxu0 %v2454
        %v3329 = vpop.f32.mrf.mxu0
        %v3330 = vadd.f32 %v3217, %v3329
        %3331 = vmatmul.f32.gmra.mxu0 %v2463
        %v3332 = vpop.f32.mrf.mxu0
        %v3333 = vadd.f32 %v3220, %v3332
        %3334 = vmatmul.f32.gmra.mxu0 %v2472
        %v3335 = vpop.f32.mrf.mxu0
        %v3336 = vadd.f32 %v3223, %v3335
        %3337 = vmatmul.f32.gmra.mxu0 %v2481
        %v3338 = vpop.f32.mrf.mxu0
        %v3339 = vadd.f32 %v3226, %v3338
        %3340 = vmatmul.f32.gmra.mxu0 %v2490
        %v3341 = vpop.f32.mrf.mxu0
        %v3342 = vadd.f32 %v3229, %v3341
        %3343 = vmatmul.f32.gmra.mxu0 %v2499
        %v3344 = vpop.f32.mrf.mxu0
        %v3345 = vadd.f32 %v3232, %v3344
        %3346 = vmatmul.f32.gmra.mxu0 %v2508
        %v3347 = vpop.f32.mrf.mxu0
        %v3348 = vadd.f32 %v3235, %v3347
        %3349 = vmatmul.f32.gmra.mxu0 %v2517
        %v3350 = vpop.f32.mrf.mxu0
        %v3351 = vadd.f32 %v3238, %v3350
        %3352 = vmatmul.f32.gmra.mxu0 %v2526
        %v3353 = vpop.f32.mrf.mxu0
        %v3354 = vadd.f32 %v3241, %v3353
        %3355 = vdwg.mxu0
        %3356 = vmatpush.msra.mxu0 %v2641
        %3357 = vmatpush.msra.mxu0 %v2640
        %3358 = vmatpush.msra.mxu0 %v2639
        %3359 = vmatpush.msra.mxu0 %v2638
        %3360 = vmatpush.msra.mxu0 %v2637
        %3361 = vmatpush.msra.mxu0 %v2636
        %3362 = vmatpush.msra.mxu0 %v2635
        %3363 = vmatpush.msra.mxu0 %v2634
        %3364 = vmatpush.msra.mxu0 %v2633
        %3365 = vmatpush.msra.mxu0 %v2632
        %3366 = vmatpush.msra.mxu0 %v2631
        %3367 = vmatpush.msra.mxu0 %v2630
        %3368 = vmatpush.msra.mxu0 %v2629
        %3369 = vmatpush.msra.mxu0 %v2628
        %3370 = vmatpush.msra.mxu0 %v2627
        %3371 = vmatpush.msra.mxu0 %v2626
        %3372 = vmatmul.f32.gmra.mxu0 %v2248
        %v3373 = vpop.f32.mrf.mxu0
        %v3374 = vadd.f32 %v3261, %v3373
        %3375 = vmatmul.f32.gmra.mxu0 %v2257
        %v3376 = vpop.f32.mrf.mxu0
        %v3377 = vadd.f32 %v3264, %v3376
        %3378 = vmatmul.f32.gmra.mxu0 %v2266
        %v3379 = vpop.f32.mrf.mxu0
        %v3380 = vadd.f32 %v3267, %v3379
        %3381 = vmatmul.f32.gmra.mxu0 %v2275
        %v3382 = vpop.f32.mrf.mxu0
        %v3383 = vadd.f32 %v3270, %v3382
        %3384 = vmatmul.f32.gmra.mxu0 %v2284
        %v3385 = vpop.f32.mrf.mxu0
        %v3386 = vadd.f32 %v3273, %v3385
        %3387 = vmatmul.f32.gmra.mxu0 %v2293
        %v3388 = vpop.f32.mrf.mxu0
        %v3389 = vadd.f32 %v3276, %v3388
        %3390 = vmatmul.f32.gmra.mxu0 %v2302
        %v3391 = vpop.f32.mrf.mxu0
        %v3392 = vadd.f32 %v3279, %v3391
        %3393 = vmatmul.f32.gmra.mxu0 %v2311
        %v3394 = vpop.f32.mrf.mxu0
        %v3395 = vadd.f32 %v3282, %v3394
        %3396 = vmatmul.f32.gmra.mxu0 %v2320
        %v3397 = vpop.f32.mrf.mxu0
        %v3398 = vadd.f32 %v3285, %v3397
        %3399 = vmatmul.f32.gmra.mxu0 %v2329
        %v3400 = vpop.f32.mrf.mxu0
        %v3401 = vadd.f32 %v3288, %v3400
        %3402 = vmatmul.f32.gmra.mxu0 %v2338
        %v3403 = vpop.f32.mrf.mxu0
        %v3404 = vadd.f32 %v3291, %v3403
        %3405 = vmatmul.f32.gmra.mxu0 %v2347
        %v3406 = vpop.f32.mrf.mxu0
        %v3407 = vadd.f32 %v3294, %v3406
        %3408 = vmatmul.f32.gmra.mxu0 %v2356
        %v3409 = vpop.f32.mrf.mxu0
        %v3410 = vadd.f32 %v3297, %v3409
        %3411 = vmatmul.f32.gmra.mxu0 %v2365
        %v3412 = vpop.f32.mrf.mxu0
        %v3413 = vadd.f32 %v3300, %v3412
        %3414 = vmatmul.f32.gmra.mxu0 %v2374
        %v3415 = vpop.f32.mrf.mxu0
        %v3416 = vadd.f32 %v3303, %v3415
        %3417 = vmatmul.f32.gmra.mxu0 %v2383
        %v3418 = vpop.f32.mrf.mxu0
        %v3419 = vadd.f32 %v3306, %v3418
        %3420 = vmatmul.f32.gmra.mxu0 %v2392
        %v3421 = vpop.f32.mrf.mxu0
        %v3422 = vadd.f32 %v3309, %v3421
        %3423 = vmatmul.f32.gmra.mxu0 %v2401
        %v3424 = vpop.f32.mrf.mxu0
        %v3425 = vadd.f32 %v3312, %v3424
        %3426 = vmatmul.f32.gmra.mxu0 %v2410
        %v3427 = vpop.f32.mrf.mxu0
        %v3428 = vadd.f32 %v3315, %v3427
        %3429 = vmatmul.f32.gmra.mxu0 %v2419
        %v3430 = vpop.f32.mrf.mxu0
        %v3431 = vadd.f32 %v3318, %v3430
        %3432 = vmatmul.f32.gmra.mxu0 %v2428
        %v3433 = vpop.f32.mrf.mxu0
        %v3434 = vadd.f32 %v3321, %v3433
        %3435 = vmatmul.f32.gmra.mxu0 %v2437
        %v3436 = vpop.f32.mrf.mxu0
        %v3437 = vadd.f32 %v3324, %v3436
        %3438 = vmatmul.f32.gmra.mxu0 %v2446
        %v3439 = vpop.f32.mrf.mxu0
        %v3440 = vadd.f32 %v3327, %v3439
        %3441 = vmatmul.f32.gmra.mxu0 %v2455
        %v3442 = vpop.f32.mrf.mxu0
        %v3443 = vadd.f32 %v3330, %v3442
        %3444 = vmatmul.f32.gmra.mxu0 %v2464
        %v3445 = vpop.f32.mrf.mxu0
        %v3446 = vadd.f32 %v3333, %v3445
        %3447 = vmatmul.f32.gmra.mxu0 %v2473
        %v3448 = vpop.f32.mrf.mxu0
        %v3449 = vadd.f32 %v3336, %v3448
        %3450 = vmatmul.f32.gmra.mxu0 %v2482
        %v3451 = vpop.f32.mrf.mxu0
        %v3452 = vadd.f32 %v3339, %v3451
        %3453 = vmatmul.f32.gmra.mxu0 %v2491
        %v3454 = vpop.f32.mrf.mxu0
        %v3455 = vadd.f32 %v3342, %v3454
        %3456 = vmatmul.f32.gmra.mxu0 %v2500
        %v3457 = vpop.f32.mrf.mxu0
        %v3458 = vadd.f32 %v3345, %v3457
        %3459 = vmatmul.f32.gmra.mxu0 %v2509
        %v3460 = vpop.f32.mrf.mxu0
        %v3461 = vadd.f32 %v3348, %v3460
        %3462 = vmatmul.f32.gmra.mxu0 %v2518
        %v3463 = vpop.f32.mrf.mxu0
        %v3464 = vadd.f32 %v3351, %v3463
        %3465 = vmatmul.f32.gmra.mxu0 %v2527
        %v3466 = vpop.f32.mrf.mxu0
        %v3467 = vadd.f32 %v3354, %v3466
        %3468 = vdwg.mxu0
        %3469 = vmatpush.msra.mxu0 %v2657
        %3470 = vmatpush.msra.mxu0 %v2656
        %3471 = vmatpush.msra.mxu0 %v2655
        %3472 = vmatpush.msra.mxu0 %v2654
        %3473 = vmatpush.msra.mxu0 %v2653
        %3474 = vmatpush.msra.mxu0 %v2652
        %3475 = vmatpush.msra.mxu0 %v2651
        %3476 = vmatpush.msra.mxu0 %v2650
        %3477 = vmatpush.msra.mxu0 %v2649
        %3478 = vmatpush.msra.mxu0 %v2648
        %3479 = vmatpush.msra.mxu0 %v2647
        %3480 = vmatpush.msra.mxu0 %v2646
        %3481 = vmatpush.msra.mxu0 %v2645
        %3482 = vmatpush.msra.mxu0 %v2644
        %3483 = vmatpush.msra.mxu0 %v2643
        %3484 = vmatpush.msra.mxu0 %v2642
        %3485 = vmatmul.f32.gmra.mxu0 %v2249
        %v3486 = vpop.f32.mrf.mxu0
        %v3487 = vadd.f32 %v3374, %v3486
        %3488 = vmatmul.f32.gmra.mxu0 %v2258
        %v3489 = vpop.f32.mrf.mxu0
        %v3490 = vadd.f32 %v3377, %v3489
        %3491 = vmatmul.f32.gmra.mxu0 %v2267
        %v3492 = vpop.f32.mrf.mxu0
        %v3493 = vadd.f32 %v3380, %v3492
        %3494 = vmatmul.f32.gmra.mxu0 %v2276
        %v3495 = vpop.f32.mrf.mxu0
        %v3496 = vadd.f32 %v3383, %v3495
        %3497 = vmatmul.f32.gmra.mxu0 %v2285
        %v3498 = vpop.f32.mrf.mxu0
        %v3499 = vadd.f32 %v3386, %v3498
        %3500 = vmatmul.f32.gmra.mxu0 %v2294
        %v3501 = vpop.f32.mrf.mxu0
        %v3502 = vadd.f32 %v3389, %v3501
        %3503 = vmatmul.f32.gmra.mxu0 %v2303
        %v3504 = vpop.f32.mrf.mxu0
        %v3505 = vadd.f32 %v3392, %v3504
        %3506 = vmatmul.f32.gmra.mxu0 %v2312
        %v3507 = vpop.f32.mrf.mxu0
        %v3508 = vadd.f32 %v3395, %v3507
        %3509 = vmatmul.f32.gmra.mxu0 %v2321
        %v3510 = vpop.f32.mrf.mxu0
        %v3511 = vadd.f32 %v3398, %v3510
        %3512 = vmatmul.f32.gmra.mxu0 %v2330
        %v3513 = vpop.f32.mrf.mxu0
        %v3514 = vadd.f32 %v3401, %v3513
        %3515 = vmatmul.f32.gmra.mxu0 %v2339
        %v3516 = vpop.f32.mrf.mxu0
        %v3517 = vadd.f32 %v3404, %v3516
        %3518 = vmatmul.f32.gmra.mxu0 %v2348
        %v3519 = vpop.f32.mrf.mxu0
        %v3520 = vadd.f32 %v3407, %v3519
        %3521 = vmatmul.f32.gmra.mxu0 %v2357
        %v3522 = vpop.f32.mrf.mxu0
        %v3523 = vadd.f32 %v3410, %v3522
        %3524 = vmatmul.f32.gmra.mxu0 %v2366
        %v3525 = vpop.f32.mrf.mxu0
        %v3526 = vadd.f32 %v3413, %v3525
        %3527 = vmatmul.f32.gmra.mxu0 %v2375
        %v3528 = vpop.f32.mrf.mxu0
        %v3529 = vadd.f32 %v3416, %v3528
        %3530 = vmatmul.f32.gmra.mxu0 %v2384
        %v3531 = vpop.f32.mrf.mxu0
        %v3532 = vadd.f32 %v3419, %v3531
        %3533 = vmatmul.f32.gmra.mxu0 %v2393
        %v3534 = vpop.f32.mrf.mxu0
        %v3535 = vadd.f32 %v3422, %v3534
        %3536 = vmatmul.f32.gmra.mxu0 %v2402
        %v3537 = vpop.f32.mrf.mxu0
        %v3538 = vadd.f32 %v3425, %v3537
        %3539 = vmatmul.f32.gmra.mxu0 %v2411
        %v3540 = vpop.f32.mrf.mxu0
        %v3541 = vadd.f32 %v3428, %v3540
        %3542 = vmatmul.f32.gmra.mxu0 %v2420
        %v3543 = vpop.f32.mrf.mxu0
        %v3544 = vadd.f32 %v3431, %v3543
        %3545 = vmatmul.f32.gmra.mxu0 %v2429
        %v3546 = vpop.f32.mrf.mxu0
        %v3547 = vadd.f32 %v3434, %v3546
        %3548 = vmatmul.f32.gmra.mxu0 %v2438
        %v3549 = vpop.f32.mrf.mxu0
        %v3550 = vadd.f32 %v3437, %v3549
        %3551 = vmatmul.f32.gmra.mxu0 %v2447
        %v3552 = vpop.f32.mrf.mxu0
        %v3553 = vadd.f32 %v3440, %v3552
        %3554 = vmatmul.f32.gmra.mxu0 %v2456
        %v3555 = vpop.f32.mrf.mxu0
        %v3556 = vadd.f32 %v3443, %v3555
        %3557 = vmatmul.f32.gmra.mxu0 %v2465
        %v3558 = vpop.f32.mrf.mxu0
        %v3559 = vadd.f32 %v3446, %v3558
        %3560 = vmatmul.f32.gmra.mxu0 %v2474
        %v3561 = vpop.f32.mrf.mxu0
        %v3562 = vadd.f32 %v3449, %v3561
        %3563 = vmatmul.f32.gmra.mxu0 %v2483
        %v3564 = vpop.f32.mrf.mxu0
        %v3565 = vadd.f32 %v3452, %v3564
        %3566 = vmatmul.f32.gmra.mxu0 %v2492
        %v3567 = vpop.f32.mrf.mxu0
        %v3568 = vadd.f32 %v3455, %v3567
        %3569 = vmatmul.f32.gmra.mxu0 %v2501
        %v3570 = vpop.f32.mrf.mxu0
        %v3571 = vadd.f32 %v3458, %v3570
        %3572 = vmatmul.f32.gmra.mxu0 %v2510
        %v3573 = vpop.f32.mrf.mxu0
        %v3574 = vadd.f32 %v3461, %v3573
        %3575 = vmatmul.f32.gmra.mxu0 %v2519
        %v3576 = vpop.f32.mrf.mxu0
        %v3577 = vadd.f32 %v3464, %v3576
        %3578 = vmatmul.f32.gmra.mxu0 %v2528
        %v3579 = vpop.f32.mrf.mxu0
        %v3580 = vadd.f32 %v3467, %v3579
        %3581 = vdwg.mxu0
        %3582 = vmatpush.msra.mxu0 %v2673
        %3583 = vmatpush.msra.mxu0 %v2672
        %3584 = vmatpush.msra.mxu0 %v2671
        %3585 = vmatpush.msra.mxu0 %v2670
        %3586 = vmatpush.msra.mxu0 %v2669
        %3587 = vmatpush.msra.mxu0 %v2668
        %3588 = vmatpush.msra.mxu0 %v2667
        %3589 = vmatpush.msra.mxu0 %v2666
        %3590 = vmatpush.msra.mxu0 %v2665
        %3591 = vmatpush.msra.mxu0 %v2664
        %3592 = vmatpush.msra.mxu0 %v2663
        %3593 = vmatpush.msra.mxu0 %v2662
        %3594 = vmatpush.msra.mxu0 %v2661
        %3595 = vmatpush.msra.mxu0 %v2660
        %3596 = vmatpush.msra.mxu0 %v2659
        %3597 = vmatpush.msra.mxu0 %v2658
        %3598 = vmatmul.f32.gmra.mxu0 %v2250
        %v3599 = vpop.f32.mrf.mxu0
        %v3600 = vadd.f32 %v3487, %v3599
        %3601 = vmatmul.f32.gmra.mxu0 %v2259
        %v3602 = vpop.f32.mrf.mxu0
        %v3603 = vadd.f32 %v3490, %v3602
        %3604 = vmatmul.f32.gmra.mxu0 %v2268
        %v3605 = vpop.f32.mrf.mxu0
        %v3606 = vadd.f32 %v3493, %v3605
        %3607 = vmatmul.f32.gmra.mxu0 %v2277
        %v3608 = vpop.f32.mrf.mxu0
        %v3609 = vadd.f32 %v3496, %v3608
        %3610 = vmatmul.f32.gmra.mxu0 %v2286
        %v3611 = vpop.f32.mrf.mxu0
        %v3612 = vadd.f32 %v3499, %v3611
        %3613 = vmatmul.f32.gmra.mxu0 %v2295
        %v3614 = vpop.f32.mrf.mxu0
        %v3615 = vadd.f32 %v3502, %v3614
        %3616 = vmatmul.f32.gmra.mxu0 %v2304
        %v3617 = vpop.f32.mrf.mxu0
        %v3618 = vadd.f32 %v3505, %v3617
        %3619 = vmatmul.f32.gmra.mxu0 %v2313
        %v3620 = vpop.f32.mrf.mxu0
        %v3621 = vadd.f32 %v3508, %v3620
        %3622 = vmatmul.f32.gmra.mxu0 %v2322
        %v3623 = vpop.f32.mrf.mxu0
        %v3624 = vadd.f32 %v3511, %v3623
        %3625 = vmatmul.f32.gmra.mxu0 %v2331
        %v3626 = vpop.f32.mrf.mxu0
        %v3627 = vadd.f32 %v3514, %v3626
        %3628 = vmatmul.f32.gmra.mxu0 %v2340
        %v3629 = vpop.f32.mrf.mxu0
        %v3630 = vadd.f32 %v3517, %v3629
        %3631 = vmatmul.f32.gmra.mxu0 %v2349
        %v3632 = vpop.f32.mrf.mxu0
        %v3633 = vadd.f32 %v3520, %v3632
        %3634 = vmatmul.f32.gmra.mxu0 %v2358
        %v3635 = vpop.f32.mrf.mxu0
        %v3636 = vadd.f32 %v3523, %v3635
        %3637 = vmatmul.f32.gmra.mxu0 %v2367
        %v3638 = vpop.f32.mrf.mxu0
        %v3639 = vadd.f32 %v3526, %v3638
        %3640 = vmatmul.f32.gmra.mxu0 %v2376
        %v3641 = vpop.f32.mrf.mxu0
        %v3642 = vadd.f32 %v3529, %v3641
        %3643 = vmatmul.f32.gmra.mxu0 %v2385
        %v3644 = vpop.f32.mrf.mxu0
        %v3645 = vadd.f32 %v3532, %v3644
        %3646 = vmatmul.f32.gmra.mxu0 %v2394
        %v3647 = vpop.f32.mrf.mxu0
        %v3648 = vadd.f32 %v3535, %v3647
        %3649 = vmatmul.f32.gmra.mxu0 %v2403
        %v3650 = vpop.f32.mrf.mxu0
        %v3651 = vadd.f32 %v3538, %v3650
        %3652 = vmatmul.f32.gmra.mxu0 %v2412
        %v3653 = vpop.f32.mrf.mxu0
        %v3654 = vadd.f32 %v3541, %v3653
        %3655 = vmatmul.f32.gmra.mxu0 %v2421
        %v3656 = vpop.f32.mrf.mxu0
        %v3657 = vadd.f32 %v3544, %v3656
        %3658 = vmatmul.f32.gmra.mxu0 %v2430
        %v3659 = vpop.f32.mrf.mxu0
        %v3660 = vadd.f32 %v3547, %v3659
        %3661 = vmatmul.f32.gmra.mxu0 %v2439
        %v3662 = vpop.f32.mrf.mxu0
        %v3663 = vadd.f32 %v3550, %v3662
        %3664 = vmatmul.f32.gmra.mxu0 %v2448
        %v3665 = vpop.f32.mrf.mxu0
        %v3666 = vadd.f32 %v3553, %v3665
        %3667 = vmatmul.f32.gmra.mxu0 %v2457
        %v3668 = vpop.f32.mrf.mxu0
        %v3669 = vadd.f32 %v3556, %v3668
        %3670 = vmatmul.f32.gmra.mxu0 %v2466
        %v3671 = vpop.f32.mrf.mxu0
        %v3672 = vadd.f32 %v3559, %v3671
        %3673 = vmatmul.f32.gmra.mxu0 %v2475
        %v3674 = vpop.f32.mrf.mxu0
        %v3675 = vadd.f32 %v3562, %v3674
        %3676 = vmatmul.f32.gmra.mxu0 %v2484
        %v3677 = vpop.f32.mrf.mxu0
        %v3678 = vadd.f32 %v3565, %v3677
        %3679 = vmatmul.f32.gmra.mxu0 %v2493
        %v3680 = vpop.f32.mrf.mxu0
        %v3681 = vadd.f32 %v3568, %v3680
        %3682 = vmatmul.f32.gmra.mxu0 %v2502
        %v3683 = vpop.f32.mrf.mxu0
        %v3684 = vadd.f32 %v3571, %v3683
        %3685 = vmatmul.f32.gmra.mxu0 %v2511
        %v3686 = vpop.f32.mrf.mxu0
        %v3687 = vadd.f32 %v3574, %v3686
        %3688 = vmatmul.f32.gmra.mxu0 %v2520
        %v3689 = vpop.f32.mrf.mxu0
        %v3690 = vadd.f32 %v3577, %v3689
        %3691 = vmatmul.f32.gmra.mxu0 %v2529
        %v3692 = vpop.f32.mrf.mxu0
        %v3693 = vadd.f32 %v3580, %v3692
        %3694 = vdwg.mxu0
        %v3695 = vmax.f32 %v3600, 0.0
        %v3696 = vmax.f32 %v3603, 0.0
        %v3697 = vmax.f32 %v3606, 0.0
        %v3698 = vmax.f32 %v3609, 0.0
        %v3699 = vmax.f32 %v3612, 0.0
        %v3700 = vmax.f32 %v3615, 0.0
        %v3701 = vmax.f32 %v3618, 0.0
        %v3702 = vmax.f32 %v3621, 0.0
        %v3703 = vmax.f32 %v3624, 0.0
        %v3704 = vmax.f32 %v3627, 0.0
        %v3705 = vmax.f32 %v3630, 0.0
        %v3706 = vmax.f32 %v3633, 0.0
        %v3707 = vmax.f32 %v3636, 0.0
        %v3708 = vmax.f32 %v3639, 0.0
        %v3709 = vmax.f32 %v3642, 0.0
        %v3710 = vmax.f32 %v3645, 0.0
        %v3711 = vmax.f32 %v3648, 0.0
        %v3712 = vmax.f32 %v3651, 0.0
        %v3713 = vmax.f32 %v3654, 0.0
        %v3714 = vmax.f32 %v3657, 0.0
        %v3715 = vmax.f32 %v3660, 0.0
        %v3716 = vmax.f32 %v3663, 0.0
        %v3717 = vmax.f32 %v3666, 0.0
        %v3718 = vmax.f32 %v3669, 0.0
        %v3719 = vmax.f32 %v3672, 0.0
        %v3720 = vmax.f32 %v3675, 0.0
        %v3721 = vmax.f32 %v3678, 0.0
        %v3722 = vmax.f32 %v3681, 0.0
        %v3723 = vmax.f32 %v3684, 0.0
        %v3724 = vmax.f32 %v3687, 0.0
        %v3725 = vmax.f32 %v3690, 0.0
        %v3726 = vmax.f32 %v3693, 0.0
        %v3727 = vld [vmem:[%s3] sm:$0xff]
        %v3728 = vld [vmem:[%s3 + $0x8] sm:$0xff]
        %v3729 = vld [vmem:[%s3 + $0x10] sm:$0xff]
        %v3730 = vld [vmem:[%s3 + $0x18] sm:$0xff]
        %v3731 = vld [vmem:[%s3 + $0x20] sm:$0xff]
        %v3732 = vld [vmem:[%s3 + $0x28] sm:$0xff]
        %v3733 = vld [vmem:[%s3 + $0x30] sm:$0xff]
        %v3734 = vld [vmem:[%s3 + $0x38] sm:$0xff]
        %v3735 = vld [vmem:[%s3 + $0x40] sm:$0xff]
        %v3736 = vld [vmem:[%s3 + $0x48] sm:$0xff]
        %v3737 = vld [vmem:[%s3 + $0x50] sm:$0xff]
        %v3738 = vld [vmem:[%s3 + $0x58] sm:$0xff]
        %v3739 = vld [vmem:[%s3 + $0x60] sm:$0xff]
        %v3740 = vld [vmem:[%s3 + $0x68] sm:$0xff]
        %v3741 = vld [vmem:[%s3 + $0x70] sm:$0xff]
        %v3742 = vld [vmem:[%s3 + $0x78] sm:$0xff]
        %v3743 = vld [vmem:[%s3 + $0x80] sm:$0xff]
        %v3744 = vld [vmem:[%s3 + $0x88] sm:$0xff]
        %v3745 = vld [vmem:[%s3 + $0x90] sm:$0xff]
        %v3746 = vld [vmem:[%s3 + $0x98] sm:$0xff]
        %v3747 = vld [vmem:[%s3 + $0xa0] sm:$0xff]
        %v3748 = vld [vmem:[%s3 + $0xa8] sm:$0xff]
        %v3749 = vld [vmem:[%s3 + $0xb0] sm:$0xff]
        %v3750 = vld [vmem:[%s3 + $0xb8] sm:$0xff]
        %v3751 = vld [vmem:[%s3 + $0xc0] sm:$0xff]
        %v3752 = vld [vmem:[%s3 + $0xc8] sm:$0xff]
        %v3753 = vld [vmem:[%s3 + $0xd0] sm:$0xff]
        %v3754 = vld [vmem:[%s3 + $0xd8] sm:$0xff]
        %v3755 = vld [vmem:[%s3 + $0xe0] sm:$0xff]
        %v3756 = vld [vmem:[%s3 + $0xe8] sm:$0xff]
        %v3757 = vld [vmem:[%s3 + $0xf0] sm:$0xff]
        %v3758 = vld [vmem:[%s3 + $0xf8] sm:$0xff]
        %v3759 = vld [vmem:[%s8] sm:$0x3]
        %v3761 = vperm.slane %v3759, 0
        %v3762 = vperm.slane %v3759, 1
        %3765 = vmatpush.msra.mxu0 %v3757
        %3766 = vmatpush.msra.mxu0 %v3755
        %3767 = vmatpush.msra.mxu0 %v3753
        %3768 = vmatpush.msra.mxu0 %v3751
        %3769 = vmatpush.msra.mxu0 %v3749
        %3770 = vmatpush.msra.mxu0 %v3747
        %3771 = vmatpush.msra.mxu0 %v3745
        %3772 = vmatpush.msra.mxu0 %v3743
        %3773 = vmatpush.msra.mxu0 %v3741
        %3774 = vmatpush.msra.mxu0 %v3739
        %3775 = vmatpush.msra.mxu0 %v3737
        %3776 = vmatpush.msra.mxu0 %v3735
        %3777 = vmatpush.msra.mxu0 %v3733
        %3778 = vmatpush.msra.mxu0 %v3731
        %3779 = vmatpush.msra.mxu0 %v3729
        %3780 = vmatpush.msra.mxu0 %v3727
        %3781 = vmatmul.f32.gmra.mxu0 %v3695
        %v3782 = vpop.f32.mrf.mxu0
        %v3783 = vadd.f32 %v3761, %v3782
        %3784 = vmatmul.f32.gmra.mxu0 %v3696
        %v3785 = vpop.f32.mrf.mxu0
        %v3786 = vadd.f32 %v3761, %v3785
        %3787 = vmatmul.f32.gmra.mxu0 %v3697
        %v3788 = vpop.f32.mrf.mxu0
        %v3789 = vadd.f32 %v3761, %v3788
        %3790 = vmatmul.f32.gmra.mxu0 %v3698
        %v3791 = vpop.f32.mrf.mxu0
        %v3792 = vadd.f32 %v3761, %v3791
        %3793 = vmatmul.f32.gmra.mxu0 %v3699
        %v3794 = vpop.f32.mrf.mxu0
        %v3795 = vadd.f32 %v3761, %v3794
        %3796 = vmatmul.f32.gmra.mxu0 %v3700
        %v3797 = vpop.f32.mrf.mxu0
        %v3798 = vadd.f32 %v3761, %v3797
        %3799 = vmatmul.f32.gmra.mxu0 %v3701
        %v3800 = vpop.f32.mrf.mxu0
        %v3801 = vadd.f32 %v3761, %v3800
        %3802 = vmatmul.f32.gmra.mxu0 %v3702
        %v3803 = vpop.f32.mrf.mxu0
        %v3804 = vadd.f32 %v3761, %v3803
        %3805 = vmatmul.f32.gmra.mxu0 %v3703
        %v3806 = vpop.f32.mrf.mxu0
        %v3807 = vadd.f32 %v3761, %v3806
        %3808 = vmatmul.f32.gmra.mxu0 %v3704
        %v3809 = vpop.f32.mrf.mxu0
        %v3810 = vadd.f32 %v3761, %v3809
        %3811 = vmatmul.f32.gmra.mxu0 %v3705
        %v3812 = vpop.f32.mrf.mxu0
        %v3813 = vadd.f32 %v3761, %v3812
        %3814 = vmatmul.f32.gmra.mxu0 %v3706
        %v3815 = vpop.f32.mrf.mxu0
        %v3816 = vadd.f32 %v3761, %v3815
        %3817 = vmatmul.f32.gmra.mxu0 %v3707
        %v3818 = vpop.f32.mrf.mxu0
        %v3819 = vadd.f32 %v3761, %v3818
        %3820 = vmatmul.f32.gmra.mxu0 %v3708
        %v3821 = vpop.f32.mrf.mxu0
        %v3822 = vadd.f32 %v3761, %v3821
        %3823 = vmatmul.f32.gmra.mxu0 %v3709
        %v3824 = vpop.f32.mrf.mxu0
        %v3825 = vadd.f32 %v3761, %v3824
        %3826 = vmatmul.f32.gmra.mxu0 %v3710
        %v3827 = vpop.f32.mrf.mxu0
        %v3828 = vadd.f32 %v3761, %v3827
        %3829 = vmatmul.f32.gmra.mxu0 %v3711
        %v3830 = vpop.f32.mrf.mxu0
        %v3831 = vadd.f32 %v3761, %v3830
        %3832 = vmatmul.f32.gmra.mxu0 %v3712
        %v3833 = vpop.f32.mrf.mxu0
        %v3834 = vadd.f32 %v3761, %v3833
        %3835 = vmatmul.f32.gmra.mxu0 %v3713
        %v3836 = vpop.f32.mrf.mxu0
        %v3837 = vadd.f32 %v3761, %v3836
        %3838 = vmatmul.f32.gmra.mxu0 %v3714
        %v3839 = vpop.f32.mrf.mxu0
        %v3840 = vadd.f32 %v3761, %v3839
        %3841 = vmatmul.f32.gmra.mxu0 %v3715
        %v3842 = vpop.f32.mrf.mxu0
        %v3843 = vadd.f32 %v3761, %v3842
        %3844 = vmatmul.f32.gmra.mxu0 %v3716
        %v3845 = vpop.f32.mrf.mxu0
        %v3846 = vadd.f32 %v3761, %v3845
        %3847 = vmatmul.f32.gmra.mxu0 %v3717
        %v3848 = vpop.f32.mrf.mxu0
        %v3849 = vadd.f32 %v3761, %v3848
        %3850 = vmatmul.f32.gmra.mxu0 %v3718
        %v3851 = vpop.f32.mrf.mxu0
        %v3852 = vadd.f32 %v3761, %v3851
        %3853 = vmatmul.f32.gmra.mxu0 %v3719
        %v3854 = vpop.f32.mrf.mxu0
        %v3855 = vadd.f32 %v3761, %v3854
        %3856 = vmatmul.f32.gmra.mxu0 %v3720
        %v3857 = vpop.f32.mrf.mxu0
        %v3858 = vadd.f32 %v3761, %v3857
        %3859 = vmatmul.f32.gmra.mxu0 %v3721
        %v3860 = vpop.f32.mrf.mxu0
        %v3861 = vadd.f32 %v3761, %v3860
        %3862 = vmatmul.f32.gmra.mxu0 %v3722
        %v3863 = vpop.f32.mrf.mxu0
        %v3864 = vadd.f32 %v3761, %v3863
        %3865 = vmatmul.f32.gmra.mxu0 %v3723
        %v3866 = vpop.f32.mrf.mxu0
        %v3867 = vadd.f32 %v3761, %v3866
        %3868 = vmatmul.f32.gmra.mxu0 %v3724
        %v3869 = vpop.f32.mrf.mxu0
        %v3870 = vadd.f32 %v3761, %v3869
        %3871 = vmatmul.f32.gmra.mxu0 %v3725
        %v3872 = vpop.f32.mrf.mxu0
        %v3873 = vadd.f32 %v3761, %v3872
        %3874 = vmatmul.f32.gmra.mxu0 %v3726
        %v3875 = vpop.f32.mrf.mxu0
        %v3876 = vadd.f32 %v3761, %v3875
        %3877 = vdwg.mxu0
        %3878 = vmatpush.msra.mxu0 %v3758
        %3879 = vmatpush.msra.mxu0 %v3756
        %3880 = vmatpush.msra.mxu0 %v3754
        %3881 = vmatpush.msra.mxu0 %v3752
        %3882 = vmatpush.msra.mxu0 %v3750
        %3883 = vmatpush.msra.mxu0 %v3748
        %3884 = vmatpush.msra.mxu0 %v3746
        %3885 = vmatpush.msra.mxu0 %v3744
        %3886 = vmatpush.msra.mxu0 %v3742
        %3887 = vmatpush.msra.mxu0 %v3740
        %3888 = vmatpush.msra.mxu0 %v3738
        %3889 = vmatpush.msra.mxu0 %v3736
        %3890 = vmatpush.msra.mxu0 %v3734
        %3891 = vmatpush.msra.mxu0 %v3732
        %3892 = vmatpush.msra.mxu0 %v3730
        %3893 = vmatpush.msra.mxu0 %v3728
        %3894 = vmatmul.f32.gmra.mxu0 %v3695
        %v3895 = vpop.f32.mrf.mxu0
        %v3896 = vadd.f32 %v3762, %v3895
        %3897 = vmatmul.f32.gmra.mxu0 %v3696
        %v3898 = vpop.f32.mrf.mxu0
        %v3899 = vadd.f32 %v3762, %v3898
        %3900 = vmatmul.f32.gmra.mxu0 %v3697
        %v3901 = vpop.f32.mrf.mxu0
        %v3902 = vadd.f32 %v3762, %v3901
        %3903 = vmatmul.f32.gmra.mxu0 %v3698
        %v3904 = vpop.f32.mrf.mxu0
        %v3905 = vadd.f32 %v3762, %v3904
        %3906 = vmatmul.f32.gmra.mxu0 %v3699
        %v3907 = vpop.f32.mrf.mxu0
        %v3908 = vadd.f32 %v3762, %v3907
        %3909 = vmatmul.f32.gmra.mxu0 %v3700
        %v3910 = vpop.f32.mrf.mxu0
        %v3911 = vadd.f32 %v3762, %v3910
        %3912 = vmatmul.f32.gmra.mxu0 %v3701
        %v3913 = vpop.f32.mrf.mxu0
        %v3914 = vadd.f32 %v3762, %v3913
        %3915 = vmatmul.f32.gmra.mxu0 %v3702
        %v3916 = vpop.f32.mrf.mxu0
        %v3917 = vadd.f32 %v3762, %v3916
        %3918 = vmatmul.f32.gmra.mxu0 %v3703
        %v3919 = vpop.f32.mrf.mxu0
        %v3920 = vadd.f32 %v3762, %v3919
        %3921 = vmatmul.f32.gmra.mxu0 %v3704
        %v3922 = vpop.f32.mrf.mxu0
        %v3923 = vadd.f32 %v3762, %v3922
        %3924 = vmatmul.f32.gmra.mxu0 %v3705
        %v3925 = vpop.f32.mrf.mxu0
        %v3926 = vadd.f32 %v3762, %v3925
        %3927 = vmatmul.f32.gmra.mxu0 %v3706
        %v3928 = vpop.f32.mrf.mxu0
        %v3929 = vadd.f32 %v3762, %v3928
        %3930 = vmatmul.f32.gmra.mxu0 %v3707
        %v3931 = vpop.f32.mrf.mxu0
        %v3932 = vadd.f32 %v3762, %v3931
        %3933 = vmatmul.f32.gmra.mxu0 %v3708
        %v3934 = vpop.f32.mrf.mxu0
        %v3935 = vadd.f32 %v3762, %v3934
        %3936 = vmatmul.f32.gmra.mxu0 %v3709
        %v3937 = vpop.f32.mrf.mxu0
        %v3938 = vadd.f32 %v3762, %v3937
        %3939 = vmatmul.f32.gmra.mxu0 %v3710
        %v3940 = vpop.f32.mrf.mxu0
        %v3941 = vadd.f32 %v3762, %v3940
        %3942 = vmatmul.f32.gmra.mxu0 %v3711
        %v3943 = vpop.f32.mrf.mxu0
        %v3944 = vadd.f32 %v3762, %v3943
        %3945 = vmatmul.f32.gmra.mxu0 %v3712
        %v3946 = vpop.f32.mrf.mxu0
        %v3947 = vadd.f32 %v3762, %v3946
        %3948 = vmatmul.f32.gmra.mxu0 %v3713
        %v3949 = vpop.f32.mrf.mxu0
        %v3950 = vadd.f32 %v3762, %v3949
        %3951 = vmatmul.f32.gmra.mxu0 %v3714
        %v3952 = vpop.f32.mrf.mxu0
        %v3953 = vadd.f32 %v3762, %v3952
        %3954 = vmatmul.f32.gmra.mxu0 %v3715
        %v3955 = vpop.f32.mrf.mxu0
        %v3956 = vadd.f32 %v3762, %v3955
        %3957 = vmatmul.f32.gmra.mxu0 %v3716
        %v3958 = vpop.f32.mrf.mxu0
        %v3959 = vadd.f32 %v3762, %v3958
        %3960 = vmatmul.f32.gmra.mxu0 %v3717
        %v3961 = vpop.f32.mrf.mxu0
        %v3962 = vadd.f32 %v3762, %v3961
        %3963 = vmatmul.f32.gmra.mxu0 %v3718
        %v3964 = vpop.f32.mrf.mxu0
        %v3965 = vadd.f32 %v3762, %v3964
        %3966 = vmatmul.f32.gmra.mxu0 %v3719
        %v3967 = vpop.f32.mrf.mxu0
        %v3968 = vadd.f32 %v3762, %v3967
        %3969 = vmatmul.f32.gmra.mxu0 %v3720
        %v3970 = vpop.f32.mrf.mxu0
        %v3971 = vadd.f32 %v3762, %v3970
        %3972 = vmatmul.f32.gmra.mxu0 %v3721
        %v3973 = vpop.f32.mrf.mxu0
        %v3974 = vadd.f32 %v3762, %v3973
        %3975 = vmatmul.f32.gmra.mxu0 %v3722
        %v3976 = vpop.f32.mrf.mxu0
        %v3977 = vadd.f32 %v3762, %v3976
        %3978 = vmatmul.f32.gmra.mxu0 %v3723
        %v3979 = vpop.f32.mrf.mxu0
        %v3980 = vadd.f32 %v3762, %v3979
        %3981 = vmatmul.f32.gmra.mxu0 %v3724
        %v3982 = vpop.f32.mrf.mxu0
        %v3983 = vadd.f32 %v3762, %v3982
        %3984 = vmatmul.f32.gmra.mxu0 %v3725
        %v3985 = vpop.f32.mrf.mxu0
        %v3986 = vadd.f32 %v3762, %v3985
        %3987 = vmatmul.f32.gmra.mxu0 %v3726
        %v3988 = vpop.f32.mrf.mxu0
        %v3989 = vadd.f32 %v3762, %v3988
        %3990 = vdwg.mxu0
        %v3991 = vadd.f32 %v3783, %v679
        %v3992 = vadd.f32 %v3896, %v792
        %v3993 = vadd.f32 %v3786, %v682
        %v3994 = vadd.f32 %v3899, %v795
        %v3995 = vadd.f32 %v3789, %v685
        %v3996 = vadd.f32 %v3902, %v798
        %v3997 = vadd.f32 %v3792, %v688
        %v3998 = vadd.f32 %v3905, %v801
        %v3999 = vadd.f32 %v3795, %v691
        %v4000 = vadd.f32 %v3908, %v804
        %v4001 = vadd.f32 %v3798, %v694
        %v4002 = vadd.f32 %v3911, %v807
        %v4003 = vadd.f32 %v3801, %v697
        %v4004 = vadd.f32 %v3914, %v810
        %v4005 = vadd.f32 %v3804, %v700
        %v4006 = vadd.f32 %v3917, %v813
        %v4007 = vadd.f32 %v3807, %v703
        %v4008 = vadd.f32 %v3920, %v816
        %v4009 = vadd.f32 %v3810, %v706
        %v4010 = vadd.f32 %v3923, %v819
        %v4011 = vadd.f32 %v3813, %v709
        %v4012 = vadd.f32 %v3926, %v822
        %v4013 = vadd.f32 %v3816, %v712
        %v4014 = vadd.f32 %v3929, %v825
        %v4015 = vadd.f32 %v3819, %v715
        %v4016 = vadd.f32 %v3932, %v828
        %v4017 = vadd.f32 %v3822, %v718
        %v4018 = vadd.f32 %v3935, %v831
        %v4019 = vadd.f32 %v3825, %v721
        %v4020 = vadd.f32 %v3938, %v834
        %v4021 = vadd.f32 %v3828, %v724
        %v4022 = vadd.f32 %v3941, %v837
        %v4023 = vadd.f32 %v3831, %v727
        %v4024 = vadd.f32 %v3944, %v840
        %v4025 = vadd.f32 %v3834, %v730
        %v4026 = vadd.f32 %v3947, %v843
        %v4027 = vadd.f32 %v3837, %v733
        %v4028 = vadd.f32 %v3950, %v846
        %v4029 = vadd.f32 %v3840, %v736
        %v4030 = vadd.f32 %v3953, %v849
        %v4031 = vadd.f32 %v3843, %v739
        %v4032 = vadd.f32 %v3956, %v852
        %v4033 = vadd.f32 %v3846, %v742
        %v4034 = vadd.f32 %v3959, %v855
        %v4035 = vadd.f32 %v3849, %v745
        %v4036 = vadd.f32 %v3962, %v858
        %v4037 = vadd.f32 %v3852, %v748
        %v4038 = vadd.f32 %v3965, %v861
        %v4039 = vadd.f32 %v3855, %v751
        %v4040 = vadd.f32 %v3968, %v864
        %v4041 = vadd.f32 %v3858, %v754
        %v4042 = vadd.f32 %v3971, %v867
        %v4043 = vadd.f32 %v3861, %v757
        %v4044 = vadd.f32 %v3974, %v870
        %v4045 = vadd.f32 %v3864, %v760
        %v4046 = vadd.f32 %v3977, %v873
        %v4047 = vadd.f32 %v3867, %v763
        %v4048 = vadd.f32 %v3980, %v876
        %v4049 = vadd.f32 %v3870, %v766
        %v4050 = vadd.f32 %v3983, %v879
        %v4051 = vadd.f32 %v3873, %v769
        %v4052 = vadd.f32 %v3986, %v882
        %v4053 = vadd.f32 %v3876, %v772
        %v4054 = vadd.f32 %v3989, %v885
        %v4055 = vadd.f32 %v3991, %v3993
        %v4056 = vadd.f32 %v4055, %v3995
        %v4057 = vadd.f32 %v4056, %v3997
        %v4058 = vadd.f32 %v4057, %v3999
        %v4059 = vadd.f32 %v4058, %v4001
        %v4060 = vadd.f32 %v4059, %v4003
        %v4061 = vadd.f32 %v4060, %v4005
        %v4062 = vadd.f32 %v4061, %v4007
        %v4063 = vadd.f32 %v4062, %v4009
        %v4064 = vadd.f32 %v4063, %v4011
        %v4065 = vadd.f32 %v4064, %v4013
        %v4066 = vadd.f32 %v4065, %v4015
        %v4067 = vadd.f32 %v4066, %v4017
        %v4068 = vadd.f32 %v4067, %v4019
        %v4069 = vadd.f32 %v4068, %v4021
        %v4070 = vadd.f32 %v4069, %v4023
        %v4071 = vadd.f32 %v4070, %v4025
        %v4072 = vadd.f32 %v4071, %v4027
        %v4073 = vadd.f32 %v4072, %v4029
        %v4074 = vadd.f32 %v4073, %v4031
        %v4075 = vadd.f32 %v4074, %v4033
        %v4076 = vadd.f32 %v4075, %v4035
        %v4077 = vadd.f32 %v4076, %v4037
        %v4078 = vadd.f32 %v4077, %v4039
        %v4079 = vadd.f32 %v4078, %v4041
        %v4080 = vadd.f32 %v4079, %v4043
        %v4081 = vadd.f32 %v4080, %v4045
        %v4082 = vadd.f32 %v4081, %v4047
        %v4083 = vadd.f32 %v4082, %v4049
        %v4084 = vadd.f32 %v4083, %v4051
        %v4085 = vadd.f32 %v4084, %v4053
        %v4086 = vrot.slane %v4085, 4
        %v4087 = vadd.f32 %v4085, %v4086
        %v4088 = vrot.slane %v4087, 2
        %v4089 = vadd.f32 %v4087, %v4088
        %v4090 = vrot.slane %v4089, 1
        %v4091 = vadd.f32 %v4089, %v4090
        %v4092 = vadd.f32 %v3992, %v3994
        %v4093 = vadd.f32 %v4092, %v3996
        %v4094 = vadd.f32 %v4093, %v3998
        %v4095 = vadd.f32 %v4094, %v4000
        %v4096 = vadd.f32 %v4095, %v4002
        %v4097 = vadd.f32 %v4096, %v4004
        %v4098 = vadd.f32 %v4097, %v4006
        %v4099 = vadd.f32 %v4098, %v4008
        %v4100 = vadd.f32 %v4099, %v4010
        %v4101 = vadd.f32 %v4100, %v4012
        %v4102 = vadd.f32 %v4101, %v4014
        %v4103 = vadd.f32 %v4102, %v4016
        %v4104 = vadd.f32 %v4103, %v4018
        %v4105 = vadd.f32 %v4104, %v4020
        %v4106 = vadd.f32 %v4105, %v4022
        %v4107 = vadd.f32 %v4106, %v4024
        %v4108 = vadd.f32 %v4107, %v4026
        %v4109 = vadd.f32 %v4108, %v4028
        %v4110 = vadd.f32 %v4109, %v4030
        %v4111 = vadd.f32 %v4110, %v4032
        %v4112 = vadd.f32 %v4111, %v4034
        %v4113 = vadd.f32 %v4112, %v4036
        %v4114 = vadd.f32 %v4113, %v4038
        %v4115 = vadd.f32 %v4114, %v4040
        %v4116 = vadd.f32 %v4115, %v4042
        %v4117 = vadd.f32 %v4116, %v4044
        %v4118 = vadd.f32 %v4117, %v4046
        %v4119 = vadd.f32 %v4118, %v4048
        %v4120 = vadd.f32 %v4119, %v4050
        %v4121 = vadd.f32 %v4120, %v4052
        %v4122 = vadd.f32 %v4121, %v4054
        %v4123 = vrot.slane %v4122, 4
        %v4124 = vadd.f32 %v4122, %v4123
        %v4125 = vrot.slane %v4124, 2
        %v4126 = vadd.f32 %v4124, %v4125
        %v4127 = vrot.slane %v4126, 1
        %v4128 = vadd.f32 %v4126, %v4127
        %v4129 = vrcp.pop 256.0
        %v4130 = vmul.f32 256.0, %v4129
        %v4131 = vsub.f32 1.0, %v4130
        %v4132 = vmul.f32 %v4129, %v4131
        %v4133 = vadd.f32 %v4129, %v4132
        %vm4134 = vweird.f32 %v4129
        %v4135 = vsel %vm4134, %v4129, %v4133
        %v4136 = vmul.f32 %v4091, %v4135
        %v4137 = vmul.f32 %v4128, %v4135
        %v4138 = vld [vmem:[%s4] sm:$0xff]
        %v4139 = vld [vmem:[%s4 + $0x8] sm:$0xff]
        %v4140 = vld [vmem:[%s4 + $0x10] sm:$0xff]
        %v4141 = vld [vmem:[%s4 + $0x18] sm:$0xff]
        %v4142 = vld [vmem:[%s4 + $0x20] sm:$0xff]
        %v4143 = vld [vmem:[%s4 + $0x28] sm:$0xff]
        %v4144 = vld [vmem:[%s4 + $0x30] sm:$0xff]
        %v4145 = vld [vmem:[%s4 + $0x38] sm:$0xff]
        %v4146 = vld [vmem:[%s4 + $0x40] sm:$0xff]
        %v4147 = vld [vmem:[%s4 + $0x48] sm:$0xff]
        %v4148 = vld [vmem:[%s4 + $0x50] sm:$0xff]
        %v4149 = vld [vmem:[%s4 + $0x58] sm:$0xff]
        %v4150 = vld [vmem:[%s4 + $0x60] sm:$0xff]
        %v4151 = vld [vmem:[%s4 + $0x68] sm:$0xff]
        %v4152 = vld [vmem:[%s4 + $0x70] sm:$0xff]
        %v4153 = vld [vmem:[%s4 + $0x78] sm:$0xff]
        %v4154 = vld [vmem:[%s4 + $0x80] sm:$0xff]
        %v4155 = vld [vmem:[%s4 + $0x88] sm:$0xff]
        %v4156 = vld [vmem:[%s4 + $0x90] sm:$0xff]
        %v4157 = vld [vmem:[%s4 + $0x98] sm:$0xff]
        %v4158 = vld [vmem:[%s4 + $0xa0] sm:$0xff]
        %v4159 = vld [vmem:[%s4 + $0xa8] sm:$0xff]
        %v4160 = vld [vmem:[%s4 + $0xb0] sm:$0xff]
        %v4161 = vld [vmem:[%s4 + $0xb8] sm:$0xff]
        %v4162 = vld [vmem:[%s4 + $0xc0] sm:$0xff]
        %v4163 = vld [vmem:[%s4 + $0xc8] sm:$0xff]
        %v4164 = vld [vmem:[%s4 + $0xd0] sm:$0xff]
        %v4165 = vld [vmem:[%s4 + $0xd8] sm:$0xff]
        %v4166 = vld [vmem:[%s4 + $0xe0] sm:$0xff]
        %v4167 = vld [vmem:[%s4 + $0xe8] sm:$0xff]
        %v4168 = vld [vmem:[%s4 + $0xf0] sm:$0xff]
        %v4169 = vld [vmem:[%s4 + $0xf8] sm:$0xff]
        %4170 = vmatpush.msra.mxu0 %v4153
        %4171 = vmatpush.msra.mxu0 %v4152
        %4172 = vmatpush.msra.mxu0 %v4151
        %4173 = vmatpush.msra.mxu0 %v4150
        %4174 = vmatpush.msra.mxu0 %v4149
        %4175 = vmatpush.msra.mxu0 %v4148
        %4176 = vmatpush.msra.mxu0 %v4147
        %4177 = vmatpush.msra.mxu0 %v4146
        %4178 = vmatpush.msra.mxu0 %v4145
        %4179 = vmatpush.msra.mxu0 %v4144
        %4180 = vmatpush.msra.mxu0 %v4143
        %4181 = vmatpush.msra.mxu0 %v4142
        %4182 = vmatpush.msra.mxu0 %v4141
        %4183 = vmatpush.msra.mxu0 %v4140
        %4184 = vmatpush.msra.mxu0 %v4139
        %4185 = vmatpush.msra.mxu0 %v4138
        %4186 = vmatmul.f32.gmra.mxu0 %v4136
        %v4187 = vpop.f32.mrf.mxu0
        %v4188 = vadd.f32 0.0, %v4187
        %4189 = vdwg.mxu0
        %4190 = vmatpush.msra.mxu0 %v4169
        %4191 = vmatpush.msra.mxu0 %v4168
        %4192 = vmatpush.msra.mxu0 %v4167
        %4193 = vmatpush.msra.mxu0 %v4166
        %4194 = vmatpush.msra.mxu0 %v4165
        %4195 = vmatpush.msra.mxu0 %v4164
        %4196 = vmatpush.msra.mxu0 %v4163
        %4197 = vmatpush.msra.mxu0 %v4162
        %4198 = vmatpush.msra.mxu0 %v4161
        %4199 = vmatpush.msra.mxu0 %v4160
        %4200 = vmatpush.msra.mxu0 %v4159
        %4201 = vmatpush.msra.mxu0 %v4158
        %4202 = vmatpush.msra.mxu0 %v4157
        %4203 = vmatpush.msra.mxu0 %v4156
        %4204 = vmatpush.msra.mxu0 %v4155
        %4205 = vmatpush.msra.mxu0 %v4154
        %4206 = vmatmul.f32.gmra.mxu0 %v4137
        %v4207 = vpop.f32.mrf.mxu0
        %v4208 = vadd.f32 %v4188, %v4207
        %4209 = vdwg.mxu0
        %v4210 = vmax.f32 %v4208, 0.0
        %v4211 = vld [vmem:[%s5] sm:$0xff]
        %v4212 = vld [vmem:[%s5 + $0x8] sm:$0xff]
        %v4213 = vld [vmem:[%s5 + $0x10] sm:$0xff]
        %v4214 = vld [vmem:[%s5 + $0x18] sm:$0xff]
        %vm4215 = vcmask 130048
        %v4217 = vsel %vm4215, %v4210, 0
        %4219 = vmatpush.msra.mxu0 0.0
        %4220 = vmatpush.msra.mxu0 0.0
        %4221 = vmatpush.msra.mxu0 0.0
        %4222 = vmatpush.msra.mxu0 0.0
        %4223 = vmatpush.msra.mxu0 0.0
        %4224 = vmatpush.msra.mxu0 0.0
        %4225 = vmatpush.msra.mxu0 0.0
        %4226 = vmatpush.msra.mxu0 0.0
        %4227 = vmatpush.msra.mxu0 0.0
        %4228 = vmatpush.msra.mxu0 0.0
        %4229 = vmatpush.msra.mxu0 0.0
        %4230 = vmatpush.msra.mxu0 0.0
        %4231 = vmatpush.msra.mxu0 0.0
        %4232 = vmatpush.msra.mxu0 0.0
        %4233 = vmatpush.msra.mxu0 %v4213
        %4234 = vmatpush.msra.mxu0 %v4211
        %4235 = vmatmul.f32.gmra.mxu0 %v4217
        %v4236 = vpop.f32.mrf.mxu0
        %v4237 = vadd.f32 0.0, %v4236
        %4238 = vdwg.mxu0
        %4239 = vmatpush.msra.mxu0 0.0
        %4240 = vmatpush.msra.mxu0 0.0
        %4241 = vmatpush.msra.mxu0 0.0
        %4242 = vmatpush.msra.mxu0 0.0
        %4243 = vmatpush.msra.mxu0 0.0
        %4244 = vmatpush.msra.mxu0 0.0
        %4245 = vmatpush.msra.mxu0 0.0
        %4246 = vmatpush.msra.mxu0 0.0
        %4247 = vmatpush.msra.mxu0 0.0
        %4248 = vmatpush.msra.mxu0 0.0
        %4249 = vmatpush.msra.mxu0 0.0
        %4250 = vmatpush.msra.mxu0 0.0
        %4251 = vmatpush.msra.mxu0 0.0
        %4252 = vmatpush.msra.mxu0 0.0
        %4253 = vmatpush.msra.mxu0 %v4214
        %4254 = vmatpush.msra.mxu0 %v4212
        %4255 = vmatmul.f32.gmra.mxu0 %v4217
        %v4256 = vpop.f32.mrf.mxu0
        %v4257 = vadd.f32 0.0, %v4256
        %4258 = vdwg.mxu0
        %v4259 = vxor.u32 %v4237, 2147483648
        %v4260 = vxor.u32 %v4257, 2147483648
        %v4261 = vmul.f32 %v4259, 1.442695
        %v4262 = vpow.pop %v4261
        %v4263 = vmul.f32 %v4260, 1.442695
        %v4264 = vpow.pop %v4263
        %v4265 = vadd.f32 %v4262, 1.0
        %v4266 = vadd.f32 %v4264, 1.0
        %v4267 = vrcp.pop %v4265
        %v4268 = vmul.f32 %v4265, %v4267
        %v4269 = vsub.f32 1.0, %v4268
        %v4270 = vmul.f32 %v4267, %v4269
        %v4271 = vadd.f32 %v4267, %v4270
        %vm4272 = vweird.f32 %v4265
        %vm4273 = vweird.f32 %v4267
        %vm4274 = vmor %vm4272, %vm4273
        %v4275 = vsel %vm4274, %v4267, %v4271
        %v4276 = vand.u32 2147483647, %v4265
        %vm4277 = vcmp.eq.f32.partialorder %v4276, 8.507059e+37
        %v4278 = vand.u32 %v4265, 2147483648
        %v4279 = vor.u32 1.1754944e-38, %v4278
        %v4280 = vsel %vm4277, %v4279, %v4275
        %v4281 = vmul.f32 1.0, %v4280
        %v4282 = vrcp.pop %v4266
        %v4283 = vmul.f32 %v4266, %v4282
        %v4284 = vsub.f32 1.0, %v4283
        %v4285 = vmul.f32 %v4282, %v4284
        %v4286 = vadd.f32 %v4282, %v4285
        %vm4287 = vweird.f32 %v4266
        %vm4288 = vweird.f32 %v4282
        %vm4289 = vmor %vm4287, %vm4288
        %v4290 = vsel %vm4289, %v4282, %v4286
        %v4291 = vand.u32 2147483647, %v4266
        %vm4292 = vcmp.eq.f32.partialorder %v4291, 8.507059e+37
        %v4293 = vand.u32 %v4266, 2147483648
        %v4294 = vor.u32 1.1754944e-38, %v4293
        %v4295 = vsel %vm4292, %v4294, %v4290
        %v4296 = vmul.f32 1.0, %v4295
        %v4297 = vld [vmem:[%s9] sm:$0x3]
        %v4299 = vperm.slane %v4297, 0
        %v4300 = vperm.slane %v4297, 1
        %v4303 = vmul.f32 %v4281, %v4299
        %v4304 = vmul.f32 %v4296, %v4300
        %v4305 = vperm.slane %v4303, 0
        %v4306 = vperm.slane %v4304, 0
        %v4307 = vmul.f32 %v3991, %v4305
        %v4308 = vmul.f32 %v3992, %v4306
        %v4309 = vmul.f32 %v3993, %v4305
        %v4310 = vmul.f32 %v3994, %v4306
        %v4311 = vmul.f32 %v3995, %v4305
        %v4312 = vmul.f32 %v3996, %v4306
        %v4313 = vmul.f32 %v3997, %v4305
        %v4314 = vmul.f32 %v3998, %v4306
        %v4315 = vmul.f32 %v3999, %v4305
        %v4316 = vmul.f32 %v4000, %v4306
        %v4317 = vmul.f32 %v4001, %v4305
        %v4318 = vmul.f32 %v4002, %v4306
        %v4319 = vmul.f32 %v4003, %v4305
        %v4320 = vmul.f32 %v4004, %v4306
        %v4321 = vmul.f32 %v4005, %v4305
        %v4322 = vmul.f32 %v4006, %v4306
        %v4323 = vmul.f32 %v4007, %v4305
        %v4324 = vmul.f32 %v4008, %v4306
        %v4325 = vmul.f32 %v4009, %v4305
        %v4326 = vmul.f32 %v4010, %v4306
        %v4327 = vmul.f32 %v4011, %v4305
        %v4328 = vmul.f32 %v4012, %v4306
        %v4329 = vmul.f32 %v4013, %v4305
        %v4330 = vmul.f32 %v4014, %v4306
        %v4331 = vmul.f32 %v4015, %v4305
        %v4332 = vmul.f32 %v4016, %v4306
        %v4333 = vmul.f32 %v4017, %v4305
        %v4334 = vmul.f32 %v4018, %v4306
        %v4335 = vmul.f32 %v4019, %v4305
        %v4336 = vmul.f32 %v4020, %v4306
        %v4337 = vmul.f32 %v4021, %v4305
        %v4338 = vmul.f32 %v4022, %v4306
        %v4339 = vmul.f32 %v4023, %v4305
        %v4340 = vmul.f32 %v4024, %v4306
        %v4341 = vmul.f32 %v4025, %v4305
        %v4342 = vmul.f32 %v4026, %v4306
        %v4343 = vmul.f32 %v4027, %v4305
        %v4344 = vmul.f32 %v4028, %v4306
        %v4345 = vmul.f32 %v4029, %v4305
        %v4346 = vmul.f32 %v4030, %v4306
        %v4347 = vmul.f32 %v4031, %v4305
        %v4348 = vmul.f32 %v4032, %v4306
        %v4349 = vmul.f32 %v4033, %v4305
        %v4350 = vmul.f32 %v4034, %v4306
        %v4351 = vmul.f32 %v4035, %v4305
        %v4352 = vmul.f32 %v4036, %v4306
        %v4353 = vmul.f32 %v4037, %v4305
        %v4354 = vmul.f32 %v4038, %v4306
        %v4355 = vmul.f32 %v4039, %v4305
        %v4356 = vmul.f32 %v4040, %v4306
        %v4357 = vmul.f32 %v4041, %v4305
        %v4358 = vmul.f32 %v4042, %v4306
        %v4359 = vmul.f32 %v4043, %v4305
        %v4360 = vmul.f32 %v4044, %v4306
        %v4361 = vmul.f32 %v4045, %v4305
        %v4362 = vmul.f32 %v4046, %v4306
        %v4363 = vmul.f32 %v4047, %v4305
        %v4364 = vmul.f32 %v4048, %v4306
        %v4365 = vmul.f32 %v4049, %v4305
        %v4366 = vmul.f32 %v4050, %v4306
        %v4367 = vmul.f32 %v4051, %v4305
        %v4368 = vmul.f32 %v4052, %v4306
        %v4369 = vmul.f32 %v4053, %v4305
        %v4370 = vmul.f32 %v4054, %v4306
        %v4371 = vld [vmem:[%s10] sm:$0x3]
        %v4373 = vperm.slane %v4371, 0
        %v4374 = vperm.slane %v4371, 1
        %v4377 = vadd.f32 %v4307, %v4373
        %v4378 = vadd.f32 %v4308, %v4374
        %v4379 = vadd.f32 %v4309, %v4373
        %v4380 = vadd.f32 %v4310, %v4374
        %v4381 = vadd.f32 %v4311, %v4373
        %v4382 = vadd.f32 %v4312, %v4374
        %v4383 = vadd.f32 %v4313, %v4373
        %v4384 = vadd.f32 %v4314, %v4374
        %v4385 = vadd.f32 %v4315, %v4373
        %v4386 = vadd.f32 %v4316, %v4374
        %v4387 = vadd.f32 %v4317, %v4373
        %v4388 = vadd.f32 %v4318, %v4374
        %v4389 = vadd.f32 %v4319, %v4373
        %v4390 = vadd.f32 %v4320, %v4374
        %v4391 = vadd.f32 %v4321, %v4373
        %v4392 = vadd.f32 %v4322, %v4374
        %v4393 = vadd.f32 %v4323, %v4373
        %v4394 = vadd.f32 %v4324, %v4374
        %v4395 = vadd.f32 %v4325, %v4373
        %v4396 = vadd.f32 %v4326, %v4374
        %v4397 = vadd.f32 %v4327, %v4373
        %v4398 = vadd.f32 %v4328, %v4374
        %v4399 = vadd.f32 %v4329, %v4373
        %v4400 = vadd.f32 %v4330, %v4374
        %v4401 = vadd.f32 %v4331, %v4373
        %v4402 = vadd.f32 %v4332, %v4374
        %v4403 = vadd.f32 %v4333, %v4373
        %v4404 = vadd.f32 %v4334, %v4374
        %v4405 = vadd.f32 %v4335, %v4373
        %v4406 = vadd.f32 %v4336, %v4374
        %v4407 = vadd.f32 %v4337, %v4373
        %v4408 = vadd.f32 %v4338, %v4374
        %v4409 = vadd.f32 %v4339, %v4373
        %v4410 = vadd.f32 %v4340, %v4374
        %v4411 = vadd.f32 %v4341, %v4373
        %v4412 = vadd.f32 %v4342, %v4374
        %v4413 = vadd.f32 %v4343, %v4373
        %v4414 = vadd.f32 %v4344, %v4374
        %v4415 = vadd.f32 %v4345, %v4373
        %v4416 = vadd.f32 %v4346, %v4374
        %v4417 = vadd.f32 %v4347, %v4373
        %v4418 = vadd.f32 %v4348, %v4374
        %v4419 = vadd.f32 %v4349, %v4373
        %v4420 = vadd.f32 %v4350, %v4374
        %v4421 = vadd.f32 %v4351, %v4373
        %v4422 = vadd.f32 %v4352, %v4374
        %v4423 = vadd.f32 %v4353, %v4373
        %v4424 = vadd.f32 %v4354, %v4374
        %v4425 = vadd.f32 %v4355, %v4373
        %v4426 = vadd.f32 %v4356, %v4374
        %v4427 = vadd.f32 %v4357, %v4373
        %v4428 = vadd.f32 %v4358, %v4374
        %v4429 = vadd.f32 %v4359, %v4373
        %v4430 = vadd.f32 %v4360, %v4374
        %v4431 = vadd.f32 %v4361, %v4373
        %v4432 = vadd.f32 %v4362, %v4374
        %v4433 = vadd.f32 %v4363, %v4373
        %v4434 = vadd.f32 %v4364, %v4374
        %v4435 = vadd.f32 %v4365, %v4373
        %v4436 = vadd.f32 %v4366, %v4374
        %v4437 = vadd.f32 %v4367, %v4373
        %v4438 = vadd.f32 %v4368, %v4374
        %v4439 = vadd.f32 %v4369, %v4373
        %v4440 = vadd.f32 %v4370, %v4374
        %v4441 = vmax.f32 %v4377, 0.0
        %v4442 = vmax.f32 %v4378, 0.0
        %v4443 = vmax.f32 %v4379, 0.0
        %v4444 = vmax.f32 %v4380, 0.0
        %v4445 = vmax.f32 %v4381, 0.0
        %v4446 = vmax.f32 %v4382, 0.0
        %v4447 = vmax.f32 %v4383, 0.0
        %v4448 = vmax.f32 %v4384, 0.0
        %v4449 = vmax.f32 %v4385, 0.0
        %v4450 = vmax.f32 %v4386, 0.0
        %v4451 = vmax.f32 %v4387, 0.0
        %v4452 = vmax.f32 %v4388, 0.0
        %v4453 = vmax.f32 %v4389, 0.0
        %v4454 = vmax.f32 %v4390, 0.0
        %v4455 = vmax.f32 %v4391, 0.0
        %v4456 = vmax.f32 %v4392, 0.0
        %v4457 = vmax.f32 %v4393, 0.0
        %v4458 = vmax.f32 %v4394, 0.0
        %v4459 = vmax.f32 %v4395, 0.0
        %v4460 = vmax.f32 %v4396, 0.0
        %v4461 = vmax.f32 %v4397, 0.0
        %v4462 = vmax.f32 %v4398, 0.0
        %v4463 = vmax.f32 %v4399, 0.0
        %v4464 = vmax.f32 %v4400, 0.0
        %v4465 = vmax.f32 %v4401, 0.0
        %v4466 = vmax.f32 %v4402, 0.0
        %v4467 = vmax.f32 %v4403, 0.0
        %v4468 = vmax.f32 %v4404, 0.0
        %v4469 = vmax.f32 %v4405, 0.0
        %v4470 = vmax.f32 %v4406, 0.0
        %v4471 = vmax.f32 %v4407, 0.0
        %v4472 = vmax.f32 %v4408, 0.0
        %v4473 = vmax.f32 %v4409, 0.0
        %v4474 = vmax.f32 %v4410, 0.0
        %v4475 = vmax.f32 %v4411, 0.0
        %v4476 = vmax.f32 %v4412, 0.0
        %v4477 = vmax.f32 %v4413, 0.0
        %v4478 = vmax.f32 %v4414, 0.0
        %v4479 = vmax.f32 %v4415, 0.0
        %v4480 = vmax.f32 %v4416, 0.0
        %v4481 = vmax.f32 %v4417, 0.0
        %v4482 = vmax.f32 %v4418, 0.0
        %v4483 = vmax.f32 %v4419, 0.0
        %v4484 = vmax.f32 %v4420, 0.0
        %v4485 = vmax.f32 %v4421, 0.0
        %v4486 = vmax.f32 %v4422, 0.0
        %v4487 = vmax.f32 %v4423, 0.0
        %v4488 = vmax.f32 %v4424, 0.0
        %v4489 = vmax.f32 %v4425, 0.0
        %v4490 = vmax.f32 %v4426, 0.0
        %v4491 = vmax.f32 %v4427, 0.0
        %v4492 = vmax.f32 %v4428, 0.0
        %v4493 = vmax.f32 %v4429, 0.0
        %v4494 = vmax.f32 %v4430, 0.0
        %v4495 = vmax.f32 %v4431, 0.0
        %v4496 = vmax.f32 %v4432, 0.0
        %v4497 = vmax.f32 %v4433, 0.0
        %v4498 = vmax.f32 %v4434, 0.0
        %v4499 = vmax.f32 %v4435, 0.0
        %v4500 = vmax.f32 %v4436, 0.0
        %v4501 = vmax.f32 %v4437, 0.0
        %v4502 = vmax.f32 %v4438, 0.0
        %v4503 = vmax.f32 %v4439, 0.0
        %v4504 = vmax.f32 %v4440, 0.0
        %4505 = vst [vmem:[%s396] sm:$0xff] %v4441
        %4506 = vst [vmem:[%s396 + $0x8] sm:$0xff] %v4442
        %4507 = vst [vmem:[%s396 + $0x10] sm:$0xff] %v4443
        %4508 = vst [vmem:[%s396 + $0x18] sm:$0xff] %v4444
        %4509 = vst [vmem:[%s396 + $0x20] sm:$0xff] %v4445
        %4510 = vst [vmem:[%s396 + $0x28] sm:$0xff] %v4446
        %4511 = vst [vmem:[%s396 + $0x30] sm:$0xff] %v4447
        %4512 = vst [vmem:[%s396 + $0x38] sm:$0xff] %v4448
        %4513 = vst [vmem:[%s396 + $0x40] sm:$0xff] %v4449
        %4514 = vst [vmem:[%s396 + $0x48] sm:$0xff] %v4450
        %4515 = vst [vmem:[%s396 + $0x50] sm:$0xff] %v4451
        %4516 = vst [vmem:[%s396 + $0x58] sm:$0xff] %v4452
        %4517 = vst [vmem:[%s396 + $0x60] sm:$0xff] %v4453
        %4518 = vst [vmem:[%s396 + $0x68] sm:$0xff] %v4454
        %4519 = vst [vmem:[%s396 + $0x70] sm:$0xff] %v4455
        %4520 = vst [vmem:[%s396 + $0x78] sm:$0xff] %v4456
        %4521 = vst [vmem:[%s396 + $0x80] sm:$0xff] %v4457
        %4522 = vst [vmem:[%s396 + $0x88] sm:$0xff] %v4458
        %4523 = vst [vmem:[%s396 + $0x90] sm:$0xff] %v4459
        %4524 = vst [vmem:[%s396 + $0x98] sm:$0xff] %v4460
        %4525 = vst [vmem:[%s396 + $0xa0] sm:$0xff] %v4461
        %4526 = vst [vmem:[%s396 + $0xa8] sm:$0xff] %v4462
        %4527 = vst [vmem:[%s396 + $0xb0] sm:$0xff] %v4463
        %4528 = vst [vmem:[%s396 + $0xb8] sm:$0xff] %v4464
        %4529 = vst [vmem:[%s396 + $0xc0] sm:$0xff] %v4465
        %4530 = vst [vmem:[%s396 + $0xc8] sm:$0xff] %v4466
        %4531 = vst [vmem:[%s396 + $0xd0] sm:$0xff] %v4467
        %4532 = vst [vmem:[%s396 + $0xd8] sm:$0xff] %v4468
        %4533 = vst [vmem:[%s396 + $0xe0] sm:$0xff] %v4469
        %4534 = vst [vmem:[%s396 + $0xe8] sm:$0xff] %v4470
        %4535 = vst [vmem:[%s396 + $0xf0] sm:$0xff] %v4471
        %4536 = vst [vmem:[%s396 + $0xf8] sm:$0xff] %v4472
        %4537 = vst [vmem:[%s396 + $0x100] sm:$0xff] %v4473
        %4538 = vst [vmem:[%s396 + $0x108] sm:$0xff] %v4474
        %4539 = vst [vmem:[%s396 + $0x110] sm:$0xff] %v4475
        %4540 = vst [vmem:[%s396 + $0x118] sm:$0xff] %v4476
        %4541 = vst [vmem:[%s396 + $0x120] sm:$0xff] %v4477
        %4542 = vst [vmem:[%s396 + $0x128] sm:$0xff] %v4478
        %4543 = vst [vmem:[%s396 + $0x130] sm:$0xff] %v4479
        %4544 = vst [vmem:[%s396 + $0x138] sm:$0xff] %v4480
        %4545 = vst [vmem:[%s396 + $0x140] sm:$0xff] %v4481
        %4546 = vst [vmem:[%s396 + $0x148] sm:$0xff] %v4482
        %4547 = vst [vmem:[%s396 + $0x150] sm:$0xff] %v4483
        %4548 = vst [vmem:[%s396 + $0x158] sm:$0xff] %v4484
        %4549 = vst [vmem:[%s396 + $0x160] sm:$0xff] %v4485
        %4550 = vst [vmem:[%s396 + $0x168] sm:$0xff] %v4486
        %4551 = vst [vmem:[%s396 + $0x170] sm:$0xff] %v4487
        %4552 = vst [vmem:[%s396 + $0x178] sm:$0xff] %v4488
        %4553 = vst [vmem:[%s396 + $0x180] sm:$0xff] %v4489
        %4554 = vst [vmem:[%s396 + $0x188] sm:$0xff] %v4490
        %4555 = vst [vmem:[%s396 + $0x190] sm:$0xff] %v4491
        %4556 = vst [vmem:[%s396 + $0x198] sm:$0xff] %v4492
        %4557 = vst [vmem:[%s396 + $0x1a0] sm:$0xff] %v4493
        %4558 = vst [vmem:[%s396 + $0x1a8] sm:$0xff] %v4494
        %4559 = vst [vmem:[%s396 + $0x1b0] sm:$0xff] %v4495
        %4560 = vst [vmem:[%s396 + $0x1b8] sm:$0xff] %v4496
        %4561 = vst [vmem:[%s396 + $0x1c0] sm:$0xff] %v4497
        %4562 = vst [vmem:[%s396 + $0x1c8] sm:$0xff] %v4498
        %4563 = vst [vmem:[%s396 + $0x1d0] sm:$0xff] %v4499
        %4564 = vst [vmem:[%s396 + $0x1d8] sm:$0xff] %v4500
        %4565 = vst [vmem:[%s396 + $0x1e0] sm:$0xff] %v4501
        %4566 = vst [vmem:[%s396 + $0x1e8] sm:$0xff] %v4502
        %4567 = vst [vmem:[%s396 + $0x1f0] sm:$0xff] %v4503
        %4568 = vst [vmem:[%s396 + $0x1f8] sm:$0xff] %v4504
        %s4569 = sand.u32 %s270, 1
        %s4570 = scalar_lea.sflag [#allocation6], %s4569
        %s4571 = sand.u32 %s270, 1
        %s4572 = smul.addr %s4571, 512
        %s4573 = scalar_lea.vmem [#allocation7], %s4572
        // Predicated region
        $region69: #{tpu_custom_call.1} parent=63 // pred_check
          %p4574 = pneg %p280
        $region70: #{tpu_custom_call.1} parent=63 // pred_check_branch
          %4576 = sbr.rel (%p4574) target = $region72
        $region71: #{tpu_custom_call.1} parent=63 // pred_region
          %4578 = vsyncadd %s4570, 0
          %s4579 = smul.addr %s26, 64
          %s4580 = smul.addr %s4579, 8
          %s4581 = scalar_lea.hbm %s11, %s4580
          %s4582 = sshll.u32 %s4573, 4
          %s4583 = int_to_ptr.vmem [resolvable:$true] %s4582
          %s4584 = sshll.u32 %s4581, 4
          %s4585 = int_to_ptr.hbm [resolvable:$true] %s4584
          %4590 = dma.vmem_to_hbm [thread:$0]  %s4583, 8192, %s4585, %s4570, 256, 256, 16
        $region72: #{tpu_custom_call.1} parent=63 // pred_fallthru
          _
      $region64: #{tpu_custom_call.1} parent=5 // pred_fallthru
        _
      %p4591 = scmp.le.s32.totalorder 2, %s21
      // Predicated region
      $region73: #{tpu_custom_call.1} parent=5 // pred_check
        %p4592 = pneg %p4591
      $region74: #{tpu_custom_call.1} parent=5 // pred_check_branch
        %4594 = sbr.rel (%p4592) target = $region76
      $region75: #{tpu_custom_call.1} parent=5 // pred_region
        %s4595 = ssub.s32 %s21, 2
        // Predicated region
        $region77: #{tpu_custom_call.1} parent=75 // pred_check
          %p4596 = pneg %p286
        $region78: #{tpu_custom_call.1} parent=75 // pred_check_branch
          %4598 = sbr.rel (%p4596) target = $region80
        $region79: #{tpu_custom_call.1} parent=75 // pred_region
          %s4599 = sand.u32 %s271, 1
          %s4600 = scalar_lea.sflag [#allocation6], %s4599
          %s4601 = sand.u32 %s271, 1
          %s4602 = smul.addr %s4601, 512
          %s4603 = scalar_lea.vmem [#allocation7], %s4602
          %4605 = dma.done %s4600, 8192
        $region80: #{tpu_custom_call.1} parent=75 // pred_fallthru
          _
      $region76: #{tpu_custom_call.1} parent=5 // pred_fallthru
        _
    $region6: #{tpu_custom_call.1} parent=1 // loop_footer
      %s25 = sadd.s32 1, %s21
    $region7: #{tpu_custom_call.1} parent=1 // loop_footer_branch
      %20 = sbr.rel target = $region3
    $region8: #{tpu_custom_call.1} parent=1 // loop_exit
      _
    %4606 = vsyncpa [#allocation5], 1
    %s4607 = scalar_lea.sflag [#allocation5], 1
    %4608 = vsyncpa %s4607, 1
    %4609 = vsyncpa [#allocation6], 1
    %s4610 = scalar_lea.sflag [#allocation6], 1
    %4611 = vsyncpa %s4610, 1

</llo_original>
